<compile_context>
chip_gen: v7x
topology: tpu7x:2x2x1
jax: 0.10.0
libtpu: 0.0.40
codegen_flags: <defaults>
</compile_context>

<pallas_src>
import functools

import numpy as np

import jax
import jax.numpy as jnp
from jax.experimental import pallas as pl
from jax.experimental.pallas import tpu as pltpu


_W_KEYS = ('w1', 'b1', 's1', 'sa1', 't1',
           'w2', 'b2', 's2', 'sa2', 't2',
           'fcw', 'fcb')


# ------------------------------ fused kernel ------------------------------

def _fused_kernel(x_ref, w1_ref, b1_ref, s1_ref, sa1_ref, t1_ref,
                  w2_ref, b2_ref, s2_ref, sa2_ref, t2_ref,
                  fcw_ref, fcb_ref, o_ref):
    """conv1+PReLU+BN+pool -> conv2+PReLU+BN+pool -> FC, all in VMEM.

    x_ref  : (Bt, 28, 32)  raw pixels, W lane-padded 28->32 with zeros
    w1_ref : (160, 768)    conv1 weight; rows = dh*32+w_in, cols = permuted (w_out, c)
    w2_ref : (1920, 256)   conv2 weight; rows = dh*384+w_in*32+ci, cols = permuted (w_out, c)
    fcw_ref: (512, 128)    FC weight; rows = hp*128+wp*32+c, cols padded to 128
    b*/s*/sa*/t* : (1, N)  per-channel bias/PReLU/BN vectors tiled to the lane layout
    o_ref  : (Bt, 128)     lane-dense padded logits
    """
    Bt = x_ref.shape[0]
    x = x_ref[...]                                                   # (Bt, 28, 32)

    # ---- conv1: one K=160 matmul (5 dh-shifted row windows lane-concatenated) ----
    p1 = jnp.concatenate([x[:, dh:dh + 24, :] for dh in range(5)], axis=-1)
    p1 = p1.reshape(Bt * 24, 160)
    z1 = jnp.dot(p1, w1_ref[...], preferred_element_type=jnp.float32) + b1_ref[...]
    # PReLU + eval-mode BatchNorm folded: where(z>=0, s*z, (s*a)*z) + t
    y1 = jnp.where(z1 >= 0.0, s1_ref[...] * z1, sa1_ref[...] * z1) + t1_ref[...]

    # 2x2/stride-2 max pool: H over adjacent row pairs; W is folded into the
    # weight's output-lane ordering -> max of two 128-aligned lane halves.
    y1 = y1.reshape(Bt * 12, 2, 768).max(axis=1)                     # (Bt*12, 768)
    x2 = jnp.maximum(y1[:, :384], y1[:, 384:])                       # (Bt*12, 384) = (b,h)x(w=12,c=32)

    # ---- conv2: one K=1920 matmul (5 dh-shifted windows, 128-aligned concat) ----
    x2 = x2.reshape(Bt, 12, 384)
    p2 = jnp.concatenate([x2[:, dh:dh + 8, :] for dh in range(5)], axis=-1)
    p2 = p2.reshape(Bt * 8, 1920)
    z2 = jnp.dot(p2, w2_ref[...], preferred_element_type=jnp.float32) + b2_ref[...]
    y2 = jnp.where(z2 >= 0.0, s2_ref[...] * z2, sa2_ref[...] * z2) + t2_ref[...]

    y2 = y2.reshape(Bt * 4, 2, 256).max(axis=1)                      # pool H -> (Bt*4, 256)
    y2 = jnp.maximum(y2[:, :128], y2[:, 128:])                       # pool W -> (Bt*4, 128)
    # TODO(synk): nn.Dropout(0.2) is identity in eval mode; training-mode dropout
    #             and training-mode BatchNorm (batch stats) are omitted.

    # ---- FC: single (Bt, 512) @ (512, 128) matmul, lane-dense padded store ----
    y2 = y2.reshape(Bt, 4, 128)
    f = jnp.concatenate(
        [y2[:, hp:hp + 1, :].reshape(Bt, 128) for hp in range(4)], axis=-1)  # (Bt, 512)
    o_ref[...] = jnp.dot(f, fcw_ref[...], preferred_element_type=jnp.float32) + fcb_ref[...]


# ------------------------------ weight folding ------------------------------

def prepare_params(p, eps=1e-5):
    """One-time (host-side) folding of weights into the kernel's matmul layouts."""
    f = lambda a: np.asarray(a, np.float32)
    w1 = f(p['w1'])                              # (32, 1, 5, 5)  (co, ci, kh, kw)
    w2 = f(p['w2'])                              # (32, 32, 5, 5)
    classes = int(p['fc_w'].shape[0])
    assert classes <= 128, "kernel packs logits into 128 lanes"

    # Output-lane orders fold the 2x2 W-pool: even/odd output columns go to
    # separate 128-aligned lane halves, channel c is innermost.
    outlane1 = lambda w: (w % 2) * 384 + (w // 2) * 32   # conv1: 24 w_out -> 768 lanes
    outlane2 = lambda w: (w % 2) * 128 + (w // 2) * 32   # conv2:  8 w_out -> 256 lanes

    # conv1: (Bt*24, 160) @ (160, 768); patch lane = dh*32 + w_in (w_in < 28).
    W1 = np.zeros((160, 768), np.float32)
    for dh in range(5):
        tap = w1[:, 0, dh, :].T                          # (dw, co)
        for wo in range(24):
            W1[dh * 32 + wo: dh * 32 + wo + 5, outlane1(wo):outlane1(wo) + 32] = tap

    # conv2: (Bt*8, 1920) @ (1920, 256); patch lane = dh*384 + w_in*32 + ci.
    W2 = np.zeros((1920, 256), np.float32)
    for dh in range(5):
        for dw in range(5):
            tap = w2[:, :, dh, dw].T                     # (ci, co)
            for wo in range(8):
                wi = wo + dw
                W2[dh * 384 + wi * 32: dh * 384 + (wi + 1) * 32,
                   outlane2(wo):outlane2(wo) + 32] = tap

    # FC: fold torch's NCHW flatten (c*16 + h*4 + w) into rows hp*128 + wp*32 + c,
    # pad the output dim to 128 lanes.
    fcw = f(p['fc_w']).reshape(classes, 32, 4, 4)        # (cls, c, h, w)
    WFC = np.zeros((512, 128), np.float32)
    WFC[:, :classes] = np.transpose(fcw, (2, 3, 1, 0)).reshape(512, classes)
    fcb = np.zeros((1, 128), np.float32)
    fcb[0, :classes] = f(p['fc_b'])

    s1 = f(p['g1']) / np.sqrt(f(p['v1']) + eps)
    s2 = f(p['g2']) / np.sqrt(f(p['v2']) + eps)
    a1 = float(np.asarray(p['a1']).reshape(()))
    a2 = float(np.asarray(p['a2']).reshape(()))
    t1 = f(p['be1']) - f(p['m1']) * s1
    t2 = f(p['be2']) - f(p['m2']) * s2

    tile = lambda v, n: np.tile(np.asarray(v, np.float32), n).reshape(1, 32 * n)

    out = dict(
        w1=W1, b1=tile(p['b1'], 24), s1=tile(s1, 24), sa1=tile(s1 * a1, 24), t1=tile(t1, 24),
        w2=W2, b2=tile(p['b2'], 8),  s2=tile(s2, 8),  sa2=tile(s2 * a2, 8),  t2=tile(t2, 8),
        fcw=WFC, fcb=fcb)
    return {k: jnp.asarray(v) for k, v in out.items()}


# ------------------------------ JAX glue ------------------------------

def _pick_bt(B, target):
    if B <= target:
        return B
    for bt in range(min(target, B), 0, -1):
        if B % bt == 0 and (bt % 8 == 0 or bt == B):
            return bt
    return B


@functools.partial(jax.jit, static_argnames=('classes', 'batch_tile'))
def fmnist_cnn_forward(x_nchw, kp, *, classes=10, batch_tile=8):
    B, Cin, H, W = x_nchw.shape
    assert Cin == 1 and H == 28 and W == 28 and classes <= 128
    bt = _pick_bt(B, batch_tile)

    # Raw pixels only (no im2col blow-up); lane-pad W 28 -> 32 with zeros.
    x = jnp.pad(x_nchw.reshape(B, 28, 28), ((0, 0), (0, 0), (0, 4)))

    def wspec(a):
        return pl.BlockSpec(a.shape, lambda i: (0,) * a.ndim)   # resident weights

    out = pl.pallas_call(
        _fused_kernel,
        out_shape=jax.ShapeDtypeStruct((B, 128), jnp.float32),
        grid=(B // bt,),
        in_specs=[pl.BlockSpec((bt, 28, 32), lambda i: (i, 0, 0))]
                 + [wspec(kp[k]) for k in _W_KEYS],
        out_specs=pl.BlockSpec((bt, 128), lambda i: (i, 0)),
        compiler_params=pltpu.CompilerParams(
            dimension_semantics=("parallel",),
            vmem_limit_bytes=48 * 1024 * 1024),
    )(x, *[kp[k] for k in _W_KEYS])
    return out[:, :classes]          # lane-dense store in-kernel; slice outside


# ------------------------------ plain-JAX reference ------------------------------

def ref_forward(x_nchw, p, eps=1e-5):
    def block(x, w, b, a, g, be, m, v):
        y = jax.lax.conv_general_dilated(
            x, w, window_strides=(1, 1), padding='VALID',
            dimension_numbers=('NCHW', 'OIHW', 'NCHW'))
        y = y + b[None, :, None, None]
        y = jnp.where(y >= 0, y, a.reshape(()) * y)
        s = g / jnp.sqrt(v + eps)
        y = y * s[None, :, None, None] + (be - m * s)[None, :, None, None]
        B, C, H, W = y.shape
        return y.reshape(B, C, H // 2, 2, W // 2, 2).max(axis=(3, 5))

    x = block(x_nchw, p['w1'], p['b1'], p['a1'], p['g1'], p['be1'], p['m1'], p['v1'])
    x = block(x, p['w2'], p['b2'], p['a2'], p['g2'], p['be2'], p['m2'], p['v2'])
    x = x.reshape(x.shape[0], -1)
    return x @ p['fc_w'].T + p['fc_b'][None]


# ------------------------------ main ------------------------------

if __name__ == "__main__":
    key = jax.random.PRNGKey(0)
    ks = jax.random.split(key, 12)

    B, Cin, H, W, classes = 2, 1, 28, 28, 10
    p = {
        # convlayer1: Conv2d(1, 32, 5), PReLU(), BatchNorm2d(32)
        'w1': 0.1 * jax.random.normal(ks[0], (32, Cin, 5, 5), jnp.float32),
        'b1': 0.1 * jax.random.normal(ks[1], (32,), jnp.float32),
        'a1': jnp.full((1, 1), 0.25, jnp.float32),           # PReLU default init
        'g1': 1.0 + 0.1 * jax.random.normal(ks[2], (32,), jnp.float32),
        'be1': 0.1 * jax.random.normal(ks[3], (32,), jnp.float32),
        'm1': 0.1 * jax.random.normal(ks[4], (32,), jnp.float32),
        'v1': jax.random.uniform(ks[5], (32,), jnp.float32, 0.5, 1.5),
        # convlayer2: Conv2d(32, 32, 5), PReLU(), BatchNorm2d(32)
        'w2': 0.05 * jax.random.normal(ks[6], (32, 32, 5, 5), jnp.float32),
        'b2': 0.1 * jax.random.normal(ks[7], (32,), jnp.float32),
        'a2': jnp.full((1, 1), 0.25, jnp.float32),
        'g2': 1.0 + 0.1 * jax.random.normal(ks[8], (32,), jnp.float32),
        'be2': 0.1 * jax.random.normal(ks[9], (32,), jnp.float32),
        'm2': 0.1 * jax.random.normal(ks[4], (32,), jnp.float32),
        'v2': jax.random.uniform(ks[5], (32,), jnp.float32, 0.5, 1.5),
        # denselayer: Linear(32*4*4, 10)
        'fc_w': 0.05 * jax.random.normal(ks[10], (classes, 32 * 4 * 4), jnp.float32),
        'fc_b': 0.1 * jax.random.normal(ks[11], (classes,), jnp.float32),
    }

    kp = prepare_params(p)   # one-time weight folding (host side, outside jit)

    x = jax.random.normal(jax.random.PRNGKey(0), (B, Cin, H, W), jnp.float32)

    out = fmnist_cnn_forward(x, kp, classes=classes)
    out = jax.block_until_ready(out)

    assert out.shape == (B, classes), out.shape
    assert jnp.all(jnp.isfinite(out))
    ref = ref_forward(x, p)
    assert jnp.allclose(out, ref, atol=1e-3, rtol=1e-3), (out, ref)

    print("KERNEL_OK")
</pallas_src>

<mosaic_0001>
module attributes {stable_mosaic.version = 11 : i64} {
  func.func @_fused_kernel(%arg0: i32, %arg1: memref<2x28x32xf32, #tpu.memory_space<vmem>>, %arg2: memref<160x768xf32, #tpu.memory_space<vmem>>, %arg3: memref<1x768xf32, #tpu.memory_space<vmem>>, %arg4: memref<1x768xf32, #tpu.memory_space<vmem>>, %arg5: memref<1x768xf32, #tpu.memory_space<vmem>>, %arg6: memref<1x768xf32, #tpu.memory_space<vmem>>, %arg7: memref<1920x256xf32, #tpu.memory_space<vmem>>, %arg8: memref<1x256xf32, #tpu.memory_space<vmem>>, %arg9: memref<1x256xf32, #tpu.memory_space<vmem>>, %arg10: memref<1x256xf32, #tpu.memory_space<vmem>>, %arg11: memref<1x256xf32, #tpu.memory_space<vmem>>, %arg12: memref<512x128xf32, #tpu.memory_space<vmem>>, %arg13: memref<1x128xf32, #tpu.memory_space<vmem>>, %arg14: memref<2x128xf32, #tpu.memory_space<vmem>>) attributes {dimension_semantics = [#tpu.dimension_semantics<parallel>], iteration_bounds = array<i64: 1>, scalar_prefetch = 0 : i64, scratch_operands = 0 : i64, tpu.core_type = #tpu.core_type<tc>, window_params = [{transform_indices = @transform_0, window_bounds = array<i64: 2, 28, 32>}, {pipeline_mode = #tpu.pipeline_mode<synchronous>, transform_indices = @transform_1, window_bounds = array<i64: 160, 768>}, {pipeline_mode = #tpu.pipeline_mode<synchronous>, transform_indices = @transform_2, window_bounds = array<i64: 1, 768>}, {pipeline_mode = #tpu.pipeline_mode<synchronous>, transform_indices = @transform_3, window_bounds = array<i64: 1, 768>}, {pipeline_mode = #tpu.pipeline_mode<synchronous>, transform_indices = @transform_4, window_bounds = array<i64: 1, 768>}, {pipeline_mode = #tpu.pipeline_mode<synchronous>, transform_indices = @transform_5, window_bounds = array<i64: 1, 768>}, {pipeline_mode = #tpu.pipeline_mode<synchronous>, transform_indices = @transform_6, window_bounds = array<i64: 1920, 256>}, {pipeline_mode = #tpu.pipeline_mode<synchronous>, transform_indices = @transform_7, window_bounds = array<i64: 1, 256>}, {pipeline_mode = #tpu.pipeline_mode<synchronous>, transform_indices = @transform_8, window_bounds = array<i64: 1, 256>}, {pipeline_mode = #tpu.pipeline_mode<synchronous>, transform_indices = @transform_9, window_bounds = array<i64: 1, 256>}, {pipeline_mode = #tpu.pipeline_mode<synchronous>, transform_indices = @transform_10, window_bounds = array<i64: 1, 256>}, {pipeline_mode = #tpu.pipeline_mode<synchronous>, transform_indices = @transform_11, window_bounds = array<i64: 512, 128>}, {pipeline_mode = #tpu.pipeline_mode<synchronous>, transform_indices = @transform_12, window_bounds = array<i64: 1, 128>}, {transform_indices = @transform_13, window_bounds = array<i64: 2, 128>}]} {
    %c0 = arith.constant 0 : index
    %c0_0 = arith.constant 0 : index
    %c0_1 = arith.constant 0 : index
    %0 = vector.load %arg1[%c0, %c0_0, %c0_1] : memref<2x28x32xf32, #tpu.memory_space<vmem>>, vector<2x28x32xf32>
    %1 = vector.extract_strided_slice %0 {offsets = [0, 0, 0], sizes = [2, 24, 32], strides = [1, 1, 1]} : vector<2x28x32xf32> to vector<2x24x32xf32>
    %2 = vector.extract_strided_slice %0 {offsets = [0, 1, 0], sizes = [2, 24, 32], strides = [1, 1, 1]} : vector<2x28x32xf32> to vector<2x24x32xf32>
    %3 = vector.extract_strided_slice %0 {offsets = [0, 2, 0], sizes = [2, 24, 32], strides = [1, 1, 1]} : vector<2x28x32xf32> to vector<2x24x32xf32>
    %4 = vector.extract_strided_slice %0 {offsets = [0, 3, 0], sizes = [2, 24, 32], strides = [1, 1, 1]} : vector<2x28x32xf32> to vector<2x24x32xf32>
    %5 = vector.extract_strided_slice %0 {offsets = [0, 4, 0], sizes = [2, 24, 32], strides = [1, 1, 1]} : vector<2x28x32xf32> to vector<2x24x32xf32>
    %6 = tpu.concatenate %1, %2, %3, %4, %5 in 2 : vector<2x24x32xf32>, vector<2x24x32xf32>, vector<2x24x32xf32>, vector<2x24x32xf32>, vector<2x24x32xf32> -> vector<2x24x160xf32>
    %7 = vector.shape_cast %6 : vector<2x24x160xf32> to vector<48x160xf32>
    %c0_2 = arith.constant 0 : index
    %c0_3 = arith.constant 0 : index
    %8 = vector.load %arg2[%c0_2, %c0_3] : memref<160x768xf32, #tpu.memory_space<vmem>>, vector<160x768xf32>
    %cst = arith.constant dense<0.000000e+00> : vector<48x768xf32>
    %9 = tpu.matmul %7, %8, %cst {dimension_numbers = #tpu.dot_dimension_numbers<[1], [0], [0], [1], [0, 0, 1, 1], [], []>} : vector<48x160xf32>, vector<160x768xf32>, vector<48x768xf32> -> vector<48x768xf32>
    %c0_4 = arith.constant 0 : index
    %c0_5 = arith.constant 0 : index
    %10 = vector.load %arg3[%c0_4, %c0_5] : memref<1x768xf32, #tpu.memory_space<vmem>>, vector<1x768xf32>
    %11 = vector.broadcast %10 : vector<1x768xf32> to vector<48x768xf32>
    %12 = arith.addf %9, %11 : vector<48x768xf32>
    %cst_6 = arith.constant 0.000000e+00 : f32
    %13 = vector.broadcast %cst_6 : f32 to vector<48x768xf32>
    %14 = arith.cmpf oge, %12, %13 : vector<48x768xf32>
    %c0_7 = arith.constant 0 : index
    %c0_8 = arith.constant 0 : index
    %15 = vector.load %arg4[%c0_7, %c0_8] : memref<1x768xf32, #tpu.memory_space<vmem>>, vector<1x768xf32>
    %16 = vector.broadcast %15 : vector<1x768xf32> to vector<48x768xf32>
    %17 = arith.mulf %16, %12 : vector<48x768xf32>
    %c0_9 = arith.constant 0 : index
    %c0_10 = arith.constant 0 : index
    %18 = vector.load %arg5[%c0_9, %c0_10] : memref<1x768xf32, #tpu.memory_space<vmem>>, vector<1x768xf32>
    %19 = vector.broadcast %18 : vector<1x768xf32> to vector<48x768xf32>
    %20 = arith.mulf %19, %12 : vector<48x768xf32>
    %21 = arith.select %14, %17, %20 : vector<48x768xi1>, vector<48x768xf32>
    %c0_11 = arith.constant 0 : index
    %c0_12 = arith.constant 0 : index
    %22 = vector.load %arg6[%c0_11, %c0_12] : memref<1x768xf32, #tpu.memory_space<vmem>>, vector<1x768xf32>
    %23 = vector.broadcast %22 : vector<1x768xf32> to vector<48x768xf32>
    %24 = arith.addf %21, %23 : vector<48x768xf32>
    %25 = vector.shape_cast %24 : vector<48x768xf32> to vector<24x2x768xf32>
    %cst_13 = arith.constant dense<0xFF800000> : vector<24x768xf32>
    %26 = vector.multi_reduction <maximumf>, %25, %cst_13 [1] : vector<24x2x768xf32> to vector<24x768xf32>
    %27 = vector.extract_strided_slice %26 {offsets = [0, 0], sizes = [24, 384], strides = [1, 1]} : vector<24x768xf32> to vector<24x384xf32>
    %28 = vector.extract_strided_slice %26 {offsets = [0, 384], sizes = [24, 384], strides = [1, 1]} : vector<24x768xf32> to vector<24x384xf32>
    %29 = arith.maximumf %27, %28 : vector<24x384xf32>
    %30 = vector.shape_cast %29 : vector<24x384xf32> to vector<2x12x384xf32>
    %31 = vector.extract_strided_slice %30 {offsets = [0, 0, 0], sizes = [2, 8, 384], strides = [1, 1, 1]} : vector<2x12x384xf32> to vector<2x8x384xf32>
    %32 = vector.extract_strided_slice %30 {offsets = [0, 1, 0], sizes = [2, 8, 384], strides = [1, 1, 1]} : vector<2x12x384xf32> to vector<2x8x384xf32>
    %33 = vector.extract_strided_slice %30 {offsets = [0, 2, 0], sizes = [2, 8, 384], strides = [1, 1, 1]} : vector<2x12x384xf32> to vector<2x8x384xf32>
    %34 = vector.extract_strided_slice %30 {offsets = [0, 3, 0], sizes = [2, 8, 384], strides = [1, 1, 1]} : vector<2x12x384xf32> to vector<2x8x384xf32>
    %35 = vector.extract_strided_slice %30 {offsets = [0, 4, 0], sizes = [2, 8, 384], strides = [1, 1, 1]} : vector<2x12x384xf32> to vector<2x8x384xf32>
    %36 = tpu.concatenate %31, %32, %33, %34, %35 in 2 : vector<2x8x384xf32>, vector<2x8x384xf32>, vector<2x8x384xf32>, vector<2x8x384xf32>, vector<2x8x384xf32> -> vector<2x8x1920xf32>
    %37 = vector.shape_cast %36 : vector<2x8x1920xf32> to vector<16x1920xf32>
    %c0_14 = arith.constant 0 : index
    %c0_15 = arith.constant 0 : index
    %38 = vector.load %arg7[%c0_14, %c0_15] : memref<1920x256xf32, #tpu.memory_space<vmem>>, vector<1920x256xf32>
    %cst_16 = arith.constant dense<0.000000e+00> : vector<16x256xf32>
    %39 = tpu.matmul %37, %38, %cst_16 {dimension_numbers = #tpu.dot_dimension_numbers<[1], [0], [0], [1], [0, 0, 1, 1], [], []>} : vector<16x1920xf32>, vector<1920x256xf32>, vector<16x256xf32> -> vector<16x256xf32>
    %c0_17 = arith.constant 0 : index
    %c0_18 = arith.constant 0 : index
    %40 = vector.load %arg8[%c0_17, %c0_18] : memref<1x256xf32, #tpu.memory_space<vmem>>, vector<1x256xf32>
    %41 = vector.broadcast %40 : vector<1x256xf32> to vector<16x256xf32>
    %42 = arith.addf %39, %41 : vector<16x256xf32>
    %cst_19 = arith.constant 0.000000e+00 : f32
    %43 = vector.broadcast %cst_19 : f32 to vector<16x256xf32>
    %44 = arith.cmpf oge, %42, %43 : vector<16x256xf32>
    %c0_20 = arith.constant 0 : index
    %c0_21 = arith.constant 0 : index
    %45 = vector.load %arg9[%c0_20, %c0_21] : memref<1x256xf32, #tpu.memory_space<vmem>>, vector<1x256xf32>
    %46 = vector.broadcast %45 : vector<1x256xf32> to vector<16x256xf32>
    %47 = arith.mulf %46, %42 : vector<16x256xf32>
    %c0_22 = arith.constant 0 : index
    %c0_23 = arith.constant 0 : index
    %48 = vector.load %arg10[%c0_22, %c0_23] : memref<1x256xf32, #tpu.memory_space<vmem>>, vector<1x256xf32>
    %49 = vector.broadcast %48 : vector<1x256xf32> to vector<16x256xf32>
    %50 = arith.mulf %49, %42 : vector<16x256xf32>
    %51 = arith.select %44, %47, %50 : vector<16x256xi1>, vector<16x256xf32>
    %c0_24 = arith.constant 0 : index
    %c0_25 = arith.constant 0 : index
    %52 = vector.load %arg11[%c0_24, %c0_25] : memref<1x256xf32, #tpu.memory_space<vmem>>, vector<1x256xf32>
    %53 = vector.broadcast %52 : vector<1x256xf32> to vector<16x256xf32>
    %54 = arith.addf %51, %53 : vector<16x256xf32>
    %55 = vector.shape_cast %54 : vector<16x256xf32> to vector<8x2x256xf32>
    %cst_26 = arith.constant dense<0xFF800000> : vector<8x256xf32>
    %56 = vector.multi_reduction <maximumf>, %55, %cst_26 [1] : vector<8x2x256xf32> to vector<8x256xf32>
    %57 = vector.extract_strided_slice %56 {offsets = [0, 0], sizes = [8, 128], strides = [1, 1]} : vector<8x256xf32> to vector<8x128xf32>
    %58 = vector.extract_strided_slice %56 {offsets = [0, 128], sizes = [8, 128], strides = [1, 1]} : vector<8x256xf32> to vector<8x128xf32>
    %59 = arith.maximumf %57, %58 : vector<8x128xf32>
    %60 = vector.shape_cast %59 : vector<8x128xf32> to vector<2x4x128xf32>
    %61 = vector.extract_strided_slice %60 {offsets = [0, 0, 0], sizes = [2, 1, 128], strides = [1, 1, 1]} : vector<2x4x128xf32> to vector<2x1x128xf32>
    %62 = vector.shape_cast %61 : vector<2x1x128xf32> to vector<2x128xf32>
    %63 = vector.extract_strided_slice %60 {offsets = [0, 1, 0], sizes = [2, 1, 128], strides = [1, 1, 1]} : vector<2x4x128xf32> to vector<2x1x128xf32>
    %64 = vector.shape_cast %63 : vector<2x1x128xf32> to vector<2x128xf32>
    %65 = vector.extract_strided_slice %60 {offsets = [0, 2, 0], sizes = [2, 1, 128], strides = [1, 1, 1]} : vector<2x4x128xf32> to vector<2x1x128xf32>
    %66 = vector.shape_cast %65 : vector<2x1x128xf32> to vector<2x128xf32>
    %67 = vector.extract_strided_slice %60 {offsets = [0, 3, 0], sizes = [2, 1, 128], strides = [1, 1, 1]} : vector<2x4x128xf32> to vector<2x1x128xf32>
    %68 = vector.shape_cast %67 : vector<2x1x128xf32> to vector<2x128xf32>
    %69 = tpu.concatenate %62, %64, %66, %68 in 1 : vector<2x128xf32>, vector<2x128xf32>, vector<2x128xf32>, vector<2x128xf32> -> vector<2x512xf32>
    %c0_27 = arith.constant 0 : index
    %c0_28 = arith.constant 0 : index
    %70 = vector.load %arg12[%c0_27, %c0_28] : memref<512x128xf32, #tpu.memory_space<vmem>>, vector<512x128xf32>
    %cst_29 = arith.constant dense<0.000000e+00> : vector<2x128xf32>
    %71 = tpu.matmul %69, %70, %cst_29 {dimension_numbers = #tpu.dot_dimension_numbers<[1], [0], [0], [1], [0, 0, 1, 1], [], []>} : vector<2x512xf32>, vector<512x128xf32>, vector<2x128xf32> -> vector<2x128xf32>
    %c0_30 = arith.constant 0 : index
    %c0_31 = arith.constant 0 : index
    %72 = vector.load %arg13[%c0_30, %c0_31] : memref<1x128xf32, #tpu.memory_space<vmem>>, vector<1x128xf32>
    %73 = vector.broadcast %72 : vector<1x128xf32> to vector<2x128xf32>
    %74 = arith.addf %71, %73 : vector<2x128xf32>
    %c0_32 = arith.constant 0 : index
    %c0_33 = arith.constant 0 : index
    %75 = vector.load %arg14[%c0_32, %c0_33] : memref<2x128xf32, #tpu.memory_space<vmem>>, vector<2x128xf32>
    tpu.vector_store %arg14[%c0_32, %c0_33], %74 {strides = array<i32>} : memref<2x128xf32, #tpu.memory_space<vmem>>, vector<2x128xf32>,
    return
  }
  func.func @transform_0(%arg0: i32) -> (i32, i32, i32) {
    %c0_i32 = arith.constant 0 : i32
    %c0_i32_0 = arith.constant 0 : i32
    %c0_i32_1 = arith.constant 0 : i32
    return %arg0, %c0_i32, %c0_i32_0 : i32, i32, i32
  }
  func.func @transform_1(%arg0: i32) -> (i32, i32) {
    %c0_i32 = arith.constant 0 : i32
    %c0_i32_0 = arith.constant 0 : i32
    %c0_i32_1 = arith.constant 0 : i32
    return %c0_i32, %c0_i32_0 : i32, i32
  }
  func.func @transform_2(%arg0: i32) -> (i32, i32) {
    %c0_i32 = arith.constant 0 : i32
    %c0_i32_0 = arith.constant 0 : i32
    %c0_i32_1 = arith.constant 0 : i32
    return %c0_i32, %c0_i32_0 : i32, i32
  }
  func.func @transform_3(%arg0: i32) -> (i32, i32) {
    %c0_i32 = arith.constant 0 : i32
    %c0_i32_0 = arith.constant 0 : i32
    %c0_i32_1 = arith.constant 0 : i32
    return %c0_i32, %c0_i32_0 : i32, i32
  }
  func.func @transform_4(%arg0: i32) -> (i32, i32) {
    %c0_i32 = arith.constant 0 : i32
    %c0_i32_0 = arith.constant 0 : i32
    %c0_i32_1 = arith.constant 0 : i32
    return %c0_i32, %c0_i32_0 : i32, i32
  }
  func.func @transform_5(%arg0: i32) -> (i32, i32) {
    %c0_i32 = arith.constant 0 : i32
    %c0_i32_0 = arith.constant 0 : i32
    %c0_i32_1 = arith.constant 0 : i32
    return %c0_i32, %c0_i32_0 : i32, i32
  }
  func.func @transform_6(%arg0: i32) -> (i32, i32) {
    %c0_i32 = arith.constant 0 : i32
    %c0_i32_0 = arith.constant 0 : i32
    %c0_i32_1 = arith.constant 0 : i32
    return %c0_i32, %c0_i32_0 : i32, i32
  }
  func.func @transform_7(%arg0: i32) -> (i32, i32) {
    %c0_i32 = arith.constant 0 : i32
    %c0_i32_0 = arith.constant 0 : i32
    %c0_i32_1 = arith.constant 0 : i32
    return %c0_i32, %c0_i32_0 : i32, i32
  }
  func.func @transform_8(%arg0: i32) -> (i32, i32) {
    %c0_i32 = arith.constant 0 : i32
    %c0_i32_0 = arith.constant 0 : i32
    %c0_i32_1 = arith.constant 0 : i32
    return %c0_i32, %c0_i32_0 : i32, i32
  }
  func.func @transform_9(%arg0: i32) -> (i32, i32) {
    %c0_i32 = arith.constant 0 : i32
    %c0_i32_0 = arith.constant 0 : i32
    %c0_i32_1 = arith.constant 0 : i32
    return %c0_i32, %c0_i32_0 : i32, i32
  }
  func.func @transform_10(%arg0: i32) -> (i32, i32) {
    %c0_i32 = arith.constant 0 : i32
    %c0_i32_0 = arith.constant 0 : i32
    %c0_i32_1 = arith.constant 0 : i32
    return %c0_i32, %c0_i32_0 : i32, i32
  }
  func.func @transform_11(%arg0: i32) -> (i32, i32) {
    %c0_i32 = arith.constant 0 : i32
    %c0_i32_0 = arith.constant 0 : i32
    %c0_i32_1 = arith.constant 0 : i32
    return %c0_i32, %c0_i32_0 : i32, i32
  }
  func.func @transform_12(%arg0: i32) -> (i32, i32) {
    %c0_i32 = arith.constant 0 : i32
    %c0_i32_0 = arith.constant 0 : i32
    %c0_i32_1 = arith.constant 0 : i32
    return %c0_i32, %c0_i32_0 : i32, i32
  }
  func.func @transform_13(%arg0: i32) -> (i32, i32) {
    %c0_i32 = arith.constant 0 : i32
    %c0_i32_0 = arith.constant 0 : i32
    return %arg0, %c0_i32 : i32, i32
  }
}

</mosaic_0001>

<llo_original>
// kernel: fmnist_cnn_forward.1
$region0: #{fmnist_cnn_forward.1}
  #allocation0 [shape = 'u32[]', space=smem, size = 0x4, offset = 0x4, fixed_abs, tag = 'smem constant byte address 0x4 - core index']
  #allocation1 [shape = 'u32[144,128]{1,0:T(1,128)}', space=vmem, size = 0x12000, scoped, tag = 'internal scratch']
  %s0 = inlined_call_operand.vmem [shape: f32[2,28,32], index: 0, kind: input, shape index: {}]
  %s1 = inlined_call_operand.hbm [shape: f32[160,768], index: 1, kind: input, shape index: {}]
  %s2 = inlined_call_operand.hbm [shape: f32[1,768], index: 2, kind: input, shape index: {}]
  %s3 = inlined_call_operand.hbm [shape: f32[1,768], index: 3, kind: input, shape index: {}]
  %s4 = inlined_call_operand.hbm [shape: f32[1,768], index: 4, kind: input, shape index: {}]
  %s5 = inlined_call_operand.hbm [shape: f32[1,768], index: 5, kind: input, shape index: {}]
  %s6 = inlined_call_operand.hbm [shape: f32[1920,256], index: 6, kind: input, shape index: {}]
  %s7 = inlined_call_operand.hbm [shape: f32[1,256], index: 7, kind: input, shape index: {}]
  %s8 = inlined_call_operand.hbm [shape: f32[1,256], index: 8, kind: input, shape index: {}]
  %s9 = inlined_call_operand.hbm [shape: f32[1,256], index: 9, kind: input, shape index: {}]
  %s10 = inlined_call_operand.hbm [shape: f32[1,256], index: 10, kind: input, shape index: {}]
  %s11 = inlined_call_operand.hbm [shape: f32[512,128], index: 11, kind: input, shape index: {}]
  %s12 = inlined_call_operand.hbm [shape: f32[1,128], index: 12, kind: input, shape index: {}]
  %s13 = inlined_call_operand.hbm [shape: f32[2,128], index: 13, kind: output, shape index: {}]
  %s14 = sld [smem:[#allocation0]]
  $region110: #{fmnist_cnn_forward.1} parent=0
    _
  %s16 = ssub.s32 1, %s14
  %s17 = scalar_select 0, %s16, %s14
  $region1: #{fmnist_cnn_forward.1} parent=0
    #allocation2 [shape = 'u8[491520]{0}', space=vmem, size = 0x78000, scoped, tag = 'input window, operand 1, single buffered']
    #allocation3 [shape = 's32[1]{0}', space=sflag, size = 0x4, scoped, tag = 'scoped memory for fmnist_cnn_forward.1']
    #allocation4 [shape = 's32[1]{0}', space=sflag, size = 0x4, scoped, tag = 'scoped memory for fmnist_cnn_forward.1']
    #allocation5 [shape = 'u8[3072]{0}', space=vmem, size = 0xc00, scoped, tag = 'input window, operand 2, single buffered']
    #allocation6 [shape = 's32[1]{0}', space=sflag, size = 0x4, scoped, tag = 'scoped memory for fmnist_cnn_forward.1']
    #allocation7 [shape = 'u8[3072]{0}', space=vmem, size = 0xc00, scoped, tag = 'input window, operand 3, single buffered']
    #allocation8 [shape = 'u8[3072]{0}', space=vmem, size = 0xc00, scoped, tag = 'input window, operand 4, single buffered']
    #allocation9 [shape = 's32[1]{0}', space=sflag, size = 0x4, scoped, tag = 'scoped memory for fmnist_cnn_forward.1']
    #allocation10 [shape = 'u8[3072]{0}', space=vmem, size = 0xc00, scoped, tag = 'input window, operand 5, single buffered']
    #allocation11 [shape = 'u8[1966080]{0}', space=vmem, size = 0x1e0000, scoped, tag = 'input window, operand 6, single buffered']
    #allocation12 [shape = 's32[1]{0}', space=sflag, size = 0x4, scoped, tag = 'scoped memory for fmnist_cnn_forward.1']
    #allocation13 [shape = 'u8[1024]{0}', space=vmem, size = 0x400, scoped, tag = 'input window, operand 7, single buffered']
    #allocation14 [shape = 'u8[1024]{0}', space=vmem, size = 0x400, scoped, tag = 'input window, operand 8, single buffered']
    #allocation15 [shape = 's32[1]{0}', space=sflag, size = 0x4, scoped, tag = 'scoped memory for fmnist_cnn_forward.1']
    #allocation16 [shape = 'u8[1024]{0}', space=vmem, size = 0x400, scoped, tag = 'input window, operand 9, single buffered']
    #allocation17 [shape = 'u8[1024]{0}', space=vmem, size = 0x400, scoped, tag = 'input window, operand 10, single buffered']
    #allocation18 [shape = 's32[1]{0}', space=sflag, size = 0x4, scoped, tag = 'scoped memory for fmnist_cnn_forward.1']
    #allocation19 [shape = 'u8[262144]{0}', space=vmem, size = 0x40000, scoped, tag = 'input window, operand 11, single buffered']
    #allocation20 [shape = 'u8[512]{0}', space=vmem, size = 0x400, scoped, tag = 'input window, operand 12, single buffered']
    #allocation21 [shape = 's32[1]{0}', space=sflag, size = 0x4, scoped, tag = 'scoped memory for fmnist_cnn_forward.1']
    #allocation22 [shape = 'u8[1024]{0}', space=vmem, size = 0x400, scoped, tag = 'output window, operand 0, single buffered']
    %18 = vsyncpa [#allocation3], 0
    %19 = vsyncpa [#allocation6], 0
    %20 = vsyncpa [#allocation9], 0
    %21 = vsyncpa [#allocation12], 0
    %22 = vsyncpa [#allocation15], 0
    %23 = vsyncpa [#allocation18], 0
    %24 = vsyncpa [#allocation21], 0
    %25 = vsyncpa [#allocation4], 0
    // Predicated region
    $region2: #{fmnist_cnn_forward.1} parent=1 // pred_check
      _
    $region3: #{fmnist_cnn_forward.1} parent=1 // pred_check_branch
      %27 = sbr.rel (0) target = $region5
    $region4: #{fmnist_cnn_forward.1} parent=1 // pred_region
      _
    $region5: #{fmnist_cnn_forward.1} parent=1 // pred_fallthru
      _
    // Predicated region
    $region6: #{fmnist_cnn_forward.1} parent=1 // pred_check
      _
    $region7: #{fmnist_cnn_forward.1} parent=1 // pred_check_branch
      %29 = sbr.rel (0) target = $region9
    $region8: #{fmnist_cnn_forward.1} parent=1 // pred_region
      %s31 = ssub.s32 15360, 15360
      %32 = vsyncadd [#allocation3], %s31
      %s33 = sshll.u32 [#allocation2], 4
      %s34 = int_to_ptr.vmem [resolvable:$true] %s33
      %39 = dma.hbm_to_vmem [thread:$0]  %s1, 15360, %s34, [#allocation3], 768, 768, 48
    $region9: #{fmnist_cnn_forward.1} parent=1 // pred_fallthru
      _
    // Predicated region
    $region10: #{fmnist_cnn_forward.1} parent=1 // pred_check
      _
    $region11: #{fmnist_cnn_forward.1} parent=1 // pred_check_branch
      %41 = sbr.rel (0) target = $region13
    $region12: #{fmnist_cnn_forward.1} parent=1 // pred_region
      %s43 = ssub.s32 96, 96
      %44 = vsyncadd [#allocation6], %s43
      %s46 = sshll.u32 [#allocation5], 4
      %s47 = int_to_ptr.vmem [resolvable:$true] %s46
      %49 = dma.hbm_to_vmem [thread:$0]  %s2, 96, %s47, [#allocation6]
    $region13: #{fmnist_cnn_forward.1} parent=1 // pred_fallthru
      _
    // Predicated region
    $region14: #{fmnist_cnn_forward.1} parent=1 // pred_check
      _
    $region15: #{fmnist_cnn_forward.1} parent=1 // pred_check_branch
      %51 = sbr.rel (0) target = $region17
    $region16: #{fmnist_cnn_forward.1} parent=1 // pred_region
      %s53 = ssub.s32 96, 96
      %54 = vsyncadd [#allocation6], %s53
      %s56 = sshll.u32 [#allocation7], 4
      %s57 = int_to_ptr.vmem [resolvable:$true] %s56
      %59 = dma.hbm_to_vmem [thread:$0]  %s3, 96, %s57, [#allocation6]
    $region17: #{fmnist_cnn_forward.1} parent=1 // pred_fallthru
      _
    // Predicated region
    $region18: #{fmnist_cnn_forward.1} parent=1 // pred_check
      _
    $region19: #{fmnist_cnn_forward.1} parent=1 // pred_check_branch
      %61 = sbr.rel (0) target = $region21
    $region20: #{fmnist_cnn_forward.1} parent=1 // pred_region
      %s63 = ssub.s32 96, 96
      %64 = vsyncadd [#allocation9], %s63
      %s66 = sshll.u32 [#allocation8], 4
      %s67 = int_to_ptr.vmem [resolvable:$true] %s66
      %69 = dma.hbm_to_vmem [thread:$0]  %s4, 96, %s67, [#allocation9]
    $region21: #{fmnist_cnn_forward.1} parent=1 // pred_fallthru
      _
    // Predicated region
    $region22: #{fmnist_cnn_forward.1} parent=1 // pred_check
      _
    $region23: #{fmnist_cnn_forward.1} parent=1 // pred_check_branch
      %71 = sbr.rel (0) target = $region25
    $region24: #{fmnist_cnn_forward.1} parent=1 // pred_region
      %s73 = ssub.s32 96, 96
      %74 = vsyncadd [#allocation9], %s73
      %s76 = sshll.u32 [#allocation10], 4
      %s77 = int_to_ptr.vmem [resolvable:$true] %s76
      %79 = dma.hbm_to_vmem [thread:$0]  %s5, 96, %s77, [#allocation9]
    $region25: #{fmnist_cnn_forward.1} parent=1 // pred_fallthru
      _
    // Predicated region
    $region26: #{fmnist_cnn_forward.1} parent=1 // pred_check
      _
    $region27: #{fmnist_cnn_forward.1} parent=1 // pred_check_branch
      %81 = sbr.rel (0) target = $region29
    $region28: #{fmnist_cnn_forward.1} parent=1 // pred_region
      %s83 = ssub.s32 61440, 61440
      %84 = vsyncadd [#allocation12], %s83
      %s85 = sshll.u32 [#allocation11], 4
      %s86 = int_to_ptr.vmem [resolvable:$true] %s85
      %91 = dma.hbm_to_vmem [thread:$0]  %s6, 61440, %s86, [#allocation12], 256, 256, 16
    $region29: #{fmnist_cnn_forward.1} parent=1 // pred_fallthru
      _
    // Predicated region
    $region30: #{fmnist_cnn_forward.1} parent=1 // pred_check
      _
    $region31: #{fmnist_cnn_forward.1} parent=1 // pred_check_branch
      %93 = sbr.rel (0) target = $region33
    $region32: #{fmnist_cnn_forward.1} parent=1 // pred_region
      %s95 = ssub.s32 32, 32
      %96 = vsyncadd [#allocation12], %s95
      %s98 = sshll.u32 [#allocation13], 4
      %s99 = int_to_ptr.vmem [resolvable:$true] %s98
      %101 = dma.hbm_to_vmem [thread:$0]  %s7, 32, %s99, [#allocation12]
    $region33: #{fmnist_cnn_forward.1} parent=1 // pred_fallthru
      _
    // Predicated region
    $region34: #{fmnist_cnn_forward.1} parent=1 // pred_check
      _
    $region35: #{fmnist_cnn_forward.1} parent=1 // pred_check_branch
      %103 = sbr.rel (0) target = $region37
    $region36: #{fmnist_cnn_forward.1} parent=1 // pred_region
      %s105 = ssub.s32 32, 32
      %106 = vsyncadd [#allocation15], %s105
      %s108 = sshll.u32 [#allocation14], 4
      %s109 = int_to_ptr.vmem [resolvable:$true] %s108
      %111 = dma.hbm_to_vmem [thread:$0]  %s8, 32, %s109, [#allocation15]
    $region37: #{fmnist_cnn_forward.1} parent=1 // pred_fallthru
      _
    // Predicated region
    $region38: #{fmnist_cnn_forward.1} parent=1 // pred_check
      _
    $region39: #{fmnist_cnn_forward.1} parent=1 // pred_check_branch
      %113 = sbr.rel (0) target = $region41
    $region40: #{fmnist_cnn_forward.1} parent=1 // pred_region
      %s115 = ssub.s32 32, 32
      %116 = vsyncadd [#allocation15], %s115
      %s118 = sshll.u32 [#allocation16], 4
      %s119 = int_to_ptr.vmem [resolvable:$true] %s118
      %121 = dma.hbm_to_vmem [thread:$0]  %s9, 32, %s119, [#allocation15]
    $region41: #{fmnist_cnn_forward.1} parent=1 // pred_fallthru
      _
    // Predicated region
    $region42: #{fmnist_cnn_forward.1} parent=1 // pred_check
      _
    $region43: #{fmnist_cnn_forward.1} parent=1 // pred_check_branch
      %123 = sbr.rel (0) target = $region45
    $region44: #{fmnist_cnn_forward.1} parent=1 // pred_region
      %s125 = ssub.s32 32, 32
      %126 = vsyncadd [#allocation18], %s125
      %s128 = sshll.u32 [#allocation17], 4
      %s129 = int_to_ptr.vmem [resolvable:$true] %s128
      %131 = dma.hbm_to_vmem [thread:$0]  %s10, 32, %s129, [#allocation18]
    $region45: #{fmnist_cnn_forward.1} parent=1 // pred_fallthru
      _
    // Predicated region
    $region46: #{fmnist_cnn_forward.1} parent=1 // pred_check
      _
    $region47: #{fmnist_cnn_forward.1} parent=1 // pred_check_branch
      %133 = sbr.rel (0) target = $region49
    $region48: #{fmnist_cnn_forward.1} parent=1 // pred_region
      %s135 = ssub.s32 8192, 8192
      %136 = vsyncadd [#allocation18], %s135
      %s137 = sshll.u32 [#allocation19], 4
      %s138 = int_to_ptr.vmem [resolvable:$true] %s137
      %143 = dma.hbm_to_vmem [thread:$0]  %s11, 8192, %s138, [#allocation18], 128, 128, 8
    $region49: #{fmnist_cnn_forward.1} parent=1 // pred_fallthru
      _
    // Predicated region
    $region50: #{fmnist_cnn_forward.1} parent=1 // pred_check
      _
    $region51: #{fmnist_cnn_forward.1} parent=1 // pred_check_branch
      %145 = sbr.rel (0) target = $region53
    $region52: #{fmnist_cnn_forward.1} parent=1 // pred_region
      %s147 = ssub.s32 16, 16
      %148 = vsyncadd [#allocation21], %s147
      %s150 = sshll.u32 [#allocation20], 4
      %s151 = int_to_ptr.vmem [resolvable:$true] %s150
      %153 = dma.hbm_to_vmem [thread:$0]  %s12, 16, %s151, [#allocation21]
    $region53: #{fmnist_cnn_forward.1} parent=1 // pred_fallthru
      _
    // Predicated region
    $region54: #{fmnist_cnn_forward.1} parent=1 // pred_check
      _
    $region55: #{fmnist_cnn_forward.1} parent=1 // pred_check_branch
      %155 = sbr.rel (0) target = $region57
    $region56: #{fmnist_cnn_forward.1} parent=1 // pred_region
      %156 = dma.done [#allocation3], 15360
    $region57: #{fmnist_cnn_forward.1} parent=1 // pred_fallthru
      _
    // Predicated region
    $region58: #{fmnist_cnn_forward.1} parent=1 // pred_check
      _
    $region59: #{fmnist_cnn_forward.1} parent=1 // pred_check_branch
      %158 = sbr.rel (0) target = $region61
    $region60: #{fmnist_cnn_forward.1} parent=1 // pred_region
      %159 = dma.done [#allocation6], 96
    $region61: #{fmnist_cnn_forward.1} parent=1 // pred_fallthru
      _
    // Predicated region
    $region62: #{fmnist_cnn_forward.1} parent=1 // pred_check
      _
    $region63: #{fmnist_cnn_forward.1} parent=1 // pred_check_branch
      %161 = sbr.rel (0) target = $region65
    $region64: #{fmnist_cnn_forward.1} parent=1 // pred_region
      %162 = dma.done [#allocation6], 96
    $region65: #{fmnist_cnn_forward.1} parent=1 // pred_fallthru
      _
    // Predicated region
    $region66: #{fmnist_cnn_forward.1} parent=1 // pred_check
      _
    $region67: #{fmnist_cnn_forward.1} parent=1 // pred_check_branch
      %164 = sbr.rel (0) target = $region69
    $region68: #{fmnist_cnn_forward.1} parent=1 // pred_region
      %165 = dma.done [#allocation9], 96
    $region69: #{fmnist_cnn_forward.1} parent=1 // pred_fallthru
      _
    // Predicated region
    $region70: #{fmnist_cnn_forward.1} parent=1 // pred_check
      _
    $region71: #{fmnist_cnn_forward.1} parent=1 // pred_check_branch
      %167 = sbr.rel (0) target = $region73
    $region72: #{fmnist_cnn_forward.1} parent=1 // pred_region
      %168 = dma.done [#allocation9], 96
    $region73: #{fmnist_cnn_forward.1} parent=1 // pred_fallthru
      _
    // Predicated region
    $region74: #{fmnist_cnn_forward.1} parent=1 // pred_check
      _
    $region75: #{fmnist_cnn_forward.1} parent=1 // pred_check_branch
      %170 = sbr.rel (0) target = $region77
    $region76: #{fmnist_cnn_forward.1} parent=1 // pred_region
      %171 = dma.done [#allocation12], 61440
    $region77: #{fmnist_cnn_forward.1} parent=1 // pred_fallthru
      _
    // Predicated region
    $region78: #{fmnist_cnn_forward.1} parent=1 // pred_check
      _
    $region79: #{fmnist_cnn_forward.1} parent=1 // pred_check_branch
      %173 = sbr.rel (0) target = $region81
    $region80: #{fmnist_cnn_forward.1} parent=1 // pred_region
      %174 = dma.done [#allocation12], 32
    $region81: #{fmnist_cnn_forward.1} parent=1 // pred_fallthru
      _
    // Predicated region
    $region82: #{fmnist_cnn_forward.1} parent=1 // pred_check
      _
    $region83: #{fmnist_cnn_forward.1} parent=1 // pred_check_branch
      %176 = sbr.rel (0) target = $region85
    $region84: #{fmnist_cnn_forward.1} parent=1 // pred_region
      %177 = dma.done [#allocation15], 32
    $region85: #{fmnist_cnn_forward.1} parent=1 // pred_fallthru
      _
    // Predicated region
    $region86: #{fmnist_cnn_forward.1} parent=1 // pred_check
      _
    $region87: #{fmnist_cnn_forward.1} parent=1 // pred_check_branch
      %179 = sbr.rel (0) target = $region89
    $region88: #{fmnist_cnn_forward.1} parent=1 // pred_region
      %180 = dma.done [#allocation15], 32
    $region89: #{fmnist_cnn_forward.1} parent=1 // pred_fallthru
      _
    // Predicated region
    $region90: #{fmnist_cnn_forward.1} parent=1 // pred_check
      _
    $region91: #{fmnist_cnn_forward.1} parent=1 // pred_check_branch
      %182 = sbr.rel (0) target = $region93
    $region92: #{fmnist_cnn_forward.1} parent=1 // pred_region
      %183 = dma.done [#allocation18], 32
    $region93: #{fmnist_cnn_forward.1} parent=1 // pred_fallthru
      _
    // Predicated region
    $region94: #{fmnist_cnn_forward.1} parent=1 // pred_check
      _
    $region95: #{fmnist_cnn_forward.1} parent=1 // pred_check_branch
      %185 = sbr.rel (0) target = $region97
    $region96: #{fmnist_cnn_forward.1} parent=1 // pred_region
      %186 = dma.done [#allocation18], 8192
    $region97: #{fmnist_cnn_forward.1} parent=1 // pred_fallthru
      _
    // Predicated region
    $region98: #{fmnist_cnn_forward.1} parent=1 // pred_check
      _
    $region99: #{fmnist_cnn_forward.1} parent=1 // pred_check_branch
      %188 = sbr.rel (0) target = $region101
    $region100: #{fmnist_cnn_forward.1} parent=1 // pred_region
      %189 = dma.done [#allocation21], 16
    $region101: #{fmnist_cnn_forward.1} parent=1 // pred_fallthru
      _
    %v190 = vld [vmem:[%s0] sm:$0xff]
    %v191 = vld [vmem:[%s0 + $0x8] sm:$0xff]
    %v192 = vld [vmem:[%s0 + $0x10] sm:$0xff]
    %v193 = vld [vmem:[%s0 + $0x18] sm:$0xf]
    %v194 = vld [vmem:[%s0 + $0x20] sm:$0xff]
    %v195 = vld [vmem:[%s0 + $0x28] sm:$0xff]
    %v196 = vld [vmem:[%s0 + $0x30] sm:$0xff]
    %v197 = vld [vmem:[%s0 + $0x38] sm:$0xf]
    %vm206 = vcmask 1046528
    %v207 = vrot.slane %v190, 1
    %v208 = vrot.slane %v191, 1
    %v209 = vsel %vm206, %v207, %v208
    %v210 = vrot.slane %v192, 1
    %v211 = vsel %vm206, %v208, %v210
    %v212 = vrot.slane %v193, 1
    %v213 = vsel %vm206, %v210, %v212
    %v214 = vrot.slane %v194, 1
    %v215 = vrot.slane %v195, 1
    %v216 = vsel %vm206, %v214, %v215
    %v217 = vrot.slane %v196, 1
    %v218 = vsel %vm206, %v215, %v217
    %v219 = vrot.slane %v197, 1
    %v220 = vsel %vm206, %v217, %v219
    %221 = vrot.lane.b32.xlu0 %v209, 32
    %v222 = vpop.permute.xlu0 %221
    %223 = vrot.lane.b32.xlu0 %v211, 32
    %v224 = vpop.permute.xlu0 %223
    %225 = vrot.lane.b32.xlu0 %v213, 32
    %v226 = vpop.permute.xlu0 %225
    %227 = vrot.lane.b32.xlu0 %v216, 32
    %v228 = vpop.permute.xlu0 %227
    %229 = vrot.lane.b32.xlu0 %v218, 32
    %v230 = vpop.permute.xlu0 %229
    %231 = vrot.lane.b32.xlu0 %v220, 32
    %v232 = vpop.permute.xlu0 %231
    %vm239 = vcmask 1045504
    %v240 = vrot.slane %v190, 2
    %v241 = vrot.slane %v191, 2
    %v242 = vsel %vm239, %v240, %v241
    %v243 = vrot.slane %v192, 2
    %v244 = vsel %vm239, %v241, %v243
    %v245 = vrot.slane %v193, 2
    %v246 = vsel %vm239, %v243, %v245
    %v247 = vrot.slane %v194, 2
    %v248 = vrot.slane %v195, 2
    %v249 = vsel %vm239, %v247, %v248
    %v250 = vrot.slane %v196, 2
    %v251 = vsel %vm239, %v248, %v250
    %v252 = vrot.slane %v197, 2
    %v253 = vsel %vm239, %v250, %v252
    %254 = vrot.lane.b32.xlu0 %v242, 64
    %v255 = vpop.permute.xlu0 %254
    %256 = vrot.lane.b32.xlu0 %v244, 64
    %v257 = vpop.permute.xlu0 %256
    %258 = vrot.lane.b32.xlu0 %v246, 64
    %v259 = vpop.permute.xlu0 %258
    %260 = vrot.lane.b32.xlu0 %v249, 64
    %v261 = vpop.permute.xlu0 %260
    %262 = vrot.lane.b32.xlu0 %v251, 64
    %v263 = vpop.permute.xlu0 %262
    %264 = vrot.lane.b32.xlu0 %v253, 64
    %v265 = vpop.permute.xlu0 %264
    %vm272 = vcmask 1044480
    %v273 = vrot.slane %v190, 3
    %v274 = vrot.slane %v191, 3
    %v275 = vsel %vm272, %v273, %v274
    %v276 = vrot.slane %v192, 3
    %v277 = vsel %vm272, %v274, %v276
    %v278 = vrot.slane %v193, 3
    %v279 = vsel %vm272, %v276, %v278
    %v280 = vrot.slane %v194, 3
    %v281 = vrot.slane %v195, 3
    %v282 = vsel %vm272, %v280, %v281
    %v283 = vrot.slane %v196, 3
    %v284 = vsel %vm272, %v281, %v283
    %v285 = vrot.slane %v197, 3
    %v286 = vsel %vm272, %v283, %v285
    %287 = vrot.lane.b32.xlu0 %v275, 96
    %v288 = vpop.permute.xlu0 %287
    %289 = vrot.lane.b32.xlu0 %v277, 96
    %v290 = vpop.permute.xlu0 %289
    %291 = vrot.lane.b32.xlu0 %v279, 96
    %v292 = vpop.permute.xlu0 %291
    %293 = vrot.lane.b32.xlu0 %v282, 96
    %v294 = vpop.permute.xlu0 %293
    %295 = vrot.lane.b32.xlu0 %v284, 96
    %v296 = vpop.permute.xlu0 %295
    %297 = vrot.lane.b32.xlu0 %v286, 96
    %v298 = vpop.permute.xlu0 %297
    %vm305 = vcmask 1043456
    %v306 = vrot.slane %v190, 4
    %v307 = vrot.slane %v191, 4
    %v308 = vsel %vm305, %v306, %v307
    %v309 = vrot.slane %v192, 4
    %v310 = vsel %vm305, %v307, %v309
    %v311 = vrot.slane %v193, 4
    %v312 = vsel %vm305, %v309, %v311
    %v313 = vrot.slane %v194, 4
    %v314 = vrot.slane %v195, 4
    %v315 = vsel %vm305, %v313, %v314
    %v316 = vrot.slane %v196, 4
    %v317 = vsel %vm305, %v314, %v316
    %v318 = vrot.slane %v197, 4
    %v319 = vsel %vm305, %v316, %v318
    %vm320 = vcmask 261120
    %v321 = vsel %vm320, %v190, %v222
    %v322 = vsel %vm320, %v191, %v224
    %v323 = vsel %vm320, %v192, %v226
    %v324 = vsel %vm320, %v194, %v228
    %v325 = vsel %vm320, %v195, %v230
    %v326 = vsel %vm320, %v196, %v232
    %vm327 = vcmask 523264
    %v328 = vsel %vm327, %v321, %v255
    %v329 = vsel %vm327, %v322, %v257
    %v330 = vsel %vm327, %v323, %v259
    %v331 = vsel %vm327, %v324, %v261
    %v332 = vsel %vm327, %v325, %v263
    %v333 = vsel %vm327, %v326, %v265
    %vm334 = vcmask 785408
    %v335 = vsel %vm334, %v328, %v288
    %v336 = vsel %vm334, %v329, %v290
    %v337 = vsel %vm334, %v330, %v292
    %v338 = vsel %vm334, %v331, %v294
    %v339 = vsel %vm334, %v332, %v296
    %v340 = vsel %vm334, %v333, %v298
    %v341 = vld [vmem:[#allocation2] sm:$0xff]
    %v342 = vld [vmem:[#allocation2 + $0x8] sm:$0xff]
    %v343 = vld [vmem:[#allocation2 + $0x10] sm:$0xff]
    %v344 = vld [vmem:[#allocation2 + $0x18] sm:$0xff]
    %v345 = vld [vmem:[#allocation2 + $0x20] sm:$0xff]
    %v346 = vld [vmem:[#allocation2 + $0x28] sm:$0xff]
    %v347 = vld [vmem:[#allocation2 + $0x30] sm:$0xff]
    %v348 = vld [vmem:[#allocation2 + $0x38] sm:$0xff]
    %v349 = vld [vmem:[#allocation2 + $0x40] sm:$0xff]
    %v350 = vld [vmem:[#allocation2 + $0x48] sm:$0xff]
    %v351 = vld [vmem:[#allocation2 + $0x50] sm:$0xff]
    %v352 = vld [vmem:[#allocation2 + $0x58] sm:$0xff]
    %v353 = vld [vmem:[#allocation2 + $0x60] sm:$0xff]
    %v354 = vld [vmem:[#allocation2 + $0x68] sm:$0xff]
    %v355 = vld [vmem:[#allocation2 + $0x70] sm:$0xff]
    %v356 = vld [vmem:[#allocation2 + $0x78] sm:$0xff]
    %v357 = vld [vmem:[#allocation2 + $0x80] sm:$0xff]
    %v358 = vld [vmem:[#allocation2 + $0x88] sm:$0xff]
    %v359 = vld [vmem:[#allocation2 + $0x90] sm:$0xff]
    %v360 = vld [vmem:[#allocation2 + $0x98] sm:$0xff]
    %v361 = vld [vmem:[#allocation2 + $0xa0] sm:$0xff]
    %v362 = vld [vmem:[#allocation2 + $0xa8] sm:$0xff]
    %v363 = vld [vmem:[#allocation2 + $0xb0] sm:$0xff]
    %v364 = vld [vmem:[#allocation2 + $0xb8] sm:$0xff]
    %v365 = vld [vmem:[#allocation2 + $0xc0] sm:$0xff]
    %v366 = vld [vmem:[#allocation2 + $0xc8] sm:$0xff]
    %v367 = vld [vmem:[#allocation2 + $0xd0] sm:$0xff]
    %v368 = vld [vmem:[#allocation2 + $0xd8] sm:$0xff]
    %v369 = vld [vmem:[#allocation2 + $0xe0] sm:$0xff]
    %v370 = vld [vmem:[#allocation2 + $0xe8] sm:$0xff]
    %v371 = vld [vmem:[#allocation2 + $0xf0] sm:$0xff]
    %v372 = vld [vmem:[#allocation2 + $0xf8] sm:$0xff]
    %v373 = vld [vmem:[#allocation2 + $0x100] sm:$0xff]
    %v374 = vld [vmem:[#allocation2 + $0x108] sm:$0xff]
    %v375 = vld [vmem:[#allocation2 + $0x110] sm:$0xff]
    %v376 = vld [vmem:[#allocation2 + $0x118] sm:$0xff]
    %v377 = vld [vmem:[#allocation2 + $0x120] sm:$0xff]
    %v378 = vld [vmem:[#allocation2 + $0x128] sm:$0xff]
    %v379 = vld [vmem:[#allocation2 + $0x130] sm:$0xff]
    %v380 = vld [vmem:[#allocation2 + $0x138] sm:$0xff]
    %v381 = vld [vmem:[#allocation2 + $0x140] sm:$0xff]
    %v382 = vld [vmem:[#allocation2 + $0x148] sm:$0xff]
    %v383 = vld [vmem:[#allocation2 + $0x150] sm:$0xff]
    %v384 = vld [vmem:[#allocation2 + $0x158] sm:$0xff]
    %v385 = vld [vmem:[#allocation2 + $0x160] sm:$0xff]
    %v386 = vld [vmem:[#allocation2 + $0x168] sm:$0xff]
    %v387 = vld [vmem:[#allocation2 + $0x170] sm:$0xff]
    %v388 = vld [vmem:[#allocation2 + $0x178] sm:$0xff]
    %v389 = vld [vmem:[#allocation2 + $0x180] sm:$0xff]
    %v390 = vld [vmem:[#allocation2 + $0x188] sm:$0xff]
    %v391 = vld [vmem:[#allocation2 + $0x190] sm:$0xff]
    %v392 = vld [vmem:[#allocation2 + $0x198] sm:$0xff]
    %v393 = vld [vmem:[#allocation2 + $0x1a0] sm:$0xff]
    %v394 = vld [vmem:[#allocation2 + $0x1a8] sm:$0xff]
    %v395 = vld [vmem:[#allocation2 + $0x1b0] sm:$0xff]
    %v396 = vld [vmem:[#allocation2 + $0x1b8] sm:$0xff]
    %v397 = vld [vmem:[#allocation2 + $0x1c0] sm:$0xff]
    %v398 = vld [vmem:[#allocation2 + $0x1c8] sm:$0xff]
    %v399 = vld [vmem:[#allocation2 + $0x1d0] sm:$0xff]
    %v400 = vld [vmem:[#allocation2 + $0x1d8] sm:$0xff]
    %v401 = vld [vmem:[#allocation2 + $0x1e0] sm:$0xff]
    %v402 = vld [vmem:[#allocation2 + $0x1e8] sm:$0xff]
    %v403 = vld [vmem:[#allocation2 + $0x1f0] sm:$0xff]
    %v404 = vld [vmem:[#allocation2 + $0x1f8] sm:$0xff]
    %v405 = vld [vmem:[#allocation2 + $0x200] sm:$0xff]
    %v406 = vld [vmem:[#allocation2 + $0x208] sm:$0xff]
    %v407 = vld [vmem:[#allocation2 + $0x210] sm:$0xff]
    %v408 = vld [vmem:[#allocation2 + $0x218] sm:$0xff]
    %v409 = vld [vmem:[#allocation2 + $0x220] sm:$0xff]
    %v410 = vld [vmem:[#allocation2 + $0x228] sm:$0xff]
    %v411 = vld [vmem:[#allocation2 + $0x230] sm:$0xff]
    %v412 = vld [vmem:[#allocation2 + $0x238] sm:$0xff]
    %v413 = vld [vmem:[#allocation2 + $0x240] sm:$0xff]
    %v414 = vld [vmem:[#allocation2 + $0x248] sm:$0xff]
    %v415 = vld [vmem:[#allocation2 + $0x250] sm:$0xff]
    %v416 = vld [vmem:[#allocation2 + $0x258] sm:$0xff]
    %v417 = vld [vmem:[#allocation2 + $0x260] sm:$0xff]
    %v418 = vld [vmem:[#allocation2 + $0x268] sm:$0xff]
    %v419 = vld [vmem:[#allocation2 + $0x270] sm:$0xff]
    %v420 = vld [vmem:[#allocation2 + $0x278] sm:$0xff]
    %v421 = vld [vmem:[#allocation2 + $0x280] sm:$0xff]
    %v422 = vld [vmem:[#allocation2 + $0x288] sm:$0xff]
    %v423 = vld [vmem:[#allocation2 + $0x290] sm:$0xff]
    %v424 = vld [vmem:[#allocation2 + $0x298] sm:$0xff]
    %v425 = vld [vmem:[#allocation2 + $0x2a0] sm:$0xff]
    %v426 = vld [vmem:[#allocation2 + $0x2a8] sm:$0xff]
    %v427 = vld [vmem:[#allocation2 + $0x2b0] sm:$0xff]
    %v428 = vld [vmem:[#allocation2 + $0x2b8] sm:$0xff]
    %v429 = vld [vmem:[#allocation2 + $0x2c0] sm:$0xff]
    %v430 = vld [vmem:[#allocation2 + $0x2c8] sm:$0xff]
    %v431 = vld [vmem:[#allocation2 + $0x2d0] sm:$0xff]
    %v432 = vld [vmem:[#allocation2 + $0x2d8] sm:$0xff]
    %v433 = vld [vmem:[#allocation2 + $0x2e0] sm:$0xff]
    %v434 = vld [vmem:[#allocation2 + $0x2e8] sm:$0xff]
    %v435 = vld [vmem:[#allocation2 + $0x2f0] sm:$0xff]
    %v436 = vld [vmem:[#allocation2 + $0x2f8] sm:$0xff]
    %v437 = vld [vmem:[#allocation2 + $0x300] sm:$0xff]
    %v438 = vld [vmem:[#allocation2 + $0x308] sm:$0xff]
    %v439 = vld [vmem:[#allocation2 + $0x310] sm:$0xff]
    %v440 = vld [vmem:[#allocation2 + $0x318] sm:$0xff]
    %v441 = vld [vmem:[#allocation2 + $0x320] sm:$0xff]
    %v442 = vld [vmem:[#allocation2 + $0x328] sm:$0xff]
    %v443 = vld [vmem:[#allocation2 + $0x330] sm:$0xff]
    %v444 = vld [vmem:[#allocation2 + $0x338] sm:$0xff]
    %v445 = vld [vmem:[#allocation2 + $0x340] sm:$0xff]
    %v446 = vld [vmem:[#allocation2 + $0x348] sm:$0xff]
    %v447 = vld [vmem:[#allocation2 + $0x350] sm:$0xff]
    %v448 = vld [vmem:[#allocation2 + $0x358] sm:$0xff]
    %v449 = vld [vmem:[#allocation2 + $0x360] sm:$0xff]
    %v450 = vld [vmem:[#allocation2 + $0x368] sm:$0xff]
    %v451 = vld [vmem:[#allocation2 + $0x370] sm:$0xff]
    %v452 = vld [vmem:[#allocation2 + $0x378] sm:$0xff]
    %v453 = vld [vmem:[#allocation2 + $0x380] sm:$0xff]
    %v454 = vld [vmem:[#allocation2 + $0x388] sm:$0xff]
    %v455 = vld [vmem:[#allocation2 + $0x390] sm:$0xff]
    %v456 = vld [vmem:[#allocation2 + $0x398] sm:$0xff]
    %v457 = vld [vmem:[#allocation2 + $0x3a0] sm:$0xff]
    %v458 = vld [vmem:[#allocation2 + $0x3a8] sm:$0xff]
    %v459 = vld [vmem:[#allocation2 + $0x3b0] sm:$0xff]
    %v460 = vld [vmem:[#allocation2 + $0x3b8] sm:$0xff]
    %v461 = vld [vmem:[#allocation5] sm:$0x3f]
    %v463 = vlaneseq
    %v464 = vshrl.u32 %v463, 7
    %v465 = vsub.s32 0, %v464
    %v466 = vrot.slane %v461, %v465
    %v467 = vlaneseq
    %v468 = vshrl.u32 %v467, 7
    %v469 = vsub.s32 1, %v468
    %v470 = vrot.slane %v461, %v469
    %v471 = vlaneseq
    %v472 = vshrl.u32 %v471, 7
    %v473 = vsub.s32 2, %v472
    %v474 = vrot.slane %v461, %v473
    %v475 = vlaneseq
    %v476 = vshrl.u32 %v475, 7
    %v477 = vsub.s32 3, %v476
    %v478 = vrot.slane %v461, %v477
    %v479 = vlaneseq
    %v480 = vshrl.u32 %v479, 7
    %v481 = vsub.s32 4, %v480
    %v482 = vrot.slane %v461, %v481
    %v483 = vlaneseq
    %v484 = vshrl.u32 %v483, 7
    %v485 = vsub.s32 5, %v484
    %v486 = vrot.slane %v461, %v485
    %v493 = vsel %vm320, %v308, 0
    %v495 = vsel %vm320, %v310, 0
    %v497 = vsel %vm320, %v312, 0
    %v499 = vsel %vm320, %v315, 0
    %v501 = vsel %vm320, %v317, 0
    %v503 = vsel %vm320, %v319, 0
    %505 = vmatprep.subr.mxu0 %v342
    %506 = vmatpush1.msra.mxu0 %v341
    %507 = vmatprep.subr.mxu0 %v348
    %508 = vmatpush1.msra.mxu0 %v347
    %509 = vmatprep.subr.mxu0 %v354
    %510 = vmatpush1.msra.mxu0 %v353
    %511 = vmatprep.subr.mxu0 %v360
    %512 = vmatpush1.msra.mxu0 %v359
    %513 = vmatprep.subr.mxu0 %v366
    %514 = vmatpush1.msra.mxu0 %v365
    %515 = vmatprep.subr.mxu0 %v372
    %516 = vmatpush1.msra.mxu0 %v371
    %517 = vmatprep.subr.mxu0 %v378
    %518 = vmatpush1.msra.mxu0 %v377
    %519 = vmatprep.subr.mxu0 %v384
    %520 = vmatpush1.msra.mxu0 %v383
    %521 = vmatprep.subr.mxu0 %v390
    %522 = vmatpush1.msra.mxu0 %v389
    %523 = vmatprep.subr.mxu0 %v396
    %524 = vmatpush1.msra.mxu0 %v395
    %525 = vmatprep.subr.mxu0 %v402
    %526 = vmatpush1.msra.mxu0 %v401
    %527 = vmatprep.subr.mxu0 %v408
    %528 = vmatpush1.msra.mxu0 %v407
    %529 = vmatprep.subr.mxu0 %v414
    %530 = vmatpush1.msra.mxu0 %v413
    %531 = vmatprep.subr.mxu0 %v420
    %532 = vmatpush1.msra.mxu0 %v419
    %533 = vmatprep.subr.mxu0 %v426
    %534 = vmatpush1.msra.mxu0 %v425
    %535 = vmatprep.subr.mxu0 %v432
    %536 = vmatpush1.msra.mxu0 %v431
    %537 = vmatprep.subr.mxu0 %v438
    %538 = vmatpush1.msra.mxu0 %v437
    %539 = vmatprep.subr.mxu0 %v444
    %540 = vmatpush1.msra.mxu0 %v443
    %541 = vmatprep.subr.mxu0 %v450
    %542 = vmatpush1.msra.mxu0 %v449
    %543 = vmatprep.subr.mxu0 %v456
    %544 = vmatpush1.msra.mxu0 %v455
    %545 = vmatprep.subr.mxu0 0.0
    %546 = vmatpush1.msra.mxu0 0.0
    %547 = vmatprep.subr.mxu0 0.0
    %548 = vmatpush1.msra.mxu0 0.0
    %549 = vmatprep.subr.mxu0 0.0
    %550 = vmatpush1.msra.mxu0 0.0
    %551 = vmatprep.subr.mxu0 0.0
    %552 = vmatpush1.msra.mxu0 0.0
    %553 = vmatprep.subr.mxu0 0.0
    %554 = vmatpush1.msra.mxu0 0.0
    %555 = vmatprep.subr.mxu0 0.0
    %556 = vmatpush1.msra.mxu0 0.0
    %557 = vmatprep.subr.mxu0 0.0
    %558 = vmatpush1.msra.mxu0 0.0
    %559 = vmatprep.subr.mxu0 0.0
    %560 = vmatpush1.msra.mxu0 0.0
    %561 = vmatprep.subr.mxu0 0.0
    %562 = vmatpush1.msra.mxu0 0.0
    %563 = vmatprep.subr.mxu0 0.0
    %564 = vmatpush1.msra.mxu0 0.0
    %565 = vmatprep.subr.mxu0 0.0
    %566 = vmatpush1.msra.mxu0 0.0
    %567 = vmatprep.subr.mxu0 0.0
    %568 = vmatpush1.msra.mxu0 0.0
    %569 = vmatprep.mubr.f32.mxu0 %v493
    %570 = vmatmul.mubr.f32.gmra.mrb[0].mxu0 %v335
    %v571 = vpop.f32.mrb[0].mxu0
    %v572 = vadd.f32 %v466, %v571
    %v573 = vpop.f32.mrb[0].mxu0
    %v574 = vadd.f32 %v470, %v573
    %575 = vmatprep.mubr.f32.mxu0 %v495
    %576 = vmatmul.mubr.f32.gmra.mrb[0].mxu0 %v336
    %v577 = vpop.f32.mrb[0].mxu0
    %v578 = vadd.f32 %v466, %v577
    %v579 = vpop.f32.mrb[0].mxu0
    %v580 = vadd.f32 %v470, %v579
    %581 = vmatprep.mubr.f32.mxu0 %v497
    %582 = vmatmul.mubr.f32.gmra.mrb[0].mxu0 %v337
    %v583 = vpop.f32.mrb[0].mxu0
    %v584 = vadd.f32 %v466, %v583
    %v585 = vpop.f32.mrb[0].mxu0
    %v586 = vadd.f32 %v470, %v585
    %587 = vmatprep.mubr.f32.mxu0 %v499
    %588 = vmatmul.mubr.f32.gmra.mrb[0].mxu0 %v338
    %v589 = vpop.f32.mrb[0].mxu0
    %v590 = vadd.f32 %v466, %v589
    %v591 = vpop.f32.mrb[0].mxu0
    %v592 = vadd.f32 %v470, %v591
    %593 = vmatprep.mubr.f32.mxu0 %v501
    %594 = vmatmul.mubr.f32.gmra.mrb[0].mxu0 %v339
    %v595 = vpop.f32.mrb[0].mxu0
    %v596 = vadd.f32 %v466, %v595
    %v597 = vpop.f32.mrb[0].mxu0
    %v598 = vadd.f32 %v470, %v597
    %599 = vmatprep.mubr.f32.mxu0 %v503
    %600 = vmatmul.mubr.f32.gmra.mrb[0].mxu0 %v340
    %v601 = vpop.f32.mrb[0].mxu0
    %v602 = vadd.f32 %v466, %v601
    %v603 = vpop.f32.mrb[0].mxu0
    %v604 = vadd.f32 %v470, %v603
    %605 = vdwg.mxu0
    %606 = vmatprep.subr.mxu0 %v344
    %607 = vmatpush1.msra.mxu0 %v343
    %608 = vmatprep.subr.mxu0 %v350
    %609 = vmatpush1.msra.mxu0 %v349
    %610 = vmatprep.subr.mxu0 %v356
    %611 = vmatpush1.msra.mxu0 %v355
    %612 = vmatprep.subr.mxu0 %v362
    %613 = vmatpush1.msra.mxu0 %v361
    %614 = vmatprep.subr.mxu0 %v368
    %615 = vmatpush1.msra.mxu0 %v367
    %616 = vmatprep.subr.mxu0 %v374
    %617 = vmatpush1.msra.mxu0 %v373
    %618 = vmatprep.subr.mxu0 %v380
    %619 = vmatpush1.msra.mxu0 %v379
    %620 = vmatprep.subr.mxu0 %v386
    %621 = vmatpush1.msra.mxu0 %v385
    %622 = vmatprep.subr.mxu0 %v392
    %623 = vmatpush1.msra.mxu0 %v391
    %624 = vmatprep.subr.mxu0 %v398
    %625 = vmatpush1.msra.mxu0 %v397
    %626 = vmatprep.subr.mxu0 %v404
    %627 = vmatpush1.msra.mxu0 %v403
    %628 = vmatprep.subr.mxu0 %v410
    %629 = vmatpush1.msra.mxu0 %v409
    %630 = vmatprep.subr.mxu0 %v416
    %631 = vmatpush1.msra.mxu0 %v415
    %632 = vmatprep.subr.mxu0 %v422
    %633 = vmatpush1.msra.mxu0 %v421
    %634 = vmatprep.subr.mxu0 %v428
    %635 = vmatpush1.msra.mxu0 %v427
    %636 = vmatprep.subr.mxu0 %v434
    %637 = vmatpush1.msra.mxu0 %v433
    %638 = vmatprep.subr.mxu0 %v440
    %639 = vmatpush1.msra.mxu0 %v439
    %640 = vmatprep.subr.mxu0 %v446
    %641 = vmatpush1.msra.mxu0 %v445
    %642 = vmatprep.subr.mxu0 %v452
    %643 = vmatpush1.msra.mxu0 %v451
    %644 = vmatprep.subr.mxu0 %v458
    %645 = vmatpush1.msra.mxu0 %v457
    %646 = vmatprep.subr.mxu0 0.0
    %647 = vmatpush1.msra.mxu0 0.0
    %648 = vmatprep.subr.mxu0 0.0
    %649 = vmatpush1.msra.mxu0 0.0
    %650 = vmatprep.subr.mxu0 0.0
    %651 = vmatpush1.msra.mxu0 0.0
    %652 = vmatprep.subr.mxu0 0.0
    %653 = vmatpush1.msra.mxu0 0.0
    %654 = vmatprep.subr.mxu0 0.0
    %655 = vmatpush1.msra.mxu0 0.0
    %656 = vmatprep.subr.mxu0 0.0
    %657 = vmatpush1.msra.mxu0 0.0
    %658 = vmatprep.subr.mxu0 0.0
    %659 = vmatpush1.msra.mxu0 0.0
    %660 = vmatprep.subr.mxu0 0.0
    %661 = vmatpush1.msra.mxu0 0.0
    %662 = vmatprep.subr.mxu0 0.0
    %663 = vmatpush1.msra.mxu0 0.0
    %664 = vmatprep.subr.mxu0 0.0
    %665 = vmatpush1.msra.mxu0 0.0
    %666 = vmatprep.subr.mxu0 0.0
    %667 = vmatpush1.msra.mxu0 0.0
    %668 = vmatprep.subr.mxu0 0.0
    %669 = vmatpush1.msra.mxu0 0.0
    %670 = vmatprep.mubr.f32.mxu0 %v493
    %671 = vmatmul.mubr.f32.gmra.mrb[0].mxu0 %v335
    %v672 = vpop.f32.mrb[0].mxu0
    %v673 = vadd.f32 %v474, %v672
    %v674 = vpop.f32.mrb[0].mxu0
    %v675 = vadd.f32 %v478, %v674
    %676 = vmatprep.mubr.f32.mxu0 %v495
    %677 = vmatmul.mubr.f32.gmra.mrb[0].mxu0 %v336
    %v678 = vpop.f32.mrb[0].mxu0
    %v679 = vadd.f32 %v474, %v678
    %v680 = vpop.f32.mrb[0].mxu0
    %v681 = vadd.f32 %v478, %v680
    %682 = vmatprep.mubr.f32.mxu0 %v497
    %683 = vmatmul.mubr.f32.gmra.mrb[0].mxu0 %v337
    %v684 = vpop.f32.mrb[0].mxu0
    %v685 = vadd.f32 %v474, %v684
    %v686 = vpop.f32.mrb[0].mxu0
    %v687 = vadd.f32 %v478, %v686
    %688 = vmatprep.mubr.f32.mxu0 %v499
    %689 = vmatmul.mubr.f32.gmra.mrb[0].mxu0 %v338
    %v690 = vpop.f32.mrb[0].mxu0
    %v691 = vadd.f32 %v474, %v690
    %v692 = vpop.f32.mrb[0].mxu0
    %v693 = vadd.f32 %v478, %v692
    %694 = vmatprep.mubr.f32.mxu0 %v501
    %695 = vmatmul.mubr.f32.gmra.mrb[0].mxu0 %v339
    %v696 = vpop.f32.mrb[0].mxu0
    %v697 = vadd.f32 %v474, %v696
    %v698 = vpop.f32.mrb[0].mxu0
    %v699 = vadd.f32 %v478, %v698
    %700 = vmatprep.mubr.f32.mxu0 %v503
    %701 = vmatmul.mubr.f32.gmra.mrb[0].mxu0 %v340
    %v702 = vpop.f32.mrb[0].mxu0
    %v703 = vadd.f32 %v474, %v702
    %v704 = vpop.f32.mrb[0].mxu0
    %v705 = vadd.f32 %v478, %v704
    %706 = vdwg.mxu0
    %707 = vmatprep.subr.mxu0 %v346
    %708 = vmatpush1.msra.mxu0 %v345
    %709 = vmatprep.subr.mxu0 %v352
    %710 = vmatpush1.msra.mxu0 %v351
    %711 = vmatprep.subr.mxu0 %v358
    %712 = vmatpush1.msra.mxu0 %v357
    %713 = vmatprep.subr.mxu0 %v364
    %714 = vmatpush1.msra.mxu0 %v363
    %715 = vmatprep.subr.mxu0 %v370
    %716 = vmatpush1.msra.mxu0 %v369
    %717 = vmatprep.subr.mxu0 %v376
    %718 = vmatpush1.msra.mxu0 %v375
    %719 = vmatprep.subr.mxu0 %v382
    %720 = vmatpush1.msra.mxu0 %v381
    %721 = vmatprep.subr.mxu0 %v388
    %722 = vmatpush1.msra.mxu0 %v387
    %723 = vmatprep.subr.mxu0 %v394
    %724 = vmatpush1.msra.mxu0 %v393
    %725 = vmatprep.subr.mxu0 %v400
    %726 = vmatpush1.msra.mxu0 %v399
    %727 = vmatprep.subr.mxu0 %v406
    %728 = vmatpush1.msra.mxu0 %v405
    %729 = vmatprep.subr.mxu0 %v412
    %730 = vmatpush1.msra.mxu0 %v411
    %731 = vmatprep.subr.mxu0 %v418
    %732 = vmatpush1.msra.mxu0 %v417
    %733 = vmatprep.subr.mxu0 %v424
    %734 = vmatpush1.msra.mxu0 %v423
    %735 = vmatprep.subr.mxu0 %v430
    %736 = vmatpush1.msra.mxu0 %v429
    %737 = vmatprep.subr.mxu0 %v436
    %738 = vmatpush1.msra.mxu0 %v435
    %739 = vmatprep.subr.mxu0 %v442
    %740 = vmatpush1.msra.mxu0 %v441
    %741 = vmatprep.subr.mxu0 %v448
    %742 = vmatpush1.msra.mxu0 %v447
    %743 = vmatprep.subr.mxu0 %v454
    %744 = vmatpush1.msra.mxu0 %v453
    %745 = vmatprep.subr.mxu0 %v460
    %746 = vmatpush1.msra.mxu0 %v459
    %747 = vmatprep.subr.mxu0 0.0
    %748 = vmatpush1.msra.mxu0 0.0
    %749 = vmatprep.subr.mxu0 0.0
    %750 = vmatpush1.msra.mxu0 0.0
    %751 = vmatprep.subr.mxu0 0.0
    %752 = vmatpush1.msra.mxu0 0.0
    %753 = vmatprep.subr.mxu0 0.0
    %754 = vmatpush1.msra.mxu0 0.0
    %755 = vmatprep.subr.mxu0 0.0
    %756 = vmatpush1.msra.mxu0 0.0
    %757 = vmatprep.subr.mxu0 0.0
    %758 = vmatpush1.msra.mxu0 0.0
    %759 = vmatprep.subr.mxu0 0.0
    %760 = vmatpush1.msra.mxu0 0.0
    %761 = vmatprep.subr.mxu0 0.0
    %762 = vmatpush1.msra.mxu0 0.0
    %763 = vmatprep.subr.mxu0 0.0
    %764 = vmatpush1.msra.mxu0 0.0
    %765 = vmatprep.subr.mxu0 0.0
    %766 = vmatpush1.msra.mxu0 0.0
    %767 = vmatprep.subr.mxu0 0.0
    %768 = vmatpush1.msra.mxu0 0.0
    %769 = vmatprep.subr.mxu0 0.0
    %770 = vmatpush1.msra.mxu0 0.0
    %771 = vmatprep.mubr.f32.mxu0 %v493
    %772 = vmatmul.mubr.f32.gmra.mrb[0].mxu0 %v335
    %v773 = vpop.f32.mrb[0].mxu0
    %v774 = vadd.f32 %v482, %v773
    %v775 = vpop.f32.mrb[0].mxu0
    %v776 = vadd.f32 %v486, %v775
    %777 = vmatprep.mubr.f32.mxu0 %v495
    %778 = vmatmul.mubr.f32.gmra.mrb[0].mxu0 %v336
    %v779 = vpop.f32.mrb[0].mxu0
    %v780 = vadd.f32 %v482, %v779
    %v781 = vpop.f32.mrb[0].mxu0
    %v782 = vadd.f32 %v486, %v781
    %783 = vmatprep.mubr.f32.mxu0 %v497
    %784 = vmatmul.mubr.f32.gmra.mrb[0].mxu0 %v337
    %v785 = vpop.f32.mrb[0].mxu0
    %v786 = vadd.f32 %v482, %v785
    %v787 = vpop.f32.mrb[0].mxu0
    %v788 = vadd.f32 %v486, %v787
    %789 = vmatprep.mubr.f32.mxu0 %v499
    %790 = vmatmul.mubr.f32.gmra.mrb[0].mxu0 %v338
    %v791 = vpop.f32.mrb[0].mxu0
    %v792 = vadd.f32 %v482, %v791
    %v793 = vpop.f32.mrb[0].mxu0
    %v794 = vadd.f32 %v486, %v793
    %795 = vmatprep.mubr.f32.mxu0 %v501
    %796 = vmatmul.mubr.f32.gmra.mrb[0].mxu0 %v339
    %v797 = vpop.f32.mrb[0].mxu0
    %v798 = vadd.f32 %v482, %v797
    %v799 = vpop.f32.mrb[0].mxu0
    %v800 = vadd.f32 %v486, %v799
    %801 = vmatprep.mubr.f32.mxu0 %v503
    %802 = vmatmul.mubr.f32.gmra.mrb[0].mxu0 %v340
    %v803 = vpop.f32.mrb[0].mxu0
    %v804 = vadd.f32 %v482, %v803
    %v805 = vpop.f32.mrb[0].mxu0
    %v806 = vadd.f32 %v486, %v805
    %807 = vdwg.mxu0
    %vm808 = vcmp.ge.f32.partialorder %v572, 0.0
    %vm809 = vcmp.ge.f32.partialorder %v574, 0.0
    %vm810 = vcmp.ge.f32.partialorder %v673, 0.0
    %vm811 = vcmp.ge.f32.partialorder %v675, 0.0
    %vm812 = vcmp.ge.f32.partialorder %v774, 0.0
    %vm813 = vcmp.ge.f32.partialorder %v776, 0.0
    %vm814 = vcmp.ge.f32.partialorder %v578, 0.0
    %vm815 = vcmp.ge.f32.partialorder %v580, 0.0
    %vm816 = vcmp.ge.f32.partialorder %v679, 0.0
    %vm817 = vcmp.ge.f32.partialorder %v681, 0.0
    %vm818 = vcmp.ge.f32.partialorder %v780, 0.0
    %vm819 = vcmp.ge.f32.partialorder %v782, 0.0
    %vm820 = vcmp.ge.f32.partialorder %v584, 0.0
    %vm821 = vcmp.ge.f32.partialorder %v586, 0.0
    %vm822 = vcmp.ge.f32.partialorder %v685, 0.0
    %vm823 = vcmp.ge.f32.partialorder %v687, 0.0
    %vm824 = vcmp.ge.f32.partialorder %v786, 0.0
    %vm825 = vcmp.ge.f32.partialorder %v788, 0.0
    %vm826 = vcmp.ge.f32.partialorder %v590, 0.0
    %vm827 = vcmp.ge.f32.partialorder %v592, 0.0
    %vm828 = vcmp.ge.f32.partialorder %v691, 0.0
    %vm829 = vcmp.ge.f32.partialorder %v693, 0.0
    %vm830 = vcmp.ge.f32.partialorder %v792, 0.0
    %vm831 = vcmp.ge.f32.partialorder %v794, 0.0
    %vm832 = vcmp.ge.f32.partialorder %v596, 0.0
    %vm833 = vcmp.ge.f32.partialorder %v598, 0.0
    %vm834 = vcmp.ge.f32.partialorder %v697, 0.0
    %vm835 = vcmp.ge.f32.partialorder %v699, 0.0
    %vm836 = vcmp.ge.f32.partialorder %v798, 0.0
    %vm837 = vcmp.ge.f32.partialorder %v800, 0.0
    %vm838 = vcmp.ge.f32.partialorder %v602, 0.0
    %vm839 = vcmp.ge.f32.partialorder %v604, 0.0
    %vm840 = vcmp.ge.f32.partialorder %v703, 0.0
    %vm841 = vcmp.ge.f32.partialorder %v705, 0.0
    %vm842 = vcmp.ge.f32.partialorder %v804, 0.0
    %vm843 = vcmp.ge.f32.partialorder %v806, 0.0
    %v844 = vld [vmem:[#allocation7] sm:$0x3f]
    %v846 = vlaneseq
    %v847 = vshrl.u32 %v846, 7
    %v848 = vsub.s32 0, %v847
    %v849 = vrot.slane %v844, %v848
    %v850 = vlaneseq
    %v851 = vshrl.u32 %v850, 7
    %v852 = vsub.s32 1, %v851
    %v853 = vrot.slane %v844, %v852
    %v854 = vlaneseq
    %v855 = vshrl.u32 %v854, 7
    %v856 = vsub.s32 2, %v855
    %v857 = vrot.slane %v844, %v856
    %v858 = vlaneseq
    %v859 = vshrl.u32 %v858, 7
    %v860 = vsub.s32 3, %v859
    %v861 = vrot.slane %v844, %v860
    %v862 = vlaneseq
    %v863 = vshrl.u32 %v862, 7
    %v864 = vsub.s32 4, %v863
    %v865 = vrot.slane %v844, %v864
    %v866 = vlaneseq
    %v867 = vshrl.u32 %v866, 7
    %v868 = vsub.s32 5, %v867
    %v869 = vrot.slane %v844, %v868
    %v876 = vmul.f32 %v849, %v572
    %v877 = vmul.f32 %v853, %v574
    %v878 = vmul.f32 %v857, %v673
    %v879 = vmul.f32 %v861, %v675
    %v880 = vmul.f32 %v865, %v774
    %v881 = vmul.f32 %v869, %v776
    %v882 = vmul.f32 %v849, %v578
    %v883 = vmul.f32 %v853, %v580
    %v884 = vmul.f32 %v857, %v679
    %v885 = vmul.f32 %v861, %v681
    %v886 = vmul.f32 %v865, %v780
    %v887 = vmul.f32 %v869, %v782
    %v888 = vmul.f32 %v849, %v584
    %v889 = vmul.f32 %v853, %v586
    %v890 = vmul.f32 %v857, %v685
    %v891 = vmul.f32 %v861, %v687
    %v892 = vmul.f32 %v865, %v786
    %v893 = vmul.f32 %v869, %v788
    %v894 = vmul.f32 %v849, %v590
    %v895 = vmul.f32 %v853, %v592
    %v896 = vmul.f32 %v857, %v691
    %v897 = vmul.f32 %v861, %v693
    %v898 = vmul.f32 %v865, %v792
    %v899 = vmul.f32 %v869, %v794
    %v900 = vmul.f32 %v849, %v596
    %v901 = vmul.f32 %v853, %v598
    %v902 = vmul.f32 %v857, %v697
    %v903 = vmul.f32 %v861, %v699
    %v904 = vmul.f32 %v865, %v798
    %v905 = vmul.f32 %v869, %v800
    %v906 = vmul.f32 %v849, %v602
    %v907 = vmul.f32 %v853, %v604
    %v908 = vmul.f32 %v857, %v703
    %v909 = vmul.f32 %v861, %v705
    %v910 = vmul.f32 %v865, %v804
    %v911 = vmul.f32 %v869, %v806
    %v912 = vld [vmem:[#allocation8] sm:$0x3f]
    %v914 = vlaneseq
    %v915 = vshrl.u32 %v914, 7
    %v916 = vsub.s32 0, %v915
    %v917 = vrot.slane %v912, %v916
    %v918 = vlaneseq
    %v919 = vshrl.u32 %v918, 7
    %v920 = vsub.s32 1, %v919
    %v921 = vrot.slane %v912, %v920
    %v922 = vlaneseq
    %v923 = vshrl.u32 %v922, 7
    %v924 = vsub.s32 2, %v923
    %v925 = vrot.slane %v912, %v924
    %v926 = vlaneseq
    %v927 = vshrl.u32 %v926, 7
    %v928 = vsub.s32 3, %v927
    %v929 = vrot.slane %v912, %v928
    %v930 = vlaneseq
    %v931 = vshrl.u32 %v930, 7
    %v932 = vsub.s32 4, %v931
    %v933 = vrot.slane %v912, %v932
    %v934 = vlaneseq
    %v935 = vshrl.u32 %v934, 7
    %v936 = vsub.s32 5, %v935
    %v937 = vrot.slane %v912, %v936
    %v944 = vmul.f32 %v917, %v572
    %v945 = vmul.f32 %v921, %v574
    %v946 = vmul.f32 %v925, %v673
    %v947 = vmul.f32 %v929, %v675
    %v948 = vmul.f32 %v933, %v774
    %v949 = vmul.f32 %v937, %v776
    %v950 = vmul.f32 %v917, %v578
    %v951 = vmul.f32 %v921, %v580
    %v952 = vmul.f32 %v925, %v679
    %v953 = vmul.f32 %v929, %v681
    %v954 = vmul.f32 %v933, %v780
    %v955 = vmul.f32 %v937, %v782
    %v956 = vmul.f32 %v917, %v584
    %v957 = vmul.f32 %v921, %v586
    %v958 = vmul.f32 %v925, %v685
    %v959 = vmul.f32 %v929, %v687
    %v960 = vmul.f32 %v933, %v786
    %v961 = vmul.f32 %v937, %v788
    %v962 = vmul.f32 %v917, %v590
    %v963 = vmul.f32 %v921, %v592
    %v964 = vmul.f32 %v925, %v691
    %v965 = vmul.f32 %v929, %v693
    %v966 = vmul.f32 %v933, %v792
    %v967 = vmul.f32 %v937, %v794
    %v968 = vmul.f32 %v917, %v596
    %v969 = vmul.f32 %v921, %v598
    %v970 = vmul.f32 %v925, %v697
    %v971 = vmul.f32 %v929, %v699
    %v972 = vmul.f32 %v933, %v798
    %v973 = vmul.f32 %v937, %v800
    %v974 = vmul.f32 %v917, %v602
    %v975 = vmul.f32 %v921, %v604
    %v976 = vmul.f32 %v925, %v703
    %v977 = vmul.f32 %v929, %v705
    %v978 = vmul.f32 %v933, %v804
    %v979 = vmul.f32 %v937, %v806
    %v980 = vsel %vm808, %v876, %v944
    %v981 = vsel %vm809, %v877, %v945
    %v982 = vsel %vm810, %v878, %v946
    %v983 = vsel %vm811, %v879, %v947
    %v984 = vsel %vm812, %v880, %v948
    %v985 = vsel %vm813, %v881, %v949
    %v986 = vsel %vm814, %v882, %v950
    %v987 = vsel %vm815, %v883, %v951
    %v988 = vsel %vm816, %v884, %v952
    %v989 = vsel %vm817, %v885, %v953
    %v990 = vsel %vm818, %v886, %v954
    %v991 = vsel %vm819, %v887, %v955
    %v992 = vsel %vm820, %v888, %v956
    %v993 = vsel %vm821, %v889, %v957
    %v994 = vsel %vm822, %v890, %v958
    %v995 = vsel %vm823, %v891, %v959
    %v996 = vsel %vm824, %v892, %v960
    %v997 = vsel %vm825, %v893, %v961
    %v998 = vsel %vm826, %v894, %v962
    %v999 = vsel %vm827, %v895, %v963
    %v1000 = vsel %vm828, %v896, %v964
    %v1001 = vsel %vm829, %v897, %v965
    %v1002 = vsel %vm830, %v898, %v966
    %v1003 = vsel %vm831, %v899, %v967
    %v1004 = vsel %vm832, %v900, %v968
    %v1005 = vsel %vm833, %v901, %v969
    %v1006 = vsel %vm834, %v902, %v970
    %v1007 = vsel %vm835, %v903, %v971
    %v1008 = vsel %vm836, %v904, %v972
    %v1009 = vsel %vm837, %v905, %v973
    %v1010 = vsel %vm838, %v906, %v974
    %v1011 = vsel %vm839, %v907, %v975
    %v1012 = vsel %vm840, %v908, %v976
    %v1013 = vsel %vm841, %v909, %v977
    %v1014 = vsel %vm842, %v910, %v978
    %v1015 = vsel %vm843, %v911, %v979
    %v1016 = vld [vmem:[#allocation10] sm:$0x3f]
    %v1018 = vlaneseq
    %v1019 = vshrl.u32 %v1018, 7
    %v1020 = vsub.s32 0, %v1019
    %v1021 = vrot.slane %v1016, %v1020
    %v1022 = vlaneseq
    %v1023 = vshrl.u32 %v1022, 7
    %v1024 = vsub.s32 1, %v1023
    %v1025 = vrot.slane %v1016, %v1024
    %v1026 = vlaneseq
    %v1027 = vshrl.u32 %v1026, 7
    %v1028 = vsub.s32 2, %v1027
    %v1029 = vrot.slane %v1016, %v1028
    %v1030 = vlaneseq
    %v1031 = vshrl.u32 %v1030, 7
    %v1032 = vsub.s32 3, %v1031
    %v1033 = vrot.slane %v1016, %v1032
    %v1034 = vlaneseq
    %v1035 = vshrl.u32 %v1034, 7
    %v1036 = vsub.s32 4, %v1035
    %v1037 = vrot.slane %v1016, %v1036
    %v1038 = vlaneseq
    %v1039 = vshrl.u32 %v1038, 7
    %v1040 = vsub.s32 5, %v1039
    %v1041 = vrot.slane %v1016, %v1040
    %v1048 = vadd.f32 %v980, %v1021
    %v1049 = vadd.f32 %v981, %v1025
    %v1050 = vadd.f32 %v982, %v1029
    %v1051 = vadd.f32 %v983, %v1033
    %v1052 = vadd.f32 %v984, %v1037
    %v1053 = vadd.f32 %v985, %v1041
    %v1054 = vadd.f32 %v986, %v1021
    %v1055 = vadd.f32 %v987, %v1025
    %v1056 = vadd.f32 %v988, %v1029
    %v1057 = vadd.f32 %v989, %v1033
    %v1058 = vadd.f32 %v990, %v1037
    %v1059 = vadd.f32 %v991, %v1041
    %v1060 = vadd.f32 %v992, %v1021
    %v1061 = vadd.f32 %v993, %v1025
    %v1062 = vadd.f32 %v994, %v1029
    %v1063 = vadd.f32 %v995, %v1033
    %v1064 = vadd.f32 %v996, %v1037
    %v1065 = vadd.f32 %v997, %v1041
    %v1066 = vadd.f32 %v998, %v1021
    %v1067 = vadd.f32 %v999, %v1025
    %v1068 = vadd.f32 %v1000, %v1029
    %v1069 = vadd.f32 %v1001, %v1033
    %v1070 = vadd.f32 %v1002, %v1037
    %v1071 = vadd.f32 %v1003, %v1041
    %v1072 = vadd.f32 %v1004, %v1021
    %v1073 = vadd.f32 %v1005, %v1025
    %v1074 = vadd.f32 %v1006, %v1029
    %v1075 = vadd.f32 %v1007, %v1033
    %v1076 = vadd.f32 %v1008, %v1037
    %v1077 = vadd.f32 %v1009, %v1041
    %v1078 = vadd.f32 %v1010, %v1021
    %v1079 = vadd.f32 %v1011, %v1025
    %v1080 = vadd.f32 %v1012, %v1029
    %v1081 = vadd.f32 %v1013, %v1033
    %v1082 = vadd.f32 %v1014, %v1037
    %v1083 = vadd.f32 %v1015, %v1041
    %v1120 = vcombine.low %v1048, %v1049
    %v1121 = vcombine.high %v1048, %v1049
    %v1122 = vcombine.low %v1050, %v1051
    %v1123 = vcombine.high %v1050, %v1051
    %v1125 = vunpack.c.l.s4 1983009808
    %v1126 = vunpack.c.0.s8 %v1125
    %v1127 = vlaneseq
    %v1128 = vshrl.u32 %v1127, 7
    %v1129 = vsub.s32 %v1126, %v1128
    %v1130 = vrot.slane %v1120, %v1129
    %v1132 = vunpack.c.l.s4 1983009808
    %v1133 = vunpack.c.0.s8 %v1132
    %v1134 = vlaneseq
    %v1135 = vshrl.u32 %v1134, 7
    %v1136 = vsub.s32 %v1133, %v1135
    %v1137 = vrot.slane %v1121, %v1136
    %v1139 = vunpack.c.l.s4 1983009808
    %v1140 = vunpack.c.0.s8 %v1139
    %v1141 = vlaneseq
    %v1142 = vshrl.u32 %v1141, 7
    %v1143 = vsub.s32 %v1140, %v1142
    %v1144 = vrot.slane %v1122, %v1143
    %v1146 = vunpack.c.l.s4 1983009808
    %v1147 = vunpack.c.0.s8 %v1146
    %v1148 = vlaneseq
    %v1149 = vshrl.u32 %v1148, 7
    %v1150 = vsub.s32 %v1147, %v1149
    %v1151 = vrot.slane %v1123, %v1150
    %v1152 = vcombine.low %v1130, %v1144
    %v1153 = vcombine.high %v1130, %v1144
    %v1154 = vcombine.low %v1137, %v1151
    %v1155 = vcombine.high %v1137, %v1151
    %v1156 = vcombine.low %v1052, %v1053
    %v1157 = vcombine.high %v1052, %v1053
    %v1159 = vunpack.c.l.s4 1983009808
    %v1160 = vunpack.c.0.s8 %v1159
    %v1161 = vlaneseq
    %v1162 = vshrl.u32 %v1161, 7
    %v1163 = vsub.s32 %v1160, %v1162
    %v1164 = vrot.slane %v1156, %v1163
    %v1166 = vunpack.c.l.s4 1983009808
    %v1167 = vunpack.c.0.s8 %v1166
    %v1168 = vlaneseq
    %v1169 = vshrl.u32 %v1168, 7
    %v1170 = vsub.s32 %v1167, %v1169
    %v1171 = vrot.slane %v1157, %v1170
    %v1172 = vcombine.high %v1164, %v1164
    %v1173 = vcombine.high %v1171, %v1171
    %v1174 = vcombine.low %v1054, %v1055
    %v1175 = vcombine.high %v1054, %v1055
    %v1176 = vcombine.low %v1056, %v1057
    %v1177 = vcombine.high %v1056, %v1057
    %v1179 = vunpack.c.l.s4 1983009808
    %v1180 = vunpack.c.0.s8 %v1179
    %v1181 = vlaneseq
    %v1182 = vshrl.u32 %v1181, 7
    %v1183 = vsub.s32 %v1180, %v1182
    %v1184 = vrot.slane %v1174, %v1183
    %v1186 = vunpack.c.l.s4 1983009808
    %v1187 = vunpack.c.0.s8 %v1186
    %v1188 = vlaneseq
    %v1189 = vshrl.u32 %v1188, 7
    %v1190 = vsub.s32 %v1187, %v1189
    %v1191 = vrot.slane %v1175, %v1190
    %v1193 = vunpack.c.l.s4 1983009808
    %v1194 = vunpack.c.0.s8 %v1193
    %v1195 = vlaneseq
    %v1196 = vshrl.u32 %v1195, 7
    %v1197 = vsub.s32 %v1194, %v1196
    %v1198 = vrot.slane %v1176, %v1197
    %v1200 = vunpack.c.l.s4 1983009808
    %v1201 = vunpack.c.0.s8 %v1200
    %v1202 = vlaneseq
    %v1203 = vshrl.u32 %v1202, 7
    %v1204 = vsub.s32 %v1201, %v1203
    %v1205 = vrot.slane %v1177, %v1204
    %v1206 = vcombine.low %v1184, %v1198
    %v1207 = vcombine.high %v1184, %v1198
    %v1208 = vcombine.low %v1191, %v1205
    %v1209 = vcombine.high %v1191, %v1205
    %v1210 = vcombine.low %v1058, %v1059
    %v1211 = vcombine.high %v1058, %v1059
    %v1213 = vunpack.c.l.s4 1983009808
    %v1214 = vunpack.c.0.s8 %v1213
    %v1215 = vlaneseq
    %v1216 = vshrl.u32 %v1215, 7
    %v1217 = vsub.s32 %v1214, %v1216
    %v1218 = vrot.slane %v1210, %v1217
    %v1220 = vunpack.c.l.s4 1983009808
    %v1221 = vunpack.c.0.s8 %v1220
    %v1222 = vlaneseq
    %v1223 = vshrl.u32 %v1222, 7
    %v1224 = vsub.s32 %v1221, %v1223
    %v1225 = vrot.slane %v1211, %v1224
    %v1226 = vcombine.high %v1218, %v1218
    %v1227 = vcombine.high %v1225, %v1225
    %v1228 = vcombine.low %v1060, %v1061
    %v1229 = vcombine.high %v1060, %v1061
    %v1230 = vcombine.low %v1062, %v1063
    %v1231 = vcombine.high %v1062, %v1063
    %v1233 = vunpack.c.l.s4 1983009808
    %v1234 = vunpack.c.0.s8 %v1233
    %v1235 = vlaneseq
    %v1236 = vshrl.u32 %v1235, 7
    %v1237 = vsub.s32 %v1234, %v1236
    %v1238 = vrot.slane %v1228, %v1237
    %v1240 = vunpack.c.l.s4 1983009808
    %v1241 = vunpack.c.0.s8 %v1240
    %v1242 = vlaneseq
    %v1243 = vshrl.u32 %v1242, 7
    %v1244 = vsub.s32 %v1241, %v1243
    %v1245 = vrot.slane %v1229, %v1244
    %v1247 = vunpack.c.l.s4 1983009808
    %v1248 = vunpack.c.0.s8 %v1247
    %v1249 = vlaneseq
    %v1250 = vshrl.u32 %v1249, 7
    %v1251 = vsub.s32 %v1248, %v1250
    %v1252 = vrot.slane %v1230, %v1251
    %v1254 = vunpack.c.l.s4 1983009808
    %v1255 = vunpack.c.0.s8 %v1254
    %v1256 = vlaneseq
    %v1257 = vshrl.u32 %v1256, 7
    %v1258 = vsub.s32 %v1255, %v1257
    %v1259 = vrot.slane %v1231, %v1258
    %v1260 = vcombine.low %v1238, %v1252
    %v1261 = vcombine.high %v1238, %v1252
    %v1262 = vcombine.low %v1245, %v1259
    %v1263 = vcombine.high %v1245, %v1259
    %v1264 = vcombine.low %v1064, %v1065
    %v1265 = vcombine.high %v1064, %v1065
    %v1267 = vunpack.c.l.s4 1983009808
    %v1268 = vunpack.c.0.s8 %v1267
    %v1269 = vlaneseq
    %v1270 = vshrl.u32 %v1269, 7
    %v1271 = vsub.s32 %v1268, %v1270
    %v1272 = vrot.slane %v1264, %v1271
    %v1274 = vunpack.c.l.s4 1983009808
    %v1275 = vunpack.c.0.s8 %v1274
    %v1276 = vlaneseq
    %v1277 = vshrl.u32 %v1276, 7
    %v1278 = vsub.s32 %v1275, %v1277
    %v1279 = vrot.slane %v1265, %v1278
    %v1280 = vcombine.high %v1272, %v1272
    %v1281 = vcombine.high %v1279, %v1279
    %v1282 = vcombine.low %v1066, %v1067
    %v1283 = vcombine.high %v1066, %v1067
    %v1284 = vcombine.low %v1068, %v1069
    %v1285 = vcombine.high %v1068, %v1069
    %v1287 = vunpack.c.l.s4 1983009808
    %v1288 = vunpack.c.0.s8 %v1287
    %v1289 = vlaneseq
    %v1290 = vshrl.u32 %v1289, 7
    %v1291 = vsub.s32 %v1288, %v1290
    %v1292 = vrot.slane %v1282, %v1291
    %v1294 = vunpack.c.l.s4 1983009808
    %v1295 = vunpack.c.0.s8 %v1294
    %v1296 = vlaneseq
    %v1297 = vshrl.u32 %v1296, 7
    %v1298 = vsub.s32 %v1295, %v1297
    %v1299 = vrot.slane %v1283, %v1298
    %v1301 = vunpack.c.l.s4 1983009808
    %v1302 = vunpack.c.0.s8 %v1301
    %v1303 = vlaneseq
    %v1304 = vshrl.u32 %v1303, 7
    %v1305 = vsub.s32 %v1302, %v1304
    %v1306 = vrot.slane %v1284, %v1305
    %v1308 = vunpack.c.l.s4 1983009808
    %v1309 = vunpack.c.0.s8 %v1308
    %v1310 = vlaneseq
    %v1311 = vshrl.u32 %v1310, 7
    %v1312 = vsub.s32 %v1309, %v1311
    %v1313 = vrot.slane %v1285, %v1312
    %v1314 = vcombine.low %v1292, %v1306
    %v1315 = vcombine.high %v1292, %v1306
    %v1316 = vcombine.low %v1299, %v1313
    %v1317 = vcombine.high %v1299, %v1313
    %v1318 = vcombine.low %v1070, %v1071
    %v1319 = vcombine.high %v1070, %v1071
    %v1321 = vunpack.c.l.s4 1983009808
    %v1322 = vunpack.c.0.s8 %v1321
    %v1323 = vlaneseq
    %v1324 = vshrl.u32 %v1323, 7
    %v1325 = vsub.s32 %v1322, %v1324
    %v1326 = vrot.slane %v1318, %v1325
    %v1328 = vunpack.c.l.s4 1983009808
    %v1329 = vunpack.c.0.s8 %v1328
    %v1330 = vlaneseq
    %v1331 = vshrl.u32 %v1330, 7
    %v1332 = vsub.s32 %v1329, %v1331
    %v1333 = vrot.slane %v1319, %v1332
    %v1334 = vcombine.high %v1326, %v1326
    %v1335 = vcombine.high %v1333, %v1333
    %v1336 = vcombine.low %v1072, %v1073
    %v1337 = vcombine.high %v1072, %v1073
    %v1338 = vcombine.low %v1074, %v1075
    %v1339 = vcombine.high %v1074, %v1075
    %v1341 = vunpack.c.l.s4 1983009808
    %v1342 = vunpack.c.0.s8 %v1341
    %v1343 = vlaneseq
    %v1344 = vshrl.u32 %v1343, 7
    %v1345 = vsub.s32 %v1342, %v1344
    %v1346 = vrot.slane %v1336, %v1345
    %v1348 = vunpack.c.l.s4 1983009808
    %v1349 = vunpack.c.0.s8 %v1348
    %v1350 = vlaneseq
    %v1351 = vshrl.u32 %v1350, 7
    %v1352 = vsub.s32 %v1349, %v1351
    %v1353 = vrot.slane %v1337, %v1352
    %v1355 = vunpack.c.l.s4 1983009808
    %v1356 = vunpack.c.0.s8 %v1355
    %v1357 = vlaneseq
    %v1358 = vshrl.u32 %v1357, 7
    %v1359 = vsub.s32 %v1356, %v1358
    %v1360 = vrot.slane %v1338, %v1359
    %v1362 = vunpack.c.l.s4 1983009808
    %v1363 = vunpack.c.0.s8 %v1362
    %v1364 = vlaneseq
    %v1365 = vshrl.u32 %v1364, 7
    %v1366 = vsub.s32 %v1363, %v1365
    %v1367 = vrot.slane %v1339, %v1366
    %v1368 = vcombine.low %v1346, %v1360
    %v1369 = vcombine.high %v1346, %v1360
    %v1370 = vcombine.low %v1353, %v1367
    %v1371 = vcombine.high %v1353, %v1367
    %v1372 = vcombine.low %v1076, %v1077
    %v1373 = vcombine.high %v1076, %v1077
    %v1375 = vunpack.c.l.s4 1983009808
    %v1376 = vunpack.c.0.s8 %v1375
    %v1377 = vlaneseq
    %v1378 = vshrl.u32 %v1377, 7
    %v1379 = vsub.s32 %v1376, %v1378
    %v1380 = vrot.slane %v1372, %v1379
    %v1382 = vunpack.c.l.s4 1983009808
    %v1383 = vunpack.c.0.s8 %v1382
    %v1384 = vlaneseq
    %v1385 = vshrl.u32 %v1384, 7
    %v1386 = vsub.s32 %v1383, %v1385
    %v1387 = vrot.slane %v1373, %v1386
    %v1388 = vcombine.high %v1380, %v1380
    %v1389 = vcombine.high %v1387, %v1387
    %v1390 = vcombine.low %v1078, %v1079
    %v1391 = vcombine.high %v1078, %v1079
    %v1392 = vcombine.low %v1080, %v1081
    %v1393 = vcombine.high %v1080, %v1081
    %v1395 = vunpack.c.l.s4 1983009808
    %v1396 = vunpack.c.0.s8 %v1395
    %v1397 = vlaneseq
    %v1398 = vshrl.u32 %v1397, 7
    %v1399 = vsub.s32 %v1396, %v1398
    %v1400 = vrot.slane %v1390, %v1399
    %v1402 = vunpack.c.l.s4 1983009808
    %v1403 = vunpack.c.0.s8 %v1402
    %v1404 = vlaneseq
    %v1405 = vshrl.u32 %v1404, 7
    %v1406 = vsub.s32 %v1403, %v1405
    %v1407 = vrot.slane %v1391, %v1406
    %v1409 = vunpack.c.l.s4 1983009808
    %v1410 = vunpack.c.0.s8 %v1409
    %v1411 = vlaneseq
    %v1412 = vshrl.u32 %v1411, 7
    %v1413 = vsub.s32 %v1410, %v1412
    %v1414 = vrot.slane %v1392, %v1413
    %v1416 = vunpack.c.l.s4 1983009808
    %v1417 = vunpack.c.0.s8 %v1416
    %v1418 = vlaneseq
    %v1419 = vshrl.u32 %v1418, 7
    %v1420 = vsub.s32 %v1417, %v1419
    %v1421 = vrot.slane %v1393, %v1420
    %v1422 = vcombine.low %v1400, %v1414
    %v1423 = vcombine.high %v1400, %v1414
    %v1424 = vcombine.low %v1407, %v1421
    %v1425 = vcombine.high %v1407, %v1421
    %v1426 = vcombine.low %v1082, %v1083
    %v1427 = vcombine.high %v1082, %v1083
    %v1429 = vunpack.c.l.s4 1983009808
    %v1430 = vunpack.c.0.s8 %v1429
    %v1431 = vlaneseq
    %v1432 = vshrl.u32 %v1431, 7
    %v1433 = vsub.s32 %v1430, %v1432
    %v1434 = vrot.slane %v1426, %v1433
    %v1436 = vunpack.c.l.s4 1983009808
    %v1437 = vunpack.c.0.s8 %v1436
    %v1438 = vlaneseq
    %v1439 = vshrl.u32 %v1438, 7
    %v1440 = vsub.s32 %v1437, %v1439
    %v1441 = vrot.slane %v1427, %v1440
    %v1442 = vcombine.high %v1434, %v1434
    %v1443 = vcombine.high %v1441, %v1441
    %v1444 = vcombine.high %v1152, %v1152
    %v1446 = vunpack.c.l.s4 1983009808
    %v1447 = vunpack.c.0.s8 %v1446
    %v1448 = vlaneseq
    %v1449 = vshrl.u32 %v1448, 7
    %v1450 = vsub.s32 %v1447, %v1449
    %v1451 = vrot.slane %v1152, %v1450
    %v1453 = vunpack.c.l.s4 1983009808
    %v1454 = vunpack.c.0.s8 %v1453
    %v1455 = vlaneseq
    %v1456 = vshrl.u32 %v1455, 7
    %v1457 = vsub.s32 %v1454, %v1456
    %v1458 = vrot.slane %v1444, %v1457
    %v1459 = vcombine.high %v1451, %v1451
    %v1460 = vcombine.high %v1458, %v1458
    %v1462 = vunpack.c.l.s4 1983009808
    %v1463 = vunpack.c.0.s8 %v1462
    %v1464 = vlaneseq
    %v1465 = vshrl.u32 %v1464, 7
    %v1466 = vsub.s32 %v1463, %v1465
    %v1467 = vrot.slane %v1164, %v1466
    %v1468 = vcombine.high %v1467, %v1467
    %v1469 = vcombine.high %v1153, %v1153
    %v1471 = vunpack.c.l.s4 1983009808
    %v1472 = vunpack.c.0.s8 %v1471
    %v1473 = vlaneseq
    %v1474 = vshrl.u32 %v1473, 7
    %v1475 = vsub.s32 %v1472, %v1474
    %v1476 = vrot.slane %v1153, %v1475
    %v1478 = vunpack.c.l.s4 1983009808
    %v1479 = vunpack.c.0.s8 %v1478
    %v1480 = vlaneseq
    %v1481 = vshrl.u32 %v1480, 7
    %v1482 = vsub.s32 %v1479, %v1481
    %v1483 = vrot.slane %v1469, %v1482
    %v1484 = vcombine.high %v1476, %v1476
    %v1485 = vcombine.high %v1483, %v1483
    %v1487 = vunpack.c.l.s4 1983009808
    %v1488 = vunpack.c.0.s8 %v1487
    %v1489 = vlaneseq
    %v1490 = vshrl.u32 %v1489, 7
    %v1491 = vsub.s32 %v1488, %v1490
    %v1492 = vrot.slane %v1172, %v1491
    %v1493 = vcombine.high %v1492, %v1492
    %v1494 = vcombine.high %v1154, %v1154
    %v1496 = vunpack.c.l.s4 1983009808
    %v1497 = vunpack.c.0.s8 %v1496
    %v1498 = vlaneseq
    %v1499 = vshrl.u32 %v1498, 7
    %v1500 = vsub.s32 %v1497, %v1499
    %v1501 = vrot.slane %v1154, %v1500
    %v1503 = vunpack.c.l.s4 1983009808
    %v1504 = vunpack.c.0.s8 %v1503
    %v1505 = vlaneseq
    %v1506 = vshrl.u32 %v1505, 7
    %v1507 = vsub.s32 %v1504, %v1506
    %v1508 = vrot.slane %v1494, %v1507
    %v1509 = vcombine.high %v1501, %v1501
    %v1510 = vcombine.high %v1508, %v1508
    %v1512 = vunpack.c.l.s4 1983009808
    %v1513 = vunpack.c.0.s8 %v1512
    %v1514 = vlaneseq
    %v1515 = vshrl.u32 %v1514, 7
    %v1516 = vsub.s32 %v1513, %v1515
    %v1517 = vrot.slane %v1171, %v1516
    %v1518 = vcombine.high %v1517, %v1517
    %v1519 = vcombine.high %v1155, %v1155
    %v1521 = vunpack.c.l.s4 1983009808
    %v1522 = vunpack.c.0.s8 %v1521
    %v1523 = vlaneseq
    %v1524 = vshrl.u32 %v1523, 7
    %v1525 = vsub.s32 %v1522, %v1524
    %v1526 = vrot.slane %v1155, %v1525
    %v1528 = vunpack.c.l.s4 1983009808
    %v1529 = vunpack.c.0.s8 %v1528
    %v1530 = vlaneseq
    %v1531 = vshrl.u32 %v1530, 7
    %v1532 = vsub.s32 %v1529, %v1531
    %v1533 = vrot.slane %v1519, %v1532
    %v1534 = vcombine.high %v1526, %v1526
    %v1535 = vcombine.high %v1533, %v1533
    %v1537 = vunpack.c.l.s4 1983009808
    %v1538 = vunpack.c.0.s8 %v1537
    %v1539 = vlaneseq
    %v1540 = vshrl.u32 %v1539, 7
    %v1541 = vsub.s32 %v1538, %v1540
    %v1542 = vrot.slane %v1173, %v1541
    %v1543 = vcombine.high %v1542, %v1542
    %v1544 = vcombine.high %v1206, %v1206
    %v1546 = vunpack.c.l.s4 1983009808
    %v1547 = vunpack.c.0.s8 %v1546
    %v1548 = vlaneseq
    %v1549 = vshrl.u32 %v1548, 7
    %v1550 = vsub.s32 %v1547, %v1549
    %v1551 = vrot.slane %v1206, %v1550
    %v1553 = vunpack.c.l.s4 1983009808
    %v1554 = vunpack.c.0.s8 %v1553
    %v1555 = vlaneseq
    %v1556 = vshrl.u32 %v1555, 7
    %v1557 = vsub.s32 %v1554, %v1556
    %v1558 = vrot.slane %v1544, %v1557
    %v1559 = vcombine.high %v1551, %v1551
    %v1560 = vcombine.high %v1558, %v1558
    %v1562 = vunpack.c.l.s4 1983009808
    %v1563 = vunpack.c.0.s8 %v1562
    %v1564 = vlaneseq
    %v1565 = vshrl.u32 %v1564, 7
    %v1566 = vsub.s32 %v1563, %v1565
    %v1567 = vrot.slane %v1218, %v1566
    %v1568 = vcombine.high %v1567, %v1567
    %v1569 = vcombine.high %v1207, %v1207
    %v1571 = vunpack.c.l.s4 1983009808
    %v1572 = vunpack.c.0.s8 %v1571
    %v1573 = vlaneseq
    %v1574 = vshrl.u32 %v1573, 7
    %v1575 = vsub.s32 %v1572, %v1574
    %v1576 = vrot.slane %v1207, %v1575
    %v1578 = vunpack.c.l.s4 1983009808
    %v1579 = vunpack.c.0.s8 %v1578
    %v1580 = vlaneseq
    %v1581 = vshrl.u32 %v1580, 7
    %v1582 = vsub.s32 %v1579, %v1581
    %v1583 = vrot.slane %v1569, %v1582
    %v1584 = vcombine.high %v1576, %v1576
    %v1585 = vcombine.high %v1583, %v1583
    %v1587 = vunpack.c.l.s4 1983009808
    %v1588 = vunpack.c.0.s8 %v1587
    %v1589 = vlaneseq
    %v1590 = vshrl.u32 %v1589, 7
    %v1591 = vsub.s32 %v1588, %v1590
    %v1592 = vrot.slane %v1226, %v1591
    %v1593 = vcombine.high %v1592, %v1592
    %v1594 = vcombine.high %v1208, %v1208
    %v1596 = vunpack.c.l.s4 1983009808
    %v1597 = vunpack.c.0.s8 %v1596
    %v1598 = vlaneseq
    %v1599 = vshrl.u32 %v1598, 7
    %v1600 = vsub.s32 %v1597, %v1599
    %v1601 = vrot.slane %v1208, %v1600
    %v1603 = vunpack.c.l.s4 1983009808
    %v1604 = vunpack.c.0.s8 %v1603
    %v1605 = vlaneseq
    %v1606 = vshrl.u32 %v1605, 7
    %v1607 = vsub.s32 %v1604, %v1606
    %v1608 = vrot.slane %v1594, %v1607
    %v1609 = vcombine.high %v1601, %v1601
    %v1610 = vcombine.high %v1608, %v1608
    %v1612 = vunpack.c.l.s4 1983009808
    %v1613 = vunpack.c.0.s8 %v1612
    %v1614 = vlaneseq
    %v1615 = vshrl.u32 %v1614, 7
    %v1616 = vsub.s32 %v1613, %v1615
    %v1617 = vrot.slane %v1225, %v1616
    %v1618 = vcombine.high %v1617, %v1617
    %v1619 = vcombine.high %v1209, %v1209
    %v1621 = vunpack.c.l.s4 1983009808
    %v1622 = vunpack.c.0.s8 %v1621
    %v1623 = vlaneseq
    %v1624 = vshrl.u32 %v1623, 7
    %v1625 = vsub.s32 %v1622, %v1624
    %v1626 = vrot.slane %v1209, %v1625
    %v1628 = vunpack.c.l.s4 1983009808
    %v1629 = vunpack.c.0.s8 %v1628
    %v1630 = vlaneseq
    %v1631 = vshrl.u32 %v1630, 7
    %v1632 = vsub.s32 %v1629, %v1631
    %v1633 = vrot.slane %v1619, %v1632
    %v1634 = vcombine.high %v1626, %v1626
    %v1635 = vcombine.high %v1633, %v1633
    %v1637 = vunpack.c.l.s4 1983009808
    %v1638 = vunpack.c.0.s8 %v1637
    %v1639 = vlaneseq
    %v1640 = vshrl.u32 %v1639, 7
    %v1641 = vsub.s32 %v1638, %v1640
    %v1642 = vrot.slane %v1227, %v1641
    %v1643 = vcombine.high %v1642, %v1642
    %v1644 = vcombine.high %v1260, %v1260
    %v1646 = vunpack.c.l.s4 1983009808
    %v1647 = vunpack.c.0.s8 %v1646
    %v1648 = vlaneseq
    %v1649 = vshrl.u32 %v1648, 7
    %v1650 = vsub.s32 %v1647, %v1649
    %v1651 = vrot.slane %v1260, %v1650
    %v1653 = vunpack.c.l.s4 1983009808
    %v1654 = vunpack.c.0.s8 %v1653
    %v1655 = vlaneseq
    %v1656 = vshrl.u32 %v1655, 7
    %v1657 = vsub.s32 %v1654, %v1656
    %v1658 = vrot.slane %v1644, %v1657
    %v1659 = vcombine.high %v1651, %v1651
    %v1660 = vcombine.high %v1658, %v1658
    %v1662 = vunpack.c.l.s4 1983009808
    %v1663 = vunpack.c.0.s8 %v1662
    %v1664 = vlaneseq
    %v1665 = vshrl.u32 %v1664, 7
    %v1666 = vsub.s32 %v1663, %v1665
    %v1667 = vrot.slane %v1272, %v1666
    %v1668 = vcombine.high %v1667, %v1667
    %v1669 = vcombine.high %v1261, %v1261
    %v1671 = vunpack.c.l.s4 1983009808
    %v1672 = vunpack.c.0.s8 %v1671
    %v1673 = vlaneseq
    %v1674 = vshrl.u32 %v1673, 7
    %v1675 = vsub.s32 %v1672, %v1674
    %v1676 = vrot.slane %v1261, %v1675
    %v1678 = vunpack.c.l.s4 1983009808
    %v1679 = vunpack.c.0.s8 %v1678
    %v1680 = vlaneseq
    %v1681 = vshrl.u32 %v1680, 7
    %v1682 = vsub.s32 %v1679, %v1681
    %v1683 = vrot.slane %v1669, %v1682
    %v1684 = vcombine.high %v1676, %v1676
    %v1685 = vcombine.high %v1683, %v1683
    %v1687 = vunpack.c.l.s4 1983009808
    %v1688 = vunpack.c.0.s8 %v1687
    %v1689 = vlaneseq
    %v1690 = vshrl.u32 %v1689, 7
    %v1691 = vsub.s32 %v1688, %v1690
    %v1692 = vrot.slane %v1280, %v1691
    %v1693 = vcombine.high %v1692, %v1692
    %v1694 = vcombine.high %v1262, %v1262
    %v1696 = vunpack.c.l.s4 1983009808
    %v1697 = vunpack.c.0.s8 %v1696
    %v1698 = vlaneseq
    %v1699 = vshrl.u32 %v1698, 7
    %v1700 = vsub.s32 %v1697, %v1699
    %v1701 = vrot.slane %v1262, %v1700
    %v1703 = vunpack.c.l.s4 1983009808
    %v1704 = vunpack.c.0.s8 %v1703
    %v1705 = vlaneseq
    %v1706 = vshrl.u32 %v1705, 7
    %v1707 = vsub.s32 %v1704, %v1706
    %v1708 = vrot.slane %v1694, %v1707
    %v1709 = vcombine.high %v1701, %v1701
    %v1710 = vcombine.high %v1708, %v1708
    %v1712 = vunpack.c.l.s4 1983009808
    %v1713 = vunpack.c.0.s8 %v1712
    %v1714 = vlaneseq
    %v1715 = vshrl.u32 %v1714, 7
    %v1716 = vsub.s32 %v1713, %v1715
    %v1717 = vrot.slane %v1279, %v1716
    %v1718 = vcombine.high %v1717, %v1717
    %v1719 = vcombine.high %v1263, %v1263
    %v1721 = vunpack.c.l.s4 1983009808
    %v1722 = vunpack.c.0.s8 %v1721
    %v1723 = vlaneseq
    %v1724 = vshrl.u32 %v1723, 7
    %v1725 = vsub.s32 %v1722, %v1724
    %v1726 = vrot.slane %v1263, %v1725
    %v1728 = vunpack.c.l.s4 1983009808
    %v1729 = vunpack.c.0.s8 %v1728
    %v1730 = vlaneseq
    %v1731 = vshrl.u32 %v1730, 7
    %v1732 = vsub.s32 %v1729, %v1731
    %v1733 = vrot.slane %v1719, %v1732
    %v1734 = vcombine.high %v1726, %v1726
    %v1735 = vcombine.high %v1733, %v1733
    %v1737 = vunpack.c.l.s4 1983009808
    %v1738 = vunpack.c.0.s8 %v1737
    %v1739 = vlaneseq
    %v1740 = vshrl.u32 %v1739, 7
    %v1741 = vsub.s32 %v1738, %v1740
    %v1742 = vrot.slane %v1281, %v1741
    %v1743 = vcombine.high %v1742, %v1742
    %v1744 = vcombine.high %v1314, %v1314
    %v1746 = vunpack.c.l.s4 1983009808
    %v1747 = vunpack.c.0.s8 %v1746
    %v1748 = vlaneseq
    %v1749 = vshrl.u32 %v1748, 7
    %v1750 = vsub.s32 %v1747, %v1749
    %v1751 = vrot.slane %v1314, %v1750
    %v1753 = vunpack.c.l.s4 1983009808
    %v1754 = vunpack.c.0.s8 %v1753
    %v1755 = vlaneseq
    %v1756 = vshrl.u32 %v1755, 7
    %v1757 = vsub.s32 %v1754, %v1756
    %v1758 = vrot.slane %v1744, %v1757
    %v1759 = vcombine.high %v1751, %v1751
    %v1760 = vcombine.high %v1758, %v1758
    %v1762 = vunpack.c.l.s4 1983009808
    %v1763 = vunpack.c.0.s8 %v1762
    %v1764 = vlaneseq
    %v1765 = vshrl.u32 %v1764, 7
    %v1766 = vsub.s32 %v1763, %v1765
    %v1767 = vrot.slane %v1326, %v1766
    %v1768 = vcombine.high %v1767, %v1767
    %v1769 = vcombine.high %v1315, %v1315
    %v1771 = vunpack.c.l.s4 1983009808
    %v1772 = vunpack.c.0.s8 %v1771
    %v1773 = vlaneseq
    %v1774 = vshrl.u32 %v1773, 7
    %v1775 = vsub.s32 %v1772, %v1774
    %v1776 = vrot.slane %v1315, %v1775
    %v1778 = vunpack.c.l.s4 1983009808
    %v1779 = vunpack.c.0.s8 %v1778
    %v1780 = vlaneseq
    %v1781 = vshrl.u32 %v1780, 7
    %v1782 = vsub.s32 %v1779, %v1781
    %v1783 = vrot.slane %v1769, %v1782
    %v1784 = vcombine.high %v1776, %v1776
    %v1785 = vcombine.high %v1783, %v1783
    %v1787 = vunpack.c.l.s4 1983009808
    %v1788 = vunpack.c.0.s8 %v1787
    %v1789 = vlaneseq
    %v1790 = vshrl.u32 %v1789, 7
    %v1791 = vsub.s32 %v1788, %v1790
    %v1792 = vrot.slane %v1334, %v1791
    %v1793 = vcombine.high %v1792, %v1792
    %v1794 = vcombine.high %v1316, %v1316
    %v1796 = vunpack.c.l.s4 1983009808
    %v1797 = vunpack.c.0.s8 %v1796
    %v1798 = vlaneseq
    %v1799 = vshrl.u32 %v1798, 7
    %v1800 = vsub.s32 %v1797, %v1799
    %v1801 = vrot.slane %v1316, %v1800
    %v1803 = vunpack.c.l.s4 1983009808
    %v1804 = vunpack.c.0.s8 %v1803
    %v1805 = vlaneseq
    %v1806 = vshrl.u32 %v1805, 7
    %v1807 = vsub.s32 %v1804, %v1806
    %v1808 = vrot.slane %v1794, %v1807
    %v1809 = vcombine.high %v1801, %v1801
    %v1810 = vcombine.high %v1808, %v1808
    %v1812 = vunpack.c.l.s4 1983009808
    %v1813 = vunpack.c.0.s8 %v1812
    %v1814 = vlaneseq
    %v1815 = vshrl.u32 %v1814, 7
    %v1816 = vsub.s32 %v1813, %v1815
    %v1817 = vrot.slane %v1333, %v1816
    %v1818 = vcombine.high %v1817, %v1817
    %v1819 = vcombine.high %v1317, %v1317
    %v1821 = vunpack.c.l.s4 1983009808
    %v1822 = vunpack.c.0.s8 %v1821
    %v1823 = vlaneseq
    %v1824 = vshrl.u32 %v1823, 7
    %v1825 = vsub.s32 %v1822, %v1824
    %v1826 = vrot.slane %v1317, %v1825
    %v1828 = vunpack.c.l.s4 1983009808
    %v1829 = vunpack.c.0.s8 %v1828
    %v1830 = vlaneseq
    %v1831 = vshrl.u32 %v1830, 7
    %v1832 = vsub.s32 %v1829, %v1831
    %v1833 = vrot.slane %v1819, %v1832
    %v1834 = vcombine.high %v1826, %v1826
    %v1835 = vcombine.high %v1833, %v1833
    %v1837 = vunpack.c.l.s4 1983009808
    %v1838 = vunpack.c.0.s8 %v1837
    %v1839 = vlaneseq
    %v1840 = vshrl.u32 %v1839, 7
    %v1841 = vsub.s32 %v1838, %v1840
    %v1842 = vrot.slane %v1335, %v1841
    %v1843 = vcombine.high %v1842, %v1842
    %v1844 = vcombine.high %v1368, %v1368
    %v1846 = vunpack.c.l.s4 1983009808
    %v1847 = vunpack.c.0.s8 %v1846
    %v1848 = vlaneseq
    %v1849 = vshrl.u32 %v1848, 7
    %v1850 = vsub.s32 %v1847, %v1849
    %v1851 = vrot.slane %v1368, %v1850
    %v1853 = vunpack.c.l.s4 1983009808
    %v1854 = vunpack.c.0.s8 %v1853
    %v1855 = vlaneseq
    %v1856 = vshrl.u32 %v1855, 7
    %v1857 = vsub.s32 %v1854, %v1856
    %v1858 = vrot.slane %v1844, %v1857
    %v1859 = vcombine.high %v1851, %v1851
    %v1860 = vcombine.high %v1858, %v1858
    %v1862 = vunpack.c.l.s4 1983009808
    %v1863 = vunpack.c.0.s8 %v1862
    %v1864 = vlaneseq
    %v1865 = vshrl.u32 %v1864, 7
    %v1866 = vsub.s32 %v1863, %v1865
    %v1867 = vrot.slane %v1380, %v1866
    %v1868 = vcombine.high %v1867, %v1867
    %v1869 = vcombine.high %v1369, %v1369
    %v1871 = vunpack.c.l.s4 1983009808
    %v1872 = vunpack.c.0.s8 %v1871
    %v1873 = vlaneseq
    %v1874 = vshrl.u32 %v1873, 7
    %v1875 = vsub.s32 %v1872, %v1874
    %v1876 = vrot.slane %v1369, %v1875
    %v1878 = vunpack.c.l.s4 1983009808
    %v1879 = vunpack.c.0.s8 %v1878
    %v1880 = vlaneseq
    %v1881 = vshrl.u32 %v1880, 7
    %v1882 = vsub.s32 %v1879, %v1881
    %v1883 = vrot.slane %v1869, %v1882
    %v1884 = vcombine.high %v1876, %v1876
    %v1885 = vcombine.high %v1883, %v1883
    %v1887 = vunpack.c.l.s4 1983009808
    %v1888 = vunpack.c.0.s8 %v1887
    %v1889 = vlaneseq
    %v1890 = vshrl.u32 %v1889, 7
    %v1891 = vsub.s32 %v1888, %v1890
    %v1892 = vrot.slane %v1388, %v1891
    %v1893 = vcombine.high %v1892, %v1892
    %v1894 = vcombine.high %v1370, %v1370
    %v1896 = vunpack.c.l.s4 1983009808
    %v1897 = vunpack.c.0.s8 %v1896
    %v1898 = vlaneseq
    %v1899 = vshrl.u32 %v1898, 7
    %v1900 = vsub.s32 %v1897, %v1899
    %v1901 = vrot.slane %v1370, %v1900
    %v1903 = vunpack.c.l.s4 1983009808
    %v1904 = vunpack.c.0.s8 %v1903
    %v1905 = vlaneseq
    %v1906 = vshrl.u32 %v1905, 7
    %v1907 = vsub.s32 %v1904, %v1906
    %v1908 = vrot.slane %v1894, %v1907
    %v1909 = vcombine.high %v1901, %v1901
    %v1910 = vcombine.high %v1908, %v1908
    %v1912 = vunpack.c.l.s4 1983009808
    %v1913 = vunpack.c.0.s8 %v1912
    %v1914 = vlaneseq
    %v1915 = vshrl.u32 %v1914, 7
    %v1916 = vsub.s32 %v1913, %v1915
    %v1917 = vrot.slane %v1387, %v1916
    %v1918 = vcombine.high %v1917, %v1917
    %v1919 = vcombine.high %v1371, %v1371
    %v1921 = vunpack.c.l.s4 1983009808
    %v1922 = vunpack.c.0.s8 %v1921
    %v1923 = vlaneseq
    %v1924 = vshrl.u32 %v1923, 7
    %v1925 = vsub.s32 %v1922, %v1924
    %v1926 = vrot.slane %v1371, %v1925
    %v1928 = vunpack.c.l.s4 1983009808
    %v1929 = vunpack.c.0.s8 %v1928
    %v1930 = vlaneseq
    %v1931 = vshrl.u32 %v1930, 7
    %v1932 = vsub.s32 %v1929, %v1931
    %v1933 = vrot.slane %v1919, %v1932
    %v1934 = vcombine.high %v1926, %v1926
    %v1935 = vcombine.high %v1933, %v1933
    %v1937 = vunpack.c.l.s4 1983009808
    %v1938 = vunpack.c.0.s8 %v1937
    %v1939 = vlaneseq
    %v1940 = vshrl.u32 %v1939, 7
    %v1941 = vsub.s32 %v1938, %v1940
    %v1942 = vrot.slane %v1389, %v1941
    %v1943 = vcombine.high %v1942, %v1942
    %v1944 = vcombine.high %v1422, %v1422
    %v1946 = vunpack.c.l.s4 1983009808
    %v1947 = vunpack.c.0.s8 %v1946
    %v1948 = vlaneseq
    %v1949 = vshrl.u32 %v1948, 7
    %v1950 = vsub.s32 %v1947, %v1949
    %v1951 = vrot.slane %v1422, %v1950
    %v1953 = vunpack.c.l.s4 1983009808
    %v1954 = vunpack.c.0.s8 %v1953
    %v1955 = vlaneseq
    %v1956 = vshrl.u32 %v1955, 7
    %v1957 = vsub.s32 %v1954, %v1956
    %v1958 = vrot.slane %v1944, %v1957
    %v1959 = vcombine.high %v1951, %v1951
    %v1960 = vcombine.high %v1958, %v1958
    %v1962 = vunpack.c.l.s4 1983009808
    %v1963 = vunpack.c.0.s8 %v1962
    %v1964 = vlaneseq
    %v1965 = vshrl.u32 %v1964, 7
    %v1966 = vsub.s32 %v1963, %v1965
    %v1967 = vrot.slane %v1434, %v1966
    %v1968 = vcombine.high %v1967, %v1967
    %v1969 = vcombine.high %v1423, %v1423
    %v1971 = vunpack.c.l.s4 1983009808
    %v1972 = vunpack.c.0.s8 %v1971
    %v1973 = vlaneseq
    %v1974 = vshrl.u32 %v1973, 7
    %v1975 = vsub.s32 %v1972, %v1974
    %v1976 = vrot.slane %v1423, %v1975
    %v1978 = vunpack.c.l.s4 1983009808
    %v1979 = vunpack.c.0.s8 %v1978
    %v1980 = vlaneseq
    %v1981 = vshrl.u32 %v1980, 7
    %v1982 = vsub.s32 %v1979, %v1981
    %v1983 = vrot.slane %v1969, %v1982
    %v1984 = vcombine.high %v1976, %v1976
    %v1985 = vcombine.high %v1983, %v1983
    %v1987 = vunpack.c.l.s4 1983009808
    %v1988 = vunpack.c.0.s8 %v1987
    %v1989 = vlaneseq
    %v1990 = vshrl.u32 %v1989, 7
    %v1991 = vsub.s32 %v1988, %v1990
    %v1992 = vrot.slane %v1442, %v1991
    %v1993 = vcombine.high %v1992, %v1992
    %v1994 = vcombine.high %v1424, %v1424
    %v1996 = vunpack.c.l.s4 1983009808
    %v1997 = vunpack.c.0.s8 %v1996
    %v1998 = vlaneseq
    %v1999 = vshrl.u32 %v1998, 7
    %v2000 = vsub.s32 %v1997, %v1999
    %v2001 = vrot.slane %v1424, %v2000
    %v2003 = vunpack.c.l.s4 1983009808
    %v2004 = vunpack.c.0.s8 %v2003
    %v2005 = vlaneseq
    %v2006 = vshrl.u32 %v2005, 7
    %v2007 = vsub.s32 %v2004, %v2006
    %v2008 = vrot.slane %v1994, %v2007
    %v2009 = vcombine.high %v2001, %v2001
    %v2010 = vcombine.high %v2008, %v2008
    %v2012 = vunpack.c.l.s4 1983009808
    %v2013 = vunpack.c.0.s8 %v2012
    %v2014 = vlaneseq
    %v2015 = vshrl.u32 %v2014, 7
    %v2016 = vsub.s32 %v2013, %v2015
    %v2017 = vrot.slane %v1441, %v2016
    %v2018 = vcombine.high %v2017, %v2017
    %v2019 = vcombine.high %v1425, %v1425
    %v2021 = vunpack.c.l.s4 1983009808
    %v2022 = vunpack.c.0.s8 %v2021
    %v2023 = vlaneseq
    %v2024 = vshrl.u32 %v2023, 7
    %v2025 = vsub.s32 %v2022, %v2024
    %v2026 = vrot.slane %v1425, %v2025
    %v2028 = vunpack.c.l.s4 1983009808
    %v2029 = vunpack.c.0.s8 %v2028
    %v2030 = vlaneseq
    %v2031 = vshrl.u32 %v2030, 7
    %v2032 = vsub.s32 %v2029, %v2031
    %v2033 = vrot.slane %v2019, %v2032
    %v2034 = vcombine.high %v2026, %v2026
    %v2035 = vcombine.high %v2033, %v2033
    %v2037 = vunpack.c.l.s4 1983009808
    %v2038 = vunpack.c.0.s8 %v2037
    %v2039 = vlaneseq
    %v2040 = vshrl.u32 %v2039, 7
    %v2041 = vsub.s32 %v2038, %v2040
    %v2042 = vrot.slane %v1443, %v2041
    %v2043 = vcombine.high %v2042, %v2042
    %vm2188 = vcmask 1041408
    %v2189 = vsel %vm2188, %v1451, -inf
    %v2190 = vrot.slane %v2189, 4
    %v2191 = vmax.f32 %v2189, %v2190
    %v2192 = vrot.slane %v2191, 2
    %v2193 = vmax.f32 %v2191, %v2192
    %v2194 = vrot.slane %v2193, 1
    %v2195 = vmax.f32 %v2193, %v2194
    %v2196 = vsel %vm2188, %v1459, -inf
    %v2197 = vrot.slane %v2196, 4
    %v2198 = vmax.f32 %v2196, %v2197
    %v2199 = vrot.slane %v2198, 2
    %v2200 = vmax.f32 %v2198, %v2199
    %v2201 = vrot.slane %v2200, 1
    %v2202 = vmax.f32 %v2200, %v2201
    %v2203 = vsel %vm2188, %v1458, -inf
    %v2204 = vrot.slane %v2203, 4
    %v2205 = vmax.f32 %v2203, %v2204
    %v2206 = vrot.slane %v2205, 2
    %v2207 = vmax.f32 %v2205, %v2206
    %v2208 = vrot.slane %v2207, 1
    %v2209 = vmax.f32 %v2207, %v2208
    %v2210 = vsel %vm2188, %v1460, -inf
    %v2211 = vrot.slane %v2210, 4
    %v2212 = vmax.f32 %v2210, %v2211
    %v2213 = vrot.slane %v2212, 2
    %v2214 = vmax.f32 %v2212, %v2213
    %v2215 = vrot.slane %v2214, 1
    %v2216 = vmax.f32 %v2214, %v2215
    %v2217 = vsel %vm2188, %v1467, -inf
    %v2218 = vrot.slane %v2217, 4
    %v2219 = vmax.f32 %v2217, %v2218
    %v2220 = vrot.slane %v2219, 2
    %v2221 = vmax.f32 %v2219, %v2220
    %v2222 = vrot.slane %v2221, 1
    %v2223 = vmax.f32 %v2221, %v2222
    %v2224 = vsel %vm2188, %v1468, -inf
    %v2225 = vrot.slane %v2224, 4
    %v2226 = vmax.f32 %v2224, %v2225
    %v2227 = vrot.slane %v2226, 2
    %v2228 = vmax.f32 %v2226, %v2227
    %v2229 = vrot.slane %v2228, 1
    %v2230 = vmax.f32 %v2228, %v2229
    %v2231 = vsel %vm2188, %v1476, -inf
    %v2232 = vrot.slane %v2231, 4
    %v2233 = vmax.f32 %v2231, %v2232
    %v2234 = vrot.slane %v2233, 2
    %v2235 = vmax.f32 %v2233, %v2234
    %v2236 = vrot.slane %v2235, 1
    %v2237 = vmax.f32 %v2235, %v2236
    %v2238 = vsel %vm2188, %v1484, -inf
    %v2239 = vrot.slane %v2238, 4
    %v2240 = vmax.f32 %v2238, %v2239
    %v2241 = vrot.slane %v2240, 2
    %v2242 = vmax.f32 %v2240, %v2241
    %v2243 = vrot.slane %v2242, 1
    %v2244 = vmax.f32 %v2242, %v2243
    %v2245 = vsel %vm2188, %v1483, -inf
    %v2246 = vrot.slane %v2245, 4
    %v2247 = vmax.f32 %v2245, %v2246
    %v2248 = vrot.slane %v2247, 2
    %v2249 = vmax.f32 %v2247, %v2248
    %v2250 = vrot.slane %v2249, 1
    %v2251 = vmax.f32 %v2249, %v2250
    %v2252 = vsel %vm2188, %v1485, -inf
    %v2253 = vrot.slane %v2252, 4
    %v2254 = vmax.f32 %v2252, %v2253
    %v2255 = vrot.slane %v2254, 2
    %v2256 = vmax.f32 %v2254, %v2255
    %v2257 = vrot.slane %v2256, 1
    %v2258 = vmax.f32 %v2256, %v2257
    %v2259 = vsel %vm2188, %v1492, -inf
    %v2260 = vrot.slane %v2259, 4
    %v2261 = vmax.f32 %v2259, %v2260
    %v2262 = vrot.slane %v2261, 2
    %v2263 = vmax.f32 %v2261, %v2262
    %v2264 = vrot.slane %v2263, 1
    %v2265 = vmax.f32 %v2263, %v2264
    %v2266 = vsel %vm2188, %v1493, -inf
    %v2267 = vrot.slane %v2266, 4
    %v2268 = vmax.f32 %v2266, %v2267
    %v2269 = vrot.slane %v2268, 2
    %v2270 = vmax.f32 %v2268, %v2269
    %v2271 = vrot.slane %v2270, 1
    %v2272 = vmax.f32 %v2270, %v2271
    %v2273 = vsel %vm2188, %v1501, -inf
    %v2274 = vrot.slane %v2273, 4
    %v2275 = vmax.f32 %v2273, %v2274
    %v2276 = vrot.slane %v2275, 2
    %v2277 = vmax.f32 %v2275, %v2276
    %v2278 = vrot.slane %v2277, 1
    %v2279 = vmax.f32 %v2277, %v2278
    %v2280 = vsel %vm2188, %v1509, -inf
    %v2281 = vrot.slane %v2280, 4
    %v2282 = vmax.f32 %v2280, %v2281
    %v2283 = vrot.slane %v2282, 2
    %v2284 = vmax.f32 %v2282, %v2283
    %v2285 = vrot.slane %v2284, 1
    %v2286 = vmax.f32 %v2284, %v2285
    %v2287 = vsel %vm2188, %v1508, -inf
    %v2288 = vrot.slane %v2287, 4
    %v2289 = vmax.f32 %v2287, %v2288
    %v2290 = vrot.slane %v2289, 2
    %v2291 = vmax.f32 %v2289, %v2290
    %v2292 = vrot.slane %v2291, 1
    %v2293 = vmax.f32 %v2291, %v2292
    %v2294 = vsel %vm2188, %v1510, -inf
    %v2295 = vrot.slane %v2294, 4
    %v2296 = vmax.f32 %v2294, %v2295
    %v2297 = vrot.slane %v2296, 2
    %v2298 = vmax.f32 %v2296, %v2297
    %v2299 = vrot.slane %v2298, 1
    %v2300 = vmax.f32 %v2298, %v2299
    %v2301 = vsel %vm2188, %v1517, -inf
    %v2302 = vrot.slane %v2301, 4
    %v2303 = vmax.f32 %v2301, %v2302
    %v2304 = vrot.slane %v2303, 2
    %v2305 = vmax.f32 %v2303, %v2304
    %v2306 = vrot.slane %v2305, 1
    %v2307 = vmax.f32 %v2305, %v2306
    %v2308 = vsel %vm2188, %v1518, -inf
    %v2309 = vrot.slane %v2308, 4
    %v2310 = vmax.f32 %v2308, %v2309
    %v2311 = vrot.slane %v2310, 2
    %v2312 = vmax.f32 %v2310, %v2311
    %v2313 = vrot.slane %v2312, 1
    %v2314 = vmax.f32 %v2312, %v2313
    %v2315 = vsel %vm2188, %v1526, -inf
    %v2316 = vrot.slane %v2315, 4
    %v2317 = vmax.f32 %v2315, %v2316
    %v2318 = vrot.slane %v2317, 2
    %v2319 = vmax.f32 %v2317, %v2318
    %v2320 = vrot.slane %v2319, 1
    %v2321 = vmax.f32 %v2319, %v2320
    %v2322 = vsel %vm2188, %v1534, -inf
    %v2323 = vrot.slane %v2322, 4
    %v2324 = vmax.f32 %v2322, %v2323
    %v2325 = vrot.slane %v2324, 2
    %v2326 = vmax.f32 %v2324, %v2325
    %v2327 = vrot.slane %v2326, 1
    %v2328 = vmax.f32 %v2326, %v2327
    %v2329 = vsel %vm2188, %v1533, -inf
    %v2330 = vrot.slane %v2329, 4
    %v2331 = vmax.f32 %v2329, %v2330
    %v2332 = vrot.slane %v2331, 2
    %v2333 = vmax.f32 %v2331, %v2332
    %v2334 = vrot.slane %v2333, 1
    %v2335 = vmax.f32 %v2333, %v2334
    %v2336 = vsel %vm2188, %v1535, -inf
    %v2337 = vrot.slane %v2336, 4
    %v2338 = vmax.f32 %v2336, %v2337
    %v2339 = vrot.slane %v2338, 2
    %v2340 = vmax.f32 %v2338, %v2339
    %v2341 = vrot.slane %v2340, 1
    %v2342 = vmax.f32 %v2340, %v2341
    %v2343 = vsel %vm2188, %v1542, -inf
    %v2344 = vrot.slane %v2343, 4
    %v2345 = vmax.f32 %v2343, %v2344
    %v2346 = vrot.slane %v2345, 2
    %v2347 = vmax.f32 %v2345, %v2346
    %v2348 = vrot.slane %v2347, 1
    %v2349 = vmax.f32 %v2347, %v2348
    %v2350 = vsel %vm2188, %v1543, -inf
    %v2351 = vrot.slane %v2350, 4
    %v2352 = vmax.f32 %v2350, %v2351
    %v2353 = vrot.slane %v2352, 2
    %v2354 = vmax.f32 %v2352, %v2353
    %v2355 = vrot.slane %v2354, 1
    %v2356 = vmax.f32 %v2354, %v2355
    %v2357 = vsel %vm2188, %v1551, -inf
    %v2358 = vrot.slane %v2357, 4
    %v2359 = vmax.f32 %v2357, %v2358
    %v2360 = vrot.slane %v2359, 2
    %v2361 = vmax.f32 %v2359, %v2360
    %v2362 = vrot.slane %v2361, 1
    %v2363 = vmax.f32 %v2361, %v2362
    %v2364 = vsel %vm2188, %v1559, -inf
    %v2365 = vrot.slane %v2364, 4
    %v2366 = vmax.f32 %v2364, %v2365
    %v2367 = vrot.slane %v2366, 2
    %v2368 = vmax.f32 %v2366, %v2367
    %v2369 = vrot.slane %v2368, 1
    %v2370 = vmax.f32 %v2368, %v2369
    %v2371 = vsel %vm2188, %v1558, -inf
    %v2372 = vrot.slane %v2371, 4
    %v2373 = vmax.f32 %v2371, %v2372
    %v2374 = vrot.slane %v2373, 2
    %v2375 = vmax.f32 %v2373, %v2374
    %v2376 = vrot.slane %v2375, 1
    %v2377 = vmax.f32 %v2375, %v2376
    %v2378 = vsel %vm2188, %v1560, -inf
    %v2379 = vrot.slane %v2378, 4
    %v2380 = vmax.f32 %v2378, %v2379
    %v2381 = vrot.slane %v2380, 2
    %v2382 = vmax.f32 %v2380, %v2381
    %v2383 = vrot.slane %v2382, 1
    %v2384 = vmax.f32 %v2382, %v2383
    %v2385 = vsel %vm2188, %v1567, -inf
    %v2386 = vrot.slane %v2385, 4
    %v2387 = vmax.f32 %v2385, %v2386
    %v2388 = vrot.slane %v2387, 2
    %v2389 = vmax.f32 %v2387, %v2388
    %v2390 = vrot.slane %v2389, 1
    %v2391 = vmax.f32 %v2389, %v2390
    %v2392 = vsel %vm2188, %v1568, -inf
    %v2393 = vrot.slane %v2392, 4
    %v2394 = vmax.f32 %v2392, %v2393
    %v2395 = vrot.slane %v2394, 2
    %v2396 = vmax.f32 %v2394, %v2395
    %v2397 = vrot.slane %v2396, 1
    %v2398 = vmax.f32 %v2396, %v2397
    %v2399 = vsel %vm2188, %v1576, -inf
    %v2400 = vrot.slane %v2399, 4
    %v2401 = vmax.f32 %v2399, %v2400
    %v2402 = vrot.slane %v2401, 2
    %v2403 = vmax.f32 %v2401, %v2402
    %v2404 = vrot.slane %v2403, 1
    %v2405 = vmax.f32 %v2403, %v2404
    %v2406 = vsel %vm2188, %v1584, -inf
    %v2407 = vrot.slane %v2406, 4
    %v2408 = vmax.f32 %v2406, %v2407
    %v2409 = vrot.slane %v2408, 2
    %v2410 = vmax.f32 %v2408, %v2409
    %v2411 = vrot.slane %v2410, 1
    %v2412 = vmax.f32 %v2410, %v2411
    %v2413 = vsel %vm2188, %v1583, -inf
    %v2414 = vrot.slane %v2413, 4
    %v2415 = vmax.f32 %v2413, %v2414
    %v2416 = vrot.slane %v2415, 2
    %v2417 = vmax.f32 %v2415, %v2416
    %v2418 = vrot.slane %v2417, 1
    %v2419 = vmax.f32 %v2417, %v2418
    %v2420 = vsel %vm2188, %v1585, -inf
    %v2421 = vrot.slane %v2420, 4
    %v2422 = vmax.f32 %v2420, %v2421
    %v2423 = vrot.slane %v2422, 2
    %v2424 = vmax.f32 %v2422, %v2423
    %v2425 = vrot.slane %v2424, 1
    %v2426 = vmax.f32 %v2424, %v2425
    %v2427 = vsel %vm2188, %v1592, -inf
    %v2428 = vrot.slane %v2427, 4
    %v2429 = vmax.f32 %v2427, %v2428
    %v2430 = vrot.slane %v2429, 2
    %v2431 = vmax.f32 %v2429, %v2430
    %v2432 = vrot.slane %v2431, 1
    %v2433 = vmax.f32 %v2431, %v2432
    %v2434 = vsel %vm2188, %v1593, -inf
    %v2435 = vrot.slane %v2434, 4
    %v2436 = vmax.f32 %v2434, %v2435
    %v2437 = vrot.slane %v2436, 2
    %v2438 = vmax.f32 %v2436, %v2437
    %v2439 = vrot.slane %v2438, 1
    %v2440 = vmax.f32 %v2438, %v2439
    %v2441 = vsel %vm2188, %v1601, -inf
    %v2442 = vrot.slane %v2441, 4
    %v2443 = vmax.f32 %v2441, %v2442
    %v2444 = vrot.slane %v2443, 2
    %v2445 = vmax.f32 %v2443, %v2444
    %v2446 = vrot.slane %v2445, 1
    %v2447 = vmax.f32 %v2445, %v2446
    %v2448 = vsel %vm2188, %v1609, -inf
    %v2449 = vrot.slane %v2448, 4
    %v2450 = vmax.f32 %v2448, %v2449
    %v2451 = vrot.slane %v2450, 2
    %v2452 = vmax.f32 %v2450, %v2451
    %v2453 = vrot.slane %v2452, 1
    %v2454 = vmax.f32 %v2452, %v2453
    %v2455 = vsel %vm2188, %v1608, -inf
    %v2456 = vrot.slane %v2455, 4
    %v2457 = vmax.f32 %v2455, %v2456
    %v2458 = vrot.slane %v2457, 2
    %v2459 = vmax.f32 %v2457, %v2458
    %v2460 = vrot.slane %v2459, 1
    %v2461 = vmax.f32 %v2459, %v2460
    %v2462 = vsel %vm2188, %v1610, -inf
    %v2463 = vrot.slane %v2462, 4
    %v2464 = vmax.f32 %v2462, %v2463
    %v2465 = vrot.slane %v2464, 2
    %v2466 = vmax.f32 %v2464, %v2465
    %v2467 = vrot.slane %v2466, 1
    %v2468 = vmax.f32 %v2466, %v2467
    %v2469 = vsel %vm2188, %v1617, -inf
    %v2470 = vrot.slane %v2469, 4
    %v2471 = vmax.f32 %v2469, %v2470
    %v2472 = vrot.slane %v2471, 2
    %v2473 = vmax.f32 %v2471, %v2472
    %v2474 = vrot.slane %v2473, 1
    %v2475 = vmax.f32 %v2473, %v2474
    %v2476 = vsel %vm2188, %v1618, -inf
    %v2477 = vrot.slane %v2476, 4
    %v2478 = vmax.f32 %v2476, %v2477
    %v2479 = vrot.slane %v2478, 2
    %v2480 = vmax.f32 %v2478, %v2479
    %v2481 = vrot.slane %v2480, 1
    %v2482 = vmax.f32 %v2480, %v2481
    %v2483 = vsel %vm2188, %v1626, -inf
    %v2484 = vrot.slane %v2483, 4
    %v2485 = vmax.f32 %v2483, %v2484
    %v2486 = vrot.slane %v2485, 2
    %v2487 = vmax.f32 %v2485, %v2486
    %v2488 = vrot.slane %v2487, 1
    %v2489 = vmax.f32 %v2487, %v2488
    %v2490 = vsel %vm2188, %v1634, -inf
    %v2491 = vrot.slane %v2490, 4
    %v2492 = vmax.f32 %v2490, %v2491
    %v2493 = vrot.slane %v2492, 2
    %v2494 = vmax.f32 %v2492, %v2493
    %v2495 = vrot.slane %v2494, 1
    %v2496 = vmax.f32 %v2494, %v2495
    %v2497 = vsel %vm2188, %v1633, -inf
    %v2498 = vrot.slane %v2497, 4
    %v2499 = vmax.f32 %v2497, %v2498
    %v2500 = vrot.slane %v2499, 2
    %v2501 = vmax.f32 %v2499, %v2500
    %v2502 = vrot.slane %v2501, 1
    %v2503 = vmax.f32 %v2501, %v2502
    %v2504 = vsel %vm2188, %v1635, -inf
    %v2505 = vrot.slane %v2504, 4
    %v2506 = vmax.f32 %v2504, %v2505
    %v2507 = vrot.slane %v2506, 2
    %v2508 = vmax.f32 %v2506, %v2507
    %v2509 = vrot.slane %v2508, 1
    %v2510 = vmax.f32 %v2508, %v2509
    %v2511 = vsel %vm2188, %v1642, -inf
    %v2512 = vrot.slane %v2511, 4
    %v2513 = vmax.f32 %v2511, %v2512
    %v2514 = vrot.slane %v2513, 2
    %v2515 = vmax.f32 %v2513, %v2514
    %v2516 = vrot.slane %v2515, 1
    %v2517 = vmax.f32 %v2515, %v2516
    %v2518 = vsel %vm2188, %v1643, -inf
    %v2519 = vrot.slane %v2518, 4
    %v2520 = vmax.f32 %v2518, %v2519
    %v2521 = vrot.slane %v2520, 2
    %v2522 = vmax.f32 %v2520, %v2521
    %v2523 = vrot.slane %v2522, 1
    %v2524 = vmax.f32 %v2522, %v2523
    %v2525 = vsel %vm2188, %v1651, -inf
    %v2526 = vrot.slane %v2525, 4
    %v2527 = vmax.f32 %v2525, %v2526
    %v2528 = vrot.slane %v2527, 2
    %v2529 = vmax.f32 %v2527, %v2528
    %v2530 = vrot.slane %v2529, 1
    %v2531 = vmax.f32 %v2529, %v2530
    %v2532 = vsel %vm2188, %v1659, -inf
    %v2533 = vrot.slane %v2532, 4
    %v2534 = vmax.f32 %v2532, %v2533
    %v2535 = vrot.slane %v2534, 2
    %v2536 = vmax.f32 %v2534, %v2535
    %v2537 = vrot.slane %v2536, 1
    %v2538 = vmax.f32 %v2536, %v2537
    %v2539 = vsel %vm2188, %v1658, -inf
    %v2540 = vrot.slane %v2539, 4
    %v2541 = vmax.f32 %v2539, %v2540
    %v2542 = vrot.slane %v2541, 2
    %v2543 = vmax.f32 %v2541, %v2542
    %v2544 = vrot.slane %v2543, 1
    %v2545 = vmax.f32 %v2543, %v2544
    %v2546 = vsel %vm2188, %v1660, -inf
    %v2547 = vrot.slane %v2546, 4
    %v2548 = vmax.f32 %v2546, %v2547
    %v2549 = vrot.slane %v2548, 2
    %v2550 = vmax.f32 %v2548, %v2549
    %v2551 = vrot.slane %v2550, 1
    %v2552 = vmax.f32 %v2550, %v2551
    %v2553 = vsel %vm2188, %v1667, -inf
    %v2554 = vrot.slane %v2553, 4
    %v2555 = vmax.f32 %v2553, %v2554
    %v2556 = vrot.slane %v2555, 2
    %v2557 = vmax.f32 %v2555, %v2556
    %v2558 = vrot.slane %v2557, 1
    %v2559 = vmax.f32 %v2557, %v2558
    %v2560 = vsel %vm2188, %v1668, -inf
    %v2561 = vrot.slane %v2560, 4
    %v2562 = vmax.f32 %v2560, %v2561
    %v2563 = vrot.slane %v2562, 2
    %v2564 = vmax.f32 %v2562, %v2563
    %v2565 = vrot.slane %v2564, 1
    %v2566 = vmax.f32 %v2564, %v2565
    %v2567 = vsel %vm2188, %v1676, -inf
    %v2568 = vrot.slane %v2567, 4
    %v2569 = vmax.f32 %v2567, %v2568
    %v2570 = vrot.slane %v2569, 2
    %v2571 = vmax.f32 %v2569, %v2570
    %v2572 = vrot.slane %v2571, 1
    %v2573 = vmax.f32 %v2571, %v2572
    %v2574 = vsel %vm2188, %v1684, -inf
    %v2575 = vrot.slane %v2574, 4
    %v2576 = vmax.f32 %v2574, %v2575
    %v2577 = vrot.slane %v2576, 2
    %v2578 = vmax.f32 %v2576, %v2577
    %v2579 = vrot.slane %v2578, 1
    %v2580 = vmax.f32 %v2578, %v2579
    %v2581 = vsel %vm2188, %v1683, -inf
    %v2582 = vrot.slane %v2581, 4
    %v2583 = vmax.f32 %v2581, %v2582
    %v2584 = vrot.slane %v2583, 2
    %v2585 = vmax.f32 %v2583, %v2584
    %v2586 = vrot.slane %v2585, 1
    %v2587 = vmax.f32 %v2585, %v2586
    %v2588 = vsel %vm2188, %v1685, -inf
    %v2589 = vrot.slane %v2588, 4
    %v2590 = vmax.f32 %v2588, %v2589
    %v2591 = vrot.slane %v2590, 2
    %v2592 = vmax.f32 %v2590, %v2591
    %v2593 = vrot.slane %v2592, 1
    %v2594 = vmax.f32 %v2592, %v2593
    %v2595 = vsel %vm2188, %v1692, -inf
    %v2596 = vrot.slane %v2595, 4
    %v2597 = vmax.f32 %v2595, %v2596
    %v2598 = vrot.slane %v2597, 2
    %v2599 = vmax.f32 %v2597, %v2598
    %v2600 = vrot.slane %v2599, 1
    %v2601 = vmax.f32 %v2599, %v2600
    %v2602 = vsel %vm2188, %v1693, -inf
    %v2603 = vrot.slane %v2602, 4
    %v2604 = vmax.f32 %v2602, %v2603
    %v2605 = vrot.slane %v2604, 2
    %v2606 = vmax.f32 %v2604, %v2605
    %v2607 = vrot.slane %v2606, 1
    %v2608 = vmax.f32 %v2606, %v2607
    %v2609 = vsel %vm2188, %v1701, -inf
    %v2610 = vrot.slane %v2609, 4
    %v2611 = vmax.f32 %v2609, %v2610
    %v2612 = vrot.slane %v2611, 2
    %v2613 = vmax.f32 %v2611, %v2612
    %v2614 = vrot.slane %v2613, 1
    %v2615 = vmax.f32 %v2613, %v2614
    %v2616 = vsel %vm2188, %v1709, -inf
    %v2617 = vrot.slane %v2616, 4
    %v2618 = vmax.f32 %v2616, %v2617
    %v2619 = vrot.slane %v2618, 2
    %v2620 = vmax.f32 %v2618, %v2619
    %v2621 = vrot.slane %v2620, 1
    %v2622 = vmax.f32 %v2620, %v2621
    %v2623 = vsel %vm2188, %v1708, -inf
    %v2624 = vrot.slane %v2623, 4
    %v2625 = vmax.f32 %v2623, %v2624
    %v2626 = vrot.slane %v2625, 2
    %v2627 = vmax.f32 %v2625, %v2626
    %v2628 = vrot.slane %v2627, 1
    %v2629 = vmax.f32 %v2627, %v2628
    %v2630 = vsel %vm2188, %v1710, -inf
    %v2631 = vrot.slane %v2630, 4
    %v2632 = vmax.f32 %v2630, %v2631
    %v2633 = vrot.slane %v2632, 2
    %v2634 = vmax.f32 %v2632, %v2633
    %v2635 = vrot.slane %v2634, 1
    %v2636 = vmax.f32 %v2634, %v2635
    %v2637 = vsel %vm2188, %v1717, -inf
    %v2638 = vrot.slane %v2637, 4
    %v2639 = vmax.f32 %v2637, %v2638
    %v2640 = vrot.slane %v2639, 2
    %v2641 = vmax.f32 %v2639, %v2640
    %v2642 = vrot.slane %v2641, 1
    %v2643 = vmax.f32 %v2641, %v2642
    %v2644 = vsel %vm2188, %v1718, -inf
    %v2645 = vrot.slane %v2644, 4
    %v2646 = vmax.f32 %v2644, %v2645
    %v2647 = vrot.slane %v2646, 2
    %v2648 = vmax.f32 %v2646, %v2647
    %v2649 = vrot.slane %v2648, 1
    %v2650 = vmax.f32 %v2648, %v2649
    %v2651 = vsel %vm2188, %v1726, -inf
    %v2652 = vrot.slane %v2651, 4
    %v2653 = vmax.f32 %v2651, %v2652
    %v2654 = vrot.slane %v2653, 2
    %v2655 = vmax.f32 %v2653, %v2654
    %v2656 = vrot.slane %v2655, 1
    %v2657 = vmax.f32 %v2655, %v2656
    %v2658 = vsel %vm2188, %v1734, -inf
    %v2659 = vrot.slane %v2658, 4
    %v2660 = vmax.f32 %v2658, %v2659
    %v2661 = vrot.slane %v2660, 2
    %v2662 = vmax.f32 %v2660, %v2661
    %v2663 = vrot.slane %v2662, 1
    %v2664 = vmax.f32 %v2662, %v2663
    %v2665 = vsel %vm2188, %v1733, -inf
    %v2666 = vrot.slane %v2665, 4
    %v2667 = vmax.f32 %v2665, %v2666
    %v2668 = vrot.slane %v2667, 2
    %v2669 = vmax.f32 %v2667, %v2668
    %v2670 = vrot.slane %v2669, 1
    %v2671 = vmax.f32 %v2669, %v2670
    %v2672 = vsel %vm2188, %v1735, -inf
    %v2673 = vrot.slane %v2672, 4
    %v2674 = vmax.f32 %v2672, %v2673
    %v2675 = vrot.slane %v2674, 2
    %v2676 = vmax.f32 %v2674, %v2675
    %v2677 = vrot.slane %v2676, 1
    %v2678 = vmax.f32 %v2676, %v2677
    %v2679 = vsel %vm2188, %v1742, -inf
    %v2680 = vrot.slane %v2679, 4
    %v2681 = vmax.f32 %v2679, %v2680
    %v2682 = vrot.slane %v2681, 2
    %v2683 = vmax.f32 %v2681, %v2682
    %v2684 = vrot.slane %v2683, 1
    %v2685 = vmax.f32 %v2683, %v2684
    %v2686 = vsel %vm2188, %v1743, -inf
    %v2687 = vrot.slane %v2686, 4
    %v2688 = vmax.f32 %v2686, %v2687
    %v2689 = vrot.slane %v2688, 2
    %v2690 = vmax.f32 %v2688, %v2689
    %v2691 = vrot.slane %v2690, 1
    %v2692 = vmax.f32 %v2690, %v2691
    %v2693 = vsel %vm2188, %v1751, -inf
    %v2694 = vrot.slane %v2693, 4
    %v2695 = vmax.f32 %v2693, %v2694
    %v2696 = vrot.slane %v2695, 2
    %v2697 = vmax.f32 %v2695, %v2696
    %v2698 = vrot.slane %v2697, 1
    %v2699 = vmax.f32 %v2697, %v2698
    %v2700 = vsel %vm2188, %v1759, -inf
    %v2701 = vrot.slane %v2700, 4
    %v2702 = vmax.f32 %v2700, %v2701
    %v2703 = vrot.slane %v2702, 2
    %v2704 = vmax.f32 %v2702, %v2703
    %v2705 = vrot.slane %v2704, 1
    %v2706 = vmax.f32 %v2704, %v2705
    %v2707 = vsel %vm2188, %v1758, -inf
    %v2708 = vrot.slane %v2707, 4
    %v2709 = vmax.f32 %v2707, %v2708
    %v2710 = vrot.slane %v2709, 2
    %v2711 = vmax.f32 %v2709, %v2710
    %v2712 = vrot.slane %v2711, 1
    %v2713 = vmax.f32 %v2711, %v2712
    %v2714 = vsel %vm2188, %v1760, -inf
    %v2715 = vrot.slane %v2714, 4
    %v2716 = vmax.f32 %v2714, %v2715
    %v2717 = vrot.slane %v2716, 2
    %v2718 = vmax.f32 %v2716, %v2717
    %v2719 = vrot.slane %v2718, 1
    %v2720 = vmax.f32 %v2718, %v2719
    %v2721 = vsel %vm2188, %v1767, -inf
    %v2722 = vrot.slane %v2721, 4
    %v2723 = vmax.f32 %v2721, %v2722
    %v2724 = vrot.slane %v2723, 2
    %v2725 = vmax.f32 %v2723, %v2724
    %v2726 = vrot.slane %v2725, 1
    %v2727 = vmax.f32 %v2725, %v2726
    %v2728 = vsel %vm2188, %v1768, -inf
    %v2729 = vrot.slane %v2728, 4
    %v2730 = vmax.f32 %v2728, %v2729
    %v2731 = vrot.slane %v2730, 2
    %v2732 = vmax.f32 %v2730, %v2731
    %v2733 = vrot.slane %v2732, 1
    %v2734 = vmax.f32 %v2732, %v2733
    %v2735 = vsel %vm2188, %v1776, -inf
    %v2736 = vrot.slane %v2735, 4
    %v2737 = vmax.f32 %v2735, %v2736
    %v2738 = vrot.slane %v2737, 2
    %v2739 = vmax.f32 %v2737, %v2738
    %v2740 = vrot.slane %v2739, 1
    %v2741 = vmax.f32 %v2739, %v2740
    %v2742 = vsel %vm2188, %v1784, -inf
    %v2743 = vrot.slane %v2742, 4
    %v2744 = vmax.f32 %v2742, %v2743
    %v2745 = vrot.slane %v2744, 2
    %v2746 = vmax.f32 %v2744, %v2745
    %v2747 = vrot.slane %v2746, 1
    %v2748 = vmax.f32 %v2746, %v2747
    %v2749 = vsel %vm2188, %v1783, -inf
    %v2750 = vrot.slane %v2749, 4
    %v2751 = vmax.f32 %v2749, %v2750
    %v2752 = vrot.slane %v2751, 2
    %v2753 = vmax.f32 %v2751, %v2752
    %v2754 = vrot.slane %v2753, 1
    %v2755 = vmax.f32 %v2753, %v2754
    %v2756 = vsel %vm2188, %v1785, -inf
    %v2757 = vrot.slane %v2756, 4
    %v2758 = vmax.f32 %v2756, %v2757
    %v2759 = vrot.slane %v2758, 2
    %v2760 = vmax.f32 %v2758, %v2759
    %v2761 = vrot.slane %v2760, 1
    %v2762 = vmax.f32 %v2760, %v2761
    %v2763 = vsel %vm2188, %v1792, -inf
    %v2764 = vrot.slane %v2763, 4
    %v2765 = vmax.f32 %v2763, %v2764
    %v2766 = vrot.slane %v2765, 2
    %v2767 = vmax.f32 %v2765, %v2766
    %v2768 = vrot.slane %v2767, 1
    %v2769 = vmax.f32 %v2767, %v2768
    %v2770 = vsel %vm2188, %v1793, -inf
    %v2771 = vrot.slane %v2770, 4
    %v2772 = vmax.f32 %v2770, %v2771
    %v2773 = vrot.slane %v2772, 2
    %v2774 = vmax.f32 %v2772, %v2773
    %v2775 = vrot.slane %v2774, 1
    %v2776 = vmax.f32 %v2774, %v2775
    %v2777 = vsel %vm2188, %v1801, -inf
    %v2778 = vrot.slane %v2777, 4
    %v2779 = vmax.f32 %v2777, %v2778
    %v2780 = vrot.slane %v2779, 2
    %v2781 = vmax.f32 %v2779, %v2780
    %v2782 = vrot.slane %v2781, 1
    %v2783 = vmax.f32 %v2781, %v2782
    %v2784 = vsel %vm2188, %v1809, -inf
    %v2785 = vrot.slane %v2784, 4
    %v2786 = vmax.f32 %v2784, %v2785
    %v2787 = vrot.slane %v2786, 2
    %v2788 = vmax.f32 %v2786, %v2787
    %v2789 = vrot.slane %v2788, 1
    %v2790 = vmax.f32 %v2788, %v2789
    %v2791 = vsel %vm2188, %v1808, -inf
    %v2792 = vrot.slane %v2791, 4
    %v2793 = vmax.f32 %v2791, %v2792
    %v2794 = vrot.slane %v2793, 2
    %v2795 = vmax.f32 %v2793, %v2794
    %v2796 = vrot.slane %v2795, 1
    %v2797 = vmax.f32 %v2795, %v2796
    %v2798 = vsel %vm2188, %v1810, -inf
    %v2799 = vrot.slane %v2798, 4
    %v2800 = vmax.f32 %v2798, %v2799
    %v2801 = vrot.slane %v2800, 2
    %v2802 = vmax.f32 %v2800, %v2801
    %v2803 = vrot.slane %v2802, 1
    %v2804 = vmax.f32 %v2802, %v2803
    %v2805 = vsel %vm2188, %v1817, -inf
    %v2806 = vrot.slane %v2805, 4
    %v2807 = vmax.f32 %v2805, %v2806
    %v2808 = vrot.slane %v2807, 2
    %v2809 = vmax.f32 %v2807, %v2808
    %v2810 = vrot.slane %v2809, 1
    %v2811 = vmax.f32 %v2809, %v2810
    %v2812 = vsel %vm2188, %v1818, -inf
    %v2813 = vrot.slane %v2812, 4
    %v2814 = vmax.f32 %v2812, %v2813
    %v2815 = vrot.slane %v2814, 2
    %v2816 = vmax.f32 %v2814, %v2815
    %v2817 = vrot.slane %v2816, 1
    %v2818 = vmax.f32 %v2816, %v2817
    %v2819 = vsel %vm2188, %v1826, -inf
    %v2820 = vrot.slane %v2819, 4
    %v2821 = vmax.f32 %v2819, %v2820
    %v2822 = vrot.slane %v2821, 2
    %v2823 = vmax.f32 %v2821, %v2822
    %v2824 = vrot.slane %v2823, 1
    %v2825 = vmax.f32 %v2823, %v2824
    %v2826 = vsel %vm2188, %v1834, -inf
    %v2827 = vrot.slane %v2826, 4
    %v2828 = vmax.f32 %v2826, %v2827
    %v2829 = vrot.slane %v2828, 2
    %v2830 = vmax.f32 %v2828, %v2829
    %v2831 = vrot.slane %v2830, 1
    %v2832 = vmax.f32 %v2830, %v2831
    %v2833 = vsel %vm2188, %v1833, -inf
    %v2834 = vrot.slane %v2833, 4
    %v2835 = vmax.f32 %v2833, %v2834
    %v2836 = vrot.slane %v2835, 2
    %v2837 = vmax.f32 %v2835, %v2836
    %v2838 = vrot.slane %v2837, 1
    %v2839 = vmax.f32 %v2837, %v2838
    %v2840 = vsel %vm2188, %v1835, -inf
    %v2841 = vrot.slane %v2840, 4
    %v2842 = vmax.f32 %v2840, %v2841
    %v2843 = vrot.slane %v2842, 2
    %v2844 = vmax.f32 %v2842, %v2843
    %v2845 = vrot.slane %v2844, 1
    %v2846 = vmax.f32 %v2844, %v2845
    %v2847 = vsel %vm2188, %v1842, -inf
    %v2848 = vrot.slane %v2847, 4
    %v2849 = vmax.f32 %v2847, %v2848
    %v2850 = vrot.slane %v2849, 2
    %v2851 = vmax.f32 %v2849, %v2850
    %v2852 = vrot.slane %v2851, 1
    %v2853 = vmax.f32 %v2851, %v2852
    %v2854 = vsel %vm2188, %v1843, -inf
    %v2855 = vrot.slane %v2854, 4
    %v2856 = vmax.f32 %v2854, %v2855
    %v2857 = vrot.slane %v2856, 2
    %v2858 = vmax.f32 %v2856, %v2857
    %v2859 = vrot.slane %v2858, 1
    %v2860 = vmax.f32 %v2858, %v2859
    %v2861 = vsel %vm2188, %v1851, -inf
    %v2862 = vrot.slane %v2861, 4
    %v2863 = vmax.f32 %v2861, %v2862
    %v2864 = vrot.slane %v2863, 2
    %v2865 = vmax.f32 %v2863, %v2864
    %v2866 = vrot.slane %v2865, 1
    %v2867 = vmax.f32 %v2865, %v2866
    %v2868 = vsel %vm2188, %v1859, -inf
    %v2869 = vrot.slane %v2868, 4
    %v2870 = vmax.f32 %v2868, %v2869
    %v2871 = vrot.slane %v2870, 2
    %v2872 = vmax.f32 %v2870, %v2871
    %v2873 = vrot.slane %v2872, 1
    %v2874 = vmax.f32 %v2872, %v2873
    %v2875 = vsel %vm2188, %v1858, -inf
    %v2876 = vrot.slane %v2875, 4
    %v2877 = vmax.f32 %v2875, %v2876
    %v2878 = vrot.slane %v2877, 2
    %v2879 = vmax.f32 %v2877, %v2878
    %v2880 = vrot.slane %v2879, 1
    %v2881 = vmax.f32 %v2879, %v2880
    %v2882 = vsel %vm2188, %v1860, -inf
    %v2883 = vrot.slane %v2882, 4
    %v2884 = vmax.f32 %v2882, %v2883
    %v2885 = vrot.slane %v2884, 2
    %v2886 = vmax.f32 %v2884, %v2885
    %v2887 = vrot.slane %v2886, 1
    %v2888 = vmax.f32 %v2886, %v2887
    %v2889 = vsel %vm2188, %v1867, -inf
    %v2890 = vrot.slane %v2889, 4
    %v2891 = vmax.f32 %v2889, %v2890
    %v2892 = vrot.slane %v2891, 2
    %v2893 = vmax.f32 %v2891, %v2892
    %v2894 = vrot.slane %v2893, 1
    %v2895 = vmax.f32 %v2893, %v2894
    %v2896 = vsel %vm2188, %v1868, -inf
    %v2897 = vrot.slane %v2896, 4
    %v2898 = vmax.f32 %v2896, %v2897
    %v2899 = vrot.slane %v2898, 2
    %v2900 = vmax.f32 %v2898, %v2899
    %v2901 = vrot.slane %v2900, 1
    %v2902 = vmax.f32 %v2900, %v2901
    %v2903 = vsel %vm2188, %v1876, -inf
    %v2904 = vrot.slane %v2903, 4
    %v2905 = vmax.f32 %v2903, %v2904
    %v2906 = vrot.slane %v2905, 2
    %v2907 = vmax.f32 %v2905, %v2906
    %v2908 = vrot.slane %v2907, 1
    %v2909 = vmax.f32 %v2907, %v2908
    %v2910 = vsel %vm2188, %v1884, -inf
    %v2911 = vrot.slane %v2910, 4
    %v2912 = vmax.f32 %v2910, %v2911
    %v2913 = vrot.slane %v2912, 2
    %v2914 = vmax.f32 %v2912, %v2913
    %v2915 = vrot.slane %v2914, 1
    %v2916 = vmax.f32 %v2914, %v2915
    %v2917 = vsel %vm2188, %v1883, -inf
    %v2918 = vrot.slane %v2917, 4
    %v2919 = vmax.f32 %v2917, %v2918
    %v2920 = vrot.slane %v2919, 2
    %v2921 = vmax.f32 %v2919, %v2920
    %v2922 = vrot.slane %v2921, 1
    %v2923 = vmax.f32 %v2921, %v2922
    %v2924 = vsel %vm2188, %v1885, -inf
    %v2925 = vrot.slane %v2924, 4
    %v2926 = vmax.f32 %v2924, %v2925
    %v2927 = vrot.slane %v2926, 2
    %v2928 = vmax.f32 %v2926, %v2927
    %v2929 = vrot.slane %v2928, 1
    %v2930 = vmax.f32 %v2928, %v2929
    %v2931 = vsel %vm2188, %v1892, -inf
    %v2932 = vrot.slane %v2931, 4
    %v2933 = vmax.f32 %v2931, %v2932
    %v2934 = vrot.slane %v2933, 2
    %v2935 = vmax.f32 %v2933, %v2934
    %v2936 = vrot.slane %v2935, 1
    %v2937 = vmax.f32 %v2935, %v2936
    %v2938 = vsel %vm2188, %v1893, -inf
    %v2939 = vrot.slane %v2938, 4
    %v2940 = vmax.f32 %v2938, %v2939
    %v2941 = vrot.slane %v2940, 2
    %v2942 = vmax.f32 %v2940, %v2941
    %v2943 = vrot.slane %v2942, 1
    %v2944 = vmax.f32 %v2942, %v2943
    %v2945 = vsel %vm2188, %v1901, -inf
    %v2946 = vrot.slane %v2945, 4
    %v2947 = vmax.f32 %v2945, %v2946
    %v2948 = vrot.slane %v2947, 2
    %v2949 = vmax.f32 %v2947, %v2948
    %v2950 = vrot.slane %v2949, 1
    %v2951 = vmax.f32 %v2949, %v2950
    %v2952 = vsel %vm2188, %v1909, -inf
    %v2953 = vrot.slane %v2952, 4
    %v2954 = vmax.f32 %v2952, %v2953
    %v2955 = vrot.slane %v2954, 2
    %v2956 = vmax.f32 %v2954, %v2955
    %v2957 = vrot.slane %v2956, 1
    %v2958 = vmax.f32 %v2956, %v2957
    %v2959 = vsel %vm2188, %v1908, -inf
    %v2960 = vrot.slane %v2959, 4
    %v2961 = vmax.f32 %v2959, %v2960
    %v2962 = vrot.slane %v2961, 2
    %v2963 = vmax.f32 %v2961, %v2962
    %v2964 = vrot.slane %v2963, 1
    %v2965 = vmax.f32 %v2963, %v2964
    %v2966 = vsel %vm2188, %v1910, -inf
    %v2967 = vrot.slane %v2966, 4
    %v2968 = vmax.f32 %v2966, %v2967
    %v2969 = vrot.slane %v2968, 2
    %v2970 = vmax.f32 %v2968, %v2969
    %v2971 = vrot.slane %v2970, 1
    %v2972 = vmax.f32 %v2970, %v2971
    %v2973 = vsel %vm2188, %v1917, -inf
    %v2974 = vrot.slane %v2973, 4
    %v2975 = vmax.f32 %v2973, %v2974
    %v2976 = vrot.slane %v2975, 2
    %v2977 = vmax.f32 %v2975, %v2976
    %v2978 = vrot.slane %v2977, 1
    %v2979 = vmax.f32 %v2977, %v2978
    %v2980 = vsel %vm2188, %v1918, -inf
    %v2981 = vrot.slane %v2980, 4
    %v2982 = vmax.f32 %v2980, %v2981
    %v2983 = vrot.slane %v2982, 2
    %v2984 = vmax.f32 %v2982, %v2983
    %v2985 = vrot.slane %v2984, 1
    %v2986 = vmax.f32 %v2984, %v2985
    %v2987 = vsel %vm2188, %v1926, -inf
    %v2988 = vrot.slane %v2987, 4
    %v2989 = vmax.f32 %v2987, %v2988
    %v2990 = vrot.slane %v2989, 2
    %v2991 = vmax.f32 %v2989, %v2990
    %v2992 = vrot.slane %v2991, 1
    %v2993 = vmax.f32 %v2991, %v2992
    %v2994 = vsel %vm2188, %v1934, -inf
    %v2995 = vrot.slane %v2994, 4
    %v2996 = vmax.f32 %v2994, %v2995
    %v2997 = vrot.slane %v2996, 2
    %v2998 = vmax.f32 %v2996, %v2997
    %v2999 = vrot.slane %v2998, 1
    %v3000 = vmax.f32 %v2998, %v2999
    %v3001 = vsel %vm2188, %v1933, -inf
    %v3002 = vrot.slane %v3001, 4
    %v3003 = vmax.f32 %v3001, %v3002
    %v3004 = vrot.slane %v3003, 2
    %v3005 = vmax.f32 %v3003, %v3004
    %v3006 = vrot.slane %v3005, 1
    %v3007 = vmax.f32 %v3005, %v3006
    %v3008 = vsel %vm2188, %v1935, -inf
    %v3009 = vrot.slane %v3008, 4
    %v3010 = vmax.f32 %v3008, %v3009
    %v3011 = vrot.slane %v3010, 2
    %v3012 = vmax.f32 %v3010, %v3011
    %v3013 = vrot.slane %v3012, 1
    %v3014 = vmax.f32 %v3012, %v3013
    %v3015 = vsel %vm2188, %v1942, -inf
    %v3016 = vrot.slane %v3015, 4
    %v3017 = vmax.f32 %v3015, %v3016
    %v3018 = vrot.slane %v3017, 2
    %v3019 = vmax.f32 %v3017, %v3018
    %v3020 = vrot.slane %v3019, 1
    %v3021 = vmax.f32 %v3019, %v3020
    %v3022 = vsel %vm2188, %v1943, -inf
    %v3023 = vrot.slane %v3022, 4
    %v3024 = vmax.f32 %v3022, %v3023
    %v3025 = vrot.slane %v3024, 2
    %v3026 = vmax.f32 %v3024, %v3025
    %v3027 = vrot.slane %v3026, 1
    %v3028 = vmax.f32 %v3026, %v3027
    %v3029 = vsel %vm2188, %v1951, -inf
    %v3030 = vrot.slane %v3029, 4
    %v3031 = vmax.f32 %v3029, %v3030
    %v3032 = vrot.slane %v3031, 2
    %v3033 = vmax.f32 %v3031, %v3032
    %v3034 = vrot.slane %v3033, 1
    %v3035 = vmax.f32 %v3033, %v3034
    %v3036 = vsel %vm2188, %v1959, -inf
    %v3037 = vrot.slane %v3036, 4
    %v3038 = vmax.f32 %v3036, %v3037
    %v3039 = vrot.slane %v3038, 2
    %v3040 = vmax.f32 %v3038, %v3039
    %v3041 = vrot.slane %v3040, 1
    %v3042 = vmax.f32 %v3040, %v3041
    %v3043 = vsel %vm2188, %v1958, -inf
    %v3044 = vrot.slane %v3043, 4
    %v3045 = vmax.f32 %v3043, %v3044
    %v3046 = vrot.slane %v3045, 2
    %v3047 = vmax.f32 %v3045, %v3046
    %v3048 = vrot.slane %v3047, 1
    %v3049 = vmax.f32 %v3047, %v3048
    %v3050 = vsel %vm2188, %v1960, -inf
    %v3051 = vrot.slane %v3050, 4
    %v3052 = vmax.f32 %v3050, %v3051
    %v3053 = vrot.slane %v3052, 2
    %v3054 = vmax.f32 %v3052, %v3053
    %v3055 = vrot.slane %v3054, 1
    %v3056 = vmax.f32 %v3054, %v3055
    %v3057 = vsel %vm2188, %v1967, -inf
    %v3058 = vrot.slane %v3057, 4
    %v3059 = vmax.f32 %v3057, %v3058
    %v3060 = vrot.slane %v3059, 2
    %v3061 = vmax.f32 %v3059, %v3060
    %v3062 = vrot.slane %v3061, 1
    %v3063 = vmax.f32 %v3061, %v3062
    %v3064 = vsel %vm2188, %v1968, -inf
    %v3065 = vrot.slane %v3064, 4
    %v3066 = vmax.f32 %v3064, %v3065
    %v3067 = vrot.slane %v3066, 2
    %v3068 = vmax.f32 %v3066, %v3067
    %v3069 = vrot.slane %v3068, 1
    %v3070 = vmax.f32 %v3068, %v3069
    %v3071 = vsel %vm2188, %v1976, -inf
    %v3072 = vrot.slane %v3071, 4
    %v3073 = vmax.f32 %v3071, %v3072
    %v3074 = vrot.slane %v3073, 2
    %v3075 = vmax.f32 %v3073, %v3074
    %v3076 = vrot.slane %v3075, 1
    %v3077 = vmax.f32 %v3075, %v3076
    %v3078 = vsel %vm2188, %v1984, -inf
    %v3079 = vrot.slane %v3078, 4
    %v3080 = vmax.f32 %v3078, %v3079
    %v3081 = vrot.slane %v3080, 2
    %v3082 = vmax.f32 %v3080, %v3081
    %v3083 = vrot.slane %v3082, 1
    %v3084 = vmax.f32 %v3082, %v3083
    %v3085 = vsel %vm2188, %v1983, -inf
    %v3086 = vrot.slane %v3085, 4
    %v3087 = vmax.f32 %v3085, %v3086
    %v3088 = vrot.slane %v3087, 2
    %v3089 = vmax.f32 %v3087, %v3088
    %v3090 = vrot.slane %v3089, 1
    %v3091 = vmax.f32 %v3089, %v3090
    %v3092 = vsel %vm2188, %v1985, -inf
    %v3093 = vrot.slane %v3092, 4
    %v3094 = vmax.f32 %v3092, %v3093
    %v3095 = vrot.slane %v3094, 2
    %v3096 = vmax.f32 %v3094, %v3095
    %v3097 = vrot.slane %v3096, 1
    %v3098 = vmax.f32 %v3096, %v3097
    %v3099 = vsel %vm2188, %v1992, -inf
    %v3100 = vrot.slane %v3099, 4
    %v3101 = vmax.f32 %v3099, %v3100
    %v3102 = vrot.slane %v3101, 2
    %v3103 = vmax.f32 %v3101, %v3102
    %v3104 = vrot.slane %v3103, 1
    %v3105 = vmax.f32 %v3103, %v3104
    %v3106 = vsel %vm2188, %v1993, -inf
    %v3107 = vrot.slane %v3106, 4
    %v3108 = vmax.f32 %v3106, %v3107
    %v3109 = vrot.slane %v3108, 2
    %v3110 = vmax.f32 %v3108, %v3109
    %v3111 = vrot.slane %v3110, 1
    %v3112 = vmax.f32 %v3110, %v3111
    %v3113 = vsel %vm2188, %v2001, -inf
    %v3114 = vrot.slane %v3113, 4
    %v3115 = vmax.f32 %v3113, %v3114
    %v3116 = vrot.slane %v3115, 2
    %v3117 = vmax.f32 %v3115, %v3116
    %v3118 = vrot.slane %v3117, 1
    %v3119 = vmax.f32 %v3117, %v3118
    %v3120 = vsel %vm2188, %v2009, -inf
    %v3121 = vrot.slane %v3120, 4
    %v3122 = vmax.f32 %v3120, %v3121
    %v3123 = vrot.slane %v3122, 2
    %v3124 = vmax.f32 %v3122, %v3123
    %v3125 = vrot.slane %v3124, 1
    %v3126 = vmax.f32 %v3124, %v3125
    %v3127 = vsel %vm2188, %v2008, -inf
    %v3128 = vrot.slane %v3127, 4
    %v3129 = vmax.f32 %v3127, %v3128
    %v3130 = vrot.slane %v3129, 2
    %v3131 = vmax.f32 %v3129, %v3130
    %v3132 = vrot.slane %v3131, 1
    %v3133 = vmax.f32 %v3131, %v3132
    %v3134 = vsel %vm2188, %v2010, -inf
    %v3135 = vrot.slane %v3134, 4
    %v3136 = vmax.f32 %v3134, %v3135
    %v3137 = vrot.slane %v3136, 2
    %v3138 = vmax.f32 %v3136, %v3137
    %v3139 = vrot.slane %v3138, 1
    %v3140 = vmax.f32 %v3138, %v3139
    %v3141 = vsel %vm2188, %v2017, -inf
    %v3142 = vrot.slane %v3141, 4
    %v3143 = vmax.f32 %v3141, %v3142
    %v3144 = vrot.slane %v3143, 2
    %v3145 = vmax.f32 %v3143, %v3144
    %v3146 = vrot.slane %v3145, 1
    %v3147 = vmax.f32 %v3145, %v3146
    %v3148 = vsel %vm2188, %v2018, -inf
    %v3149 = vrot.slane %v3148, 4
    %v3150 = vmax.f32 %v3148, %v3149
    %v3151 = vrot.slane %v3150, 2
    %v3152 = vmax.f32 %v3150, %v3151
    %v3153 = vrot.slane %v3152, 1
    %v3154 = vmax.f32 %v3152, %v3153
    %v3155 = vsel %vm2188, %v2026, -inf
    %v3156 = vrot.slane %v3155, 4
    %v3157 = vmax.f32 %v3155, %v3156
    %v3158 = vrot.slane %v3157, 2
    %v3159 = vmax.f32 %v3157, %v3158
    %v3160 = vrot.slane %v3159, 1
    %v3161 = vmax.f32 %v3159, %v3160
    %v3162 = vsel %vm2188, %v2034, -inf
    %v3163 = vrot.slane %v3162, 4
    %v3164 = vmax.f32 %v3162, %v3163
    %v3165 = vrot.slane %v3164, 2
    %v3166 = vmax.f32 %v3164, %v3165
    %v3167 = vrot.slane %v3166, 1
    %v3168 = vmax.f32 %v3166, %v3167
    %v3169 = vsel %vm2188, %v2033, -inf
    %v3170 = vrot.slane %v3169, 4
    %v3171 = vmax.f32 %v3169, %v3170
    %v3172 = vrot.slane %v3171, 2
    %v3173 = vmax.f32 %v3171, %v3172
    %v3174 = vrot.slane %v3173, 1
    %v3175 = vmax.f32 %v3173, %v3174
    %v3176 = vsel %vm2188, %v2035, -inf
    %v3177 = vrot.slane %v3176, 4
    %v3178 = vmax.f32 %v3176, %v3177
    %v3179 = vrot.slane %v3178, 2
    %v3180 = vmax.f32 %v3178, %v3179
    %v3181 = vrot.slane %v3180, 1
    %v3182 = vmax.f32 %v3180, %v3181
    %v3183 = vsel %vm2188, %v2042, -inf
    %v3184 = vrot.slane %v3183, 4
    %v3185 = vmax.f32 %v3183, %v3184
    %v3186 = vrot.slane %v3185, 2
    %v3187 = vmax.f32 %v3185, %v3186
    %v3188 = vrot.slane %v3187, 1
    %v3189 = vmax.f32 %v3187, %v3188
    %v3190 = vsel %vm2188, %v2043, -inf
    %v3191 = vrot.slane %v3190, 4
    %v3192 = vmax.f32 %v3190, %v3191
    %v3193 = vrot.slane %v3192, 2
    %v3194 = vmax.f32 %v3192, %v3193
    %v3195 = vrot.slane %v3194, 1
    %v3196 = vmax.f32 %v3194, %v3195
    %v3197 = vmax.f32 %v2195, %v2216
    %v3198 = vmax.f32 %v2202, %v2223
    %v3199 = vmax.f32 %v2209, %v2230
    %v3200 = vmax.f32 %v2237, %v2258
    %v3201 = vmax.f32 %v2244, %v2265
    %v3202 = vmax.f32 %v2251, %v2272
    %v3203 = vmax.f32 %v2279, %v2300
    %v3204 = vmax.f32 %v2286, %v2307
    %v3205 = vmax.f32 %v2293, %v2314
    %v3206 = vmax.f32 %v2321, %v2342
    %v3207 = vmax.f32 %v2328, %v2349
    %v3208 = vmax.f32 %v2335, %v2356
    %v3209 = vmax.f32 %v2363, %v2384
    %v3210 = vmax.f32 %v2370, %v2391
    %v3211 = vmax.f32 %v2377, %v2398
    %v3212 = vmax.f32 %v2405, %v2426
    %v3213 = vmax.f32 %v2412, %v2433
    %v3214 = vmax.f32 %v2419, %v2440
    %v3215 = vmax.f32 %v2447, %v2468
    %v3216 = vmax.f32 %v2454, %v2475
    %v3217 = vmax.f32 %v2461, %v2482
    %v3218 = vmax.f32 %v2489, %v2510
    %v3219 = vmax.f32 %v2496, %v2517
    %v3220 = vmax.f32 %v2503, %v2524
    %v3221 = vmax.f32 %v2531, %v2552
    %v3222 = vmax.f32 %v2538, %v2559
    %v3223 = vmax.f32 %v2545, %v2566
    %v3224 = vmax.f32 %v2573, %v2594
    %v3225 = vmax.f32 %v2580, %v2601
    %v3226 = vmax.f32 %v2587, %v2608
    %v3227 = vmax.f32 %v2615, %v2636
    %v3228 = vmax.f32 %v2622, %v2643
    %v3229 = vmax.f32 %v2629, %v2650
    %v3230 = vmax.f32 %v2657, %v2678
    %v3231 = vmax.f32 %v2664, %v2685
    %v3232 = vmax.f32 %v2671, %v2692
    %v3233 = vmax.f32 %v2699, %v2720
    %v3234 = vmax.f32 %v2706, %v2727
    %v3235 = vmax.f32 %v2713, %v2734
    %v3236 = vmax.f32 %v2741, %v2762
    %v3237 = vmax.f32 %v2748, %v2769
    %v3238 = vmax.f32 %v2755, %v2776
    %v3239 = vmax.f32 %v2783, %v2804
    %v3240 = vmax.f32 %v2790, %v2811
    %v3241 = vmax.f32 %v2797, %v2818
    %v3242 = vmax.f32 %v2825, %v2846
    %v3243 = vmax.f32 %v2832, %v2853
    %v3244 = vmax.f32 %v2839, %v2860
    %v3245 = vmax.f32 %v2867, %v2888
    %v3246 = vmax.f32 %v2874, %v2895
    %v3247 = vmax.f32 %v2881, %v2902
    %v3248 = vmax.f32 %v2909, %v2930
    %v3249 = vmax.f32 %v2916, %v2937
    %v3250 = vmax.f32 %v2923, %v2944
    %v3251 = vmax.f32 %v2951, %v2972
    %v3252 = vmax.f32 %v2958, %v2979
    %v3253 = vmax.f32 %v2965, %v2986
    %v3254 = vmax.f32 %v2993, %v3014
    %v3255 = vmax.f32 %v3000, %v3021
    %v3256 = vmax.f32 %v3007, %v3028
    %v3257 = vmax.f32 %v3035, %v3056
    %v3258 = vmax.f32 %v3042, %v3063
    %v3259 = vmax.f32 %v3049, %v3070
    %v3260 = vmax.f32 %v3077, %v3098
    %v3261 = vmax.f32 %v3084, %v3105
    %v3262 = vmax.f32 %v3091, %v3112
    %v3263 = vmax.f32 %v3119, %v3140
    %v3264 = vmax.f32 %v3126, %v3147
    %v3265 = vmax.f32 %v3133, %v3154
    %v3266 = vmax.f32 %v3161, %v3182
    %v3267 = vmax.f32 %v3168, %v3189
    %v3268 = vmax.f32 %v3175, %v3196
    %vm3317 = vcmask 1041409
    %v3318 = vsel %vm3317, %v3200, %v3197
    %vm3319 = vcmask 1042434
    %v3320 = vsel %vm3319, %v3203, %v3318
    %vm3321 = vcmask 1043459
    %v3322 = vsel %vm3321, %v3206, %v3320
    %vm3323 = vcmask 1044484
    %v3324 = vsel %vm3323, %v3209, %v3322
    %vm3325 = vcmask 1045509
    %v3326 = vsel %vm3325, %v3212, %v3324
    %vm3327 = vcmask 1046534
    %v3328 = vsel %vm3327, %v3215, %v3326
    %vm3329 = vcmask 1047559
    %v3330 = vsel %vm3329, %v3218, %v3328
    %v3331 = vsel %vm3317, %v3201, %v3198
    %v3332 = vsel %vm3319, %v3204, %v3331
    %v3333 = vsel %vm3321, %v3207, %v3332
    %v3334 = vsel %vm3323, %v3210, %v3333
    %v3335 = vsel %vm3325, %v3213, %v3334
    %v3336 = vsel %vm3327, %v3216, %v3335
    %v3337 = vsel %vm3329, %v3219, %v3336
    %v3338 = vsel %vm3317, %v3202, %v3199
    %v3339 = vsel %vm3319, %v3205, %v3338
    %v3340 = vsel %vm3321, %v3208, %v3339
    %v3341 = vsel %vm3323, %v3211, %v3340
    %v3342 = vsel %vm3325, %v3214, %v3341
    %v3343 = vsel %vm3327, %v3217, %v3342
    %v3344 = vsel %vm3329, %v3220, %v3343
    %v3345 = vsel %vm3317, %v3236, %v3233
    %v3346 = vsel %vm3319, %v3239, %v3345
    %v3347 = vsel %vm3321, %v3242, %v3346
    %v3348 = vsel %vm3323, %v3245, %v3347
    %v3349 = vsel %vm3325, %v3248, %v3348
    %v3350 = vsel %vm3327, %v3251, %v3349
    %v3351 = vsel %vm3329, %v3254, %v3350
    %v3352 = vsel %vm3317, %v3237, %v3234
    %v3353 = vsel %vm3319, %v3240, %v3352
    %v3354 = vsel %vm3321, %v3243, %v3353
    %v3355 = vsel %vm3323, %v3246, %v3354
    %v3356 = vsel %vm3325, %v3249, %v3355
    %v3357 = vsel %vm3327, %v3252, %v3356
    %v3358 = vsel %vm3329, %v3255, %v3357
    %v3359 = vsel %vm3317, %v3238, %v3235
    %v3360 = vsel %vm3319, %v3241, %v3359
    %v3361 = vsel %vm3321, %v3244, %v3360
    %v3362 = vsel %vm3323, %v3247, %v3361
    %v3363 = vsel %vm3325, %v3250, %v3362
    %v3364 = vsel %vm3327, %v3253, %v3363
    %v3365 = vsel %vm3329, %v3256, %v3364
    %v3378 = vsel %vm3317, %v3203, %v3200
    %v3379 = vsel %vm3319, %v3206, %v3378
    %v3380 = vsel %vm3321, %v3209, %v3379
    %v3381 = vsel %vm3323, %v3212, %v3380
    %v3382 = vsel %vm3325, %v3215, %v3381
    %v3383 = vsel %vm3327, %v3218, %v3382
    %v3384 = vsel %vm3329, %v3221, %v3383
    %v3385 = vsel %vm3317, %v3204, %v3201
    %v3386 = vsel %vm3319, %v3207, %v3385
    %v3387 = vsel %vm3321, %v3210, %v3386
    %v3388 = vsel %vm3323, %v3213, %v3387
    %v3389 = vsel %vm3325, %v3216, %v3388
    %v3390 = vsel %vm3327, %v3219, %v3389
    %v3391 = vsel %vm3329, %v3222, %v3390
    %v3392 = vsel %vm3317, %v3205, %v3202
    %v3393 = vsel %vm3319, %v3208, %v3392
    %v3394 = vsel %vm3321, %v3211, %v3393
    %v3395 = vsel %vm3323, %v3214, %v3394
    %v3396 = vsel %vm3325, %v3217, %v3395
    %v3397 = vsel %vm3327, %v3220, %v3396
    %v3398 = vsel %vm3329, %v3223, %v3397
    %v3399 = vsel %vm3317, %v3239, %v3236
    %v3400 = vsel %vm3319, %v3242, %v3399
    %v3401 = vsel %vm3321, %v3245, %v3400
    %v3402 = vsel %vm3323, %v3248, %v3401
    %v3403 = vsel %vm3325, %v3251, %v3402
    %v3404 = vsel %vm3327, %v3254, %v3403
    %v3405 = vsel %vm3329, %v3257, %v3404
    %v3406 = vsel %vm3317, %v3240, %v3237
    %v3407 = vsel %vm3319, %v3243, %v3406
    %v3408 = vsel %vm3321, %v3246, %v3407
    %v3409 = vsel %vm3323, %v3249, %v3408
    %v3410 = vsel %vm3325, %v3252, %v3409
    %v3411 = vsel %vm3327, %v3255, %v3410
    %v3412 = vsel %vm3329, %v3258, %v3411
    %v3413 = vsel %vm3317, %v3241, %v3238
    %v3414 = vsel %vm3319, %v3244, %v3413
    %v3415 = vsel %vm3321, %v3247, %v3414
    %v3416 = vsel %vm3323, %v3250, %v3415
    %v3417 = vsel %vm3325, %v3253, %v3416
    %v3418 = vsel %vm3327, %v3256, %v3417
    %v3419 = vsel %vm3329, %v3259, %v3418
    %v3432 = vsel %vm3317, %v3206, %v3203
    %v3433 = vsel %vm3319, %v3209, %v3432
    %v3434 = vsel %vm3321, %v3212, %v3433
    %v3435 = vsel %vm3323, %v3215, %v3434
    %v3436 = vsel %vm3325, %v3218, %v3435
    %v3437 = vsel %vm3327, %v3221, %v3436
    %v3438 = vsel %vm3329, %v3224, %v3437
    %v3439 = vsel %vm3317, %v3207, %v3204
    %v3440 = vsel %vm3319, %v3210, %v3439
    %v3441 = vsel %vm3321, %v3213, %v3440
    %v3442 = vsel %vm3323, %v3216, %v3441
    %v3443 = vsel %vm3325, %v3219, %v3442
    %v3444 = vsel %vm3327, %v3222, %v3443
    %v3445 = vsel %vm3329, %v3225, %v3444
    %v3446 = vsel %vm3317, %v3208, %v3205
    %v3447 = vsel %vm3319, %v3211, %v3446
    %v3448 = vsel %vm3321, %v3214, %v3447
    %v3449 = vsel %vm3323, %v3217, %v3448
    %v3450 = vsel %vm3325, %v3220, %v3449
    %v3451 = vsel %vm3327, %v3223, %v3450
    %v3452 = vsel %vm3329, %v3226, %v3451
    %v3453 = vsel %vm3317, %v3242, %v3239
    %v3454 = vsel %vm3319, %v3245, %v3453
    %v3455 = vsel %vm3321, %v3248, %v3454
    %v3456 = vsel %vm3323, %v3251, %v3455
    %v3457 = vsel %vm3325, %v3254, %v3456
    %v3458 = vsel %vm3327, %v3257, %v3457
    %v3459 = vsel %vm3329, %v3260, %v3458
    %v3460 = vsel %vm3317, %v3243, %v3240
    %v3461 = vsel %vm3319, %v3246, %v3460
    %v3462 = vsel %vm3321, %v3249, %v3461
    %v3463 = vsel %vm3323, %v3252, %v3462
    %v3464 = vsel %vm3325, %v3255, %v3463
    %v3465 = vsel %vm3327, %v3258, %v3464
    %v3466 = vsel %vm3329, %v3261, %v3465
    %v3467 = vsel %vm3317, %v3244, %v3241
    %v3468 = vsel %vm3319, %v3247, %v3467
    %v3469 = vsel %vm3321, %v3250, %v3468
    %v3470 = vsel %vm3323, %v3253, %v3469
    %v3471 = vsel %vm3325, %v3256, %v3470
    %v3472 = vsel %vm3327, %v3259, %v3471
    %v3473 = vsel %vm3329, %v3262, %v3472
    %v3486 = vsel %vm3317, %v3209, %v3206
    %v3487 = vsel %vm3319, %v3212, %v3486
    %v3488 = vsel %vm3321, %v3215, %v3487
    %v3489 = vsel %vm3323, %v3218, %v3488
    %v3490 = vsel %vm3325, %v3221, %v3489
    %v3491 = vsel %vm3327, %v3224, %v3490
    %v3492 = vsel %vm3329, %v3227, %v3491
    %v3493 = vsel %vm3317, %v3210, %v3207
    %v3494 = vsel %vm3319, %v3213, %v3493
    %v3495 = vsel %vm3321, %v3216, %v3494
    %v3496 = vsel %vm3323, %v3219, %v3495
    %v3497 = vsel %vm3325, %v3222, %v3496
    %v3498 = vsel %vm3327, %v3225, %v3497
    %v3499 = vsel %vm3329, %v3228, %v3498
    %v3500 = vsel %vm3317, %v3211, %v3208
    %v3501 = vsel %vm3319, %v3214, %v3500
    %v3502 = vsel %vm3321, %v3217, %v3501
    %v3503 = vsel %vm3323, %v3220, %v3502
    %v3504 = vsel %vm3325, %v3223, %v3503
    %v3505 = vsel %vm3327, %v3226, %v3504
    %v3506 = vsel %vm3329, %v3229, %v3505
    %v3507 = vsel %vm3317, %v3245, %v3242
    %v3508 = vsel %vm3319, %v3248, %v3507
    %v3509 = vsel %vm3321, %v3251, %v3508
    %v3510 = vsel %vm3323, %v3254, %v3509
    %v3511 = vsel %vm3325, %v3257, %v3510
    %v3512 = vsel %vm3327, %v3260, %v3511
    %v3513 = vsel %vm3329, %v3263, %v3512
    %v3514 = vsel %vm3317, %v3246, %v3243
    %v3515 = vsel %vm3319, %v3249, %v3514
    %v3516 = vsel %vm3321, %v3252, %v3515
    %v3517 = vsel %vm3323, %v3255, %v3516
    %v3518 = vsel %vm3325, %v3258, %v3517
    %v3519 = vsel %vm3327, %v3261, %v3518
    %v3520 = vsel %vm3329, %v3264, %v3519
    %v3521 = vsel %vm3317, %v3247, %v3244
    %v3522 = vsel %vm3319, %v3250, %v3521
    %v3523 = vsel %vm3321, %v3253, %v3522
    %v3524 = vsel %vm3323, %v3256, %v3523
    %v3525 = vsel %vm3325, %v3259, %v3524
    %v3526 = vsel %vm3327, %v3262, %v3525
    %v3527 = vsel %vm3329, %v3265, %v3526
    %v3540 = vsel %vm3317, %v3212, %v3209
    %v3541 = vsel %vm3319, %v3215, %v3540
    %v3542 = vsel %vm3321, %v3218, %v3541
    %v3543 = vsel %vm3323, %v3221, %v3542
    %v3544 = vsel %vm3325, %v3224, %v3543
    %v3545 = vsel %vm3327, %v3227, %v3544
    %v3546 = vsel %vm3329, %v3230, %v3545
    %v3547 = vsel %vm3317, %v3213, %v3210
    %v3548 = vsel %vm3319, %v3216, %v3547
    %v3549 = vsel %vm3321, %v3219, %v3548
    %v3550 = vsel %vm3323, %v3222, %v3549
    %v3551 = vsel %vm3325, %v3225, %v3550
    %v3552 = vsel %vm3327, %v3228, %v3551
    %v3553 = vsel %vm3329, %v3231, %v3552
    %v3554 = vsel %vm3317, %v3214, %v3211
    %v3555 = vsel %vm3319, %v3217, %v3554
    %v3556 = vsel %vm3321, %v3220, %v3555
    %v3557 = vsel %vm3323, %v3223, %v3556
    %v3558 = vsel %vm3325, %v3226, %v3557
    %v3559 = vsel %vm3327, %v3229, %v3558
    %v3560 = vsel %vm3329, %v3232, %v3559
    %v3561 = vsel %vm3317, %v3248, %v3245
    %v3562 = vsel %vm3319, %v3251, %v3561
    %v3563 = vsel %vm3321, %v3254, %v3562
    %v3564 = vsel %vm3323, %v3257, %v3563
    %v3565 = vsel %vm3325, %v3260, %v3564
    %v3566 = vsel %vm3327, %v3263, %v3565
    %v3567 = vsel %vm3329, %v3266, %v3566
    %v3568 = vsel %vm3317, %v3249, %v3246
    %v3569 = vsel %vm3319, %v3252, %v3568
    %v3570 = vsel %vm3321, %v3255, %v3569
    %v3571 = vsel %vm3323, %v3258, %v3570
    %v3572 = vsel %vm3325, %v3261, %v3571
    %v3573 = vsel %vm3327, %v3264, %v3572
    %v3574 = vsel %vm3329, %v3267, %v3573
    %v3575 = vsel %vm3317, %v3250, %v3247
    %v3576 = vsel %vm3319, %v3253, %v3575
    %v3577 = vsel %vm3321, %v3256, %v3576
    %v3578 = vsel %vm3323, %v3259, %v3577
    %v3579 = vsel %vm3325, %v3262, %v3578
    %v3580 = vsel %vm3327, %v3265, %v3579
    %v3581 = vsel %vm3329, %v3268, %v3580
    %v3588 = vld [vmem:[#allocation11] sm:$0xff]
    %v3589 = vld [vmem:[#allocation11 + $0x8] sm:$0xff]
    %v3590 = vld [vmem:[#allocation11 + $0x10] sm:$0xff]
    %v3591 = vld [vmem:[#allocation11 + $0x18] sm:$0xff]
    %v3592 = vld [vmem:[#allocation11 + $0x20] sm:$0xff]
    %v3593 = vld [vmem:[#allocation11 + $0x28] sm:$0xff]
    %v3594 = vld [vmem:[#allocation11 + $0x30] sm:$0xff]
    %v3595 = vld [vmem:[#allocation11 + $0x38] sm:$0xff]
    %v3596 = vld [vmem:[#allocation11 + $0x40] sm:$0xff]
    %v3597 = vld [vmem:[#allocation11 + $0x48] sm:$0xff]
    %v3598 = vld [vmem:[#allocation11 + $0x50] sm:$0xff]
    %v3599 = vld [vmem:[#allocation11 + $0x58] sm:$0xff]
    %v3600 = vld [vmem:[#allocation11 + $0x60] sm:$0xff]
    %v3601 = vld [vmem:[#allocation11 + $0x68] sm:$0xff]
    %v3602 = vld [vmem:[#allocation11 + $0x70] sm:$0xff]
    %v3603 = vld [vmem:[#allocation11 + $0x78] sm:$0xff]
    %v3604 = vld [vmem:[#allocation11 + $0x80] sm:$0xff]
    %v3605 = vld [vmem:[#allocation11 + $0x88] sm:$0xff]
    %v3606 = vld [vmem:[#allocation11 + $0x90] sm:$0xff]
    %v3607 = vld [vmem:[#allocation11 + $0x98] sm:$0xff]
    %v3608 = vld [vmem:[#allocation11 + $0xa0] sm:$0xff]
    %v3609 = vld [vmem:[#allocation11 + $0xa8] sm:$0xff]
    %v3610 = vld [vmem:[#allocation11 + $0xb0] sm:$0xff]
    %v3611 = vld [vmem:[#allocation11 + $0xb8] sm:$0xff]
    %v3612 = vld [vmem:[#allocation11 + $0xc0] sm:$0xff]
    %v3613 = vld [vmem:[#allocation11 + $0xc8] sm:$0xff]
    %v3614 = vld [vmem:[#allocation11 + $0xd0] sm:$0xff]
    %v3615 = vld [vmem:[#allocation11 + $0xd8] sm:$0xff]
    %v3616 = vld [vmem:[#allocation11 + $0xe0] sm:$0xff]
    %v3617 = vld [vmem:[#allocation11 + $0xe8] sm:$0xff]
    %v3618 = vld [vmem:[#allocation11 + $0xf0] sm:$0xff]
    %v3619 = vld [vmem:[#allocation11 + $0xf8] sm:$0xff]
    %v3620 = vld [vmem:[#allocation11 + $0x100] sm:$0xff]
    %v3621 = vld [vmem:[#allocation11 + $0x108] sm:$0xff]
    %v3622 = vld [vmem:[#allocation11 + $0x110] sm:$0xff]
    %v3623 = vld [vmem:[#allocation11 + $0x118] sm:$0xff]
    %v3624 = vld [vmem:[#allocation11 + $0x120] sm:$0xff]
    %v3625 = vld [vmem:[#allocation11 + $0x128] sm:$0xff]
    %v3626 = vld [vmem:[#allocation11 + $0x130] sm:$0xff]
    %v3627 = vld [vmem:[#allocation11 + $0x138] sm:$0xff]
    %v3628 = vld [vmem:[#allocation11 + $0x140] sm:$0xff]
    %v3629 = vld [vmem:[#allocation11 + $0x148] sm:$0xff]
    %v3630 = vld [vmem:[#allocation11 + $0x150] sm:$0xff]
    %v3631 = vld [vmem:[#allocation11 + $0x158] sm:$0xff]
    %v3632 = vld [vmem:[#allocation11 + $0x160] sm:$0xff]
    %v3633 = vld [vmem:[#allocation11 + $0x168] sm:$0xff]
    %v3634 = vld [vmem:[#allocation11 + $0x170] sm:$0xff]
    %v3635 = vld [vmem:[#allocation11 + $0x178] sm:$0xff]
    %v3636 = vld [vmem:[#allocation11 + $0x180] sm:$0xff]
    %v3637 = vld [vmem:[#allocation11 + $0x188] sm:$0xff]
    %v3638 = vld [vmem:[#allocation11 + $0x190] sm:$0xff]
    %v3639 = vld [vmem:[#allocation11 + $0x198] sm:$0xff]
    %v3640 = vld [vmem:[#allocation11 + $0x1a0] sm:$0xff]
    %v3641 = vld [vmem:[#allocation11 + $0x1a8] sm:$0xff]
    %v3642 = vld [vmem:[#allocation11 + $0x1b0] sm:$0xff]
    %v3643 = vld [vmem:[#allocation11 + $0x1b8] sm:$0xff]
    %v3644 = vld [vmem:[#allocation11 + $0x1c0] sm:$0xff]
    %v3645 = vld [vmem:[#allocation11 + $0x1c8] sm:$0xff]
    %v3646 = vld [vmem:[#allocation11 + $0x1d0] sm:$0xff]
    %v3647 = vld [vmem:[#allocation11 + $0x1d8] sm:$0xff]
    %v3648 = vld [vmem:[#allocation11 + $0x1e0] sm:$0xff]
    %v3649 = vld [vmem:[#allocation11 + $0x1e8] sm:$0xff]
    %v3650 = vld [vmem:[#allocation11 + $0x1f0] sm:$0xff]
    %v3651 = vld [vmem:[#allocation11 + $0x1f8] sm:$0xff]
    %v3652 = vld [vmem:[#allocation11 + $0x200] sm:$0xff]
    %v3653 = vld [vmem:[#allocation11 + $0x208] sm:$0xff]
    %v3654 = vld [vmem:[#allocation11 + $0x210] sm:$0xff]
    %v3655 = vld [vmem:[#allocation11 + $0x218] sm:$0xff]
    %v3656 = vld [vmem:[#allocation11 + $0x220] sm:$0xff]
    %v3657 = vld [vmem:[#allocation11 + $0x228] sm:$0xff]
    %v3658 = vld [vmem:[#allocation11 + $0x230] sm:$0xff]
    %v3659 = vld [vmem:[#allocation11 + $0x238] sm:$0xff]
    %v3660 = vld [vmem:[#allocation11 + $0x240] sm:$0xff]
    %v3661 = vld [vmem:[#allocation11 + $0x248] sm:$0xff]
    %v3662 = vld [vmem:[#allocation11 + $0x250] sm:$0xff]
    %v3663 = vld [vmem:[#allocation11 + $0x258] sm:$0xff]
    %v3664 = vld [vmem:[#allocation11 + $0x260] sm:$0xff]
    %v3665 = vld [vmem:[#allocation11 + $0x268] sm:$0xff]
    %v3666 = vld [vmem:[#allocation11 + $0x270] sm:$0xff]
    %v3667 = vld [vmem:[#allocation11 + $0x278] sm:$0xff]
    %v3668 = vld [vmem:[#allocation11 + $0x280] sm:$0xff]
    %v3669 = vld [vmem:[#allocation11 + $0x288] sm:$0xff]
    %v3670 = vld [vmem:[#allocation11 + $0x290] sm:$0xff]
    %v3671 = vld [vmem:[#allocation11 + $0x298] sm:$0xff]
    %v3672 = vld [vmem:[#allocation11 + $0x2a0] sm:$0xff]
    %v3673 = vld [vmem:[#allocation11 + $0x2a8] sm:$0xff]
    %v3674 = vld [vmem:[#allocation11 + $0x2b0] sm:$0xff]
    %v3675 = vld [vmem:[#allocation11 + $0x2b8] sm:$0xff]
    %v3676 = vld [vmem:[#allocation11 + $0x2c0] sm:$0xff]
    %v3677 = vld [vmem:[#allocation11 + $0x2c8] sm:$0xff]
    %v3678 = vld [vmem:[#allocation11 + $0x2d0] sm:$0xff]
    %v3679 = vld [vmem:[#allocation11 + $0x2d8] sm:$0xff]
    %v3680 = vld [vmem:[#allocation11 + $0x2e0] sm:$0xff]
    %v3681 = vld [vmem:[#allocation11 + $0x2e8] sm:$0xff]
    %v3682 = vld [vmem:[#allocation11 + $0x2f0] sm:$0xff]
    %v3683 = vld [vmem:[#allocation11 + $0x2f8] sm:$0xff]
    %v3684 = vld [vmem:[#allocation11 + $0x300] sm:$0xff]
    %v3685 = vld [vmem:[#allocation11 + $0x308] sm:$0xff]
    %v3686 = vld [vmem:[#allocation11 + $0x310] sm:$0xff]
    %v3687 = vld [vmem:[#allocation11 + $0x318] sm:$0xff]
    %v3688 = vld [vmem:[#allocation11 + $0x320] sm:$0xff]
    %v3689 = vld [vmem:[#allocation11 + $0x328] sm:$0xff]
    %v3690 = vld [vmem:[#allocation11 + $0x330] sm:$0xff]
    %v3691 = vld [vmem:[#allocation11 + $0x338] sm:$0xff]
    %v3692 = vld [vmem:[#allocation11 + $0x340] sm:$0xff]
    %v3693 = vld [vmem:[#allocation11 + $0x348] sm:$0xff]
    %v3694 = vld [vmem:[#allocation11 + $0x350] sm:$0xff]
    %v3695 = vld [vmem:[#allocation11 + $0x358] sm:$0xff]
    %v3696 = vld [vmem:[#allocation11 + $0x360] sm:$0xff]
    %v3697 = vld [vmem:[#allocation11 + $0x368] sm:$0xff]
    %v3698 = vld [vmem:[#allocation11 + $0x370] sm:$0xff]
    %v3699 = vld [vmem:[#allocation11 + $0x378] sm:$0xff]
    %v3700 = vld [vmem:[#allocation11 + $0x380] sm:$0xff]
    %v3701 = vld [vmem:[#allocation11 + $0x388] sm:$0xff]
    %v3702 = vld [vmem:[#allocation11 + $0x390] sm:$0xff]
    %v3703 = vld [vmem:[#allocation11 + $0x398] sm:$0xff]
    %v3704 = vld [vmem:[#allocation11 + $0x3a0] sm:$0xff]
    %v3705 = vld [vmem:[#allocation11 + $0x3a8] sm:$0xff]
    %v3706 = vld [vmem:[#allocation11 + $0x3b0] sm:$0xff]
    %v3707 = vld [vmem:[#allocation11 + $0x3b8] sm:$0xff]
    %v3708 = vld [vmem:[#allocation11 + $0x3c0] sm:$0xff]
    %v3709 = vld [vmem:[#allocation11 + $0x3c8] sm:$0xff]
    %v3710 = vld [vmem:[#allocation11 + $0x3d0] sm:$0xff]
    %v3711 = vld [vmem:[#allocation11 + $0x3d8] sm:$0xff]
    %v3712 = vld [vmem:[#allocation11 + $0x3e0] sm:$0xff]
    %v3713 = vld [vmem:[#allocation11 + $0x3e8] sm:$0xff]
    %v3714 = vld [vmem:[#allocation11 + $0x3f0] sm:$0xff]
    %v3715 = vld [vmem:[#allocation11 + $0x3f8] sm:$0xff]
    %v3716 = vld [vmem:[#allocation11 + $0x400] sm:$0xff]
    %v3717 = vld [vmem:[#allocation11 + $0x408] sm:$0xff]
    %v3718 = vld [vmem:[#allocation11 + $0x410] sm:$0xff]
    %v3719 = vld [vmem:[#allocation11 + $0x418] sm:$0xff]
    %v3720 = vld [vmem:[#allocation11 + $0x420] sm:$0xff]
    %v3721 = vld [vmem:[#allocation11 + $0x428] sm:$0xff]
    %v3722 = vld [vmem:[#allocation11 + $0x430] sm:$0xff]
    %v3723 = vld [vmem:[#allocation11 + $0x438] sm:$0xff]
    %v3724 = vld [vmem:[#allocation11 + $0x440] sm:$0xff]
    %v3725 = vld [vmem:[#allocation11 + $0x448] sm:$0xff]
    %v3726 = vld [vmem:[#allocation11 + $0x450] sm:$0xff]
    %v3727 = vld [vmem:[#allocation11 + $0x458] sm:$0xff]
    %v3728 = vld [vmem:[#allocation11 + $0x460] sm:$0xff]
    %v3729 = vld [vmem:[#allocation11 + $0x468] sm:$0xff]
    %v3730 = vld [vmem:[#allocation11 + $0x470] sm:$0xff]
    %v3731 = vld [vmem:[#allocation11 + $0x478] sm:$0xff]
    %v3732 = vld [vmem:[#allocation11 + $0x480] sm:$0xff]
    %v3733 = vld [vmem:[#allocation11 + $0x488] sm:$0xff]
    %v3734 = vld [vmem:[#allocation11 + $0x490] sm:$0xff]
    %v3735 = vld [vmem:[#allocation11 + $0x498] sm:$0xff]
    %v3736 = vld [vmem:[#allocation11 + $0x4a0] sm:$0xff]
    %v3737 = vld [vmem:[#allocation11 + $0x4a8] sm:$0xff]
    %v3738 = vld [vmem:[#allocation11 + $0x4b0] sm:$0xff]
    %v3739 = vld [vmem:[#allocation11 + $0x4b8] sm:$0xff]
    %v3740 = vld [vmem:[#allocation11 + $0x4c0] sm:$0xff]
    %v3741 = vld [vmem:[#allocation11 + $0x4c8] sm:$0xff]
    %v3742 = vld [vmem:[#allocation11 + $0x4d0] sm:$0xff]
    %v3743 = vld [vmem:[#allocation11 + $0x4d8] sm:$0xff]
    %v3744 = vld [vmem:[#allocation11 + $0x4e0] sm:$0xff]
    %v3745 = vld [vmem:[#allocation11 + $0x4e8] sm:$0xff]
    %v3746 = vld [vmem:[#allocation11 + $0x4f0] sm:$0xff]
    %v3747 = vld [vmem:[#allocation11 + $0x4f8] sm:$0xff]
    %v3748 = vld [vmem:[#allocation11 + $0x500] sm:$0xff]
    %v3749 = vld [vmem:[#allocation11 + $0x508] sm:$0xff]
    %v3750 = vld [vmem:[#allocation11 + $0x510] sm:$0xff]
    %v3751 = vld [vmem:[#allocation11 + $0x518] sm:$0xff]
    %v3752 = vld [vmem:[#allocation11 + $0x520] sm:$0xff]
    %v3753 = vld [vmem:[#allocation11 + $0x528] sm:$0xff]
    %v3754 = vld [vmem:[#allocation11 + $0x530] sm:$0xff]
    %v3755 = vld [vmem:[#allocation11 + $0x538] sm:$0xff]
    %v3756 = vld [vmem:[#allocation11 + $0x540] sm:$0xff]
    %v3757 = vld [vmem:[#allocation11 + $0x548] sm:$0xff]
    %v3758 = vld [vmem:[#allocation11 + $0x550] sm:$0xff]
    %v3759 = vld [vmem:[#allocation11 + $0x558] sm:$0xff]
    %v3760 = vld [vmem:[#allocation11 + $0x560] sm:$0xff]
    %v3761 = vld [vmem:[#allocation11 + $0x568] sm:$0xff]
    %v3762 = vld [vmem:[#allocation11 + $0x570] sm:$0xff]
    %v3763 = vld [vmem:[#allocation11 + $0x578] sm:$0xff]
    %v3764 = vld [vmem:[#allocation11 + $0x580] sm:$0xff]
    %v3765 = vld [vmem:[#allocation11 + $0x588] sm:$0xff]
    %v3766 = vld [vmem:[#allocation11 + $0x590] sm:$0xff]
    %v3767 = vld [vmem:[#allocation11 + $0x598] sm:$0xff]
    %v3768 = vld [vmem:[#allocation11 + $0x5a0] sm:$0xff]
    %v3769 = vld [vmem:[#allocation11 + $0x5a8] sm:$0xff]
    %v3770 = vld [vmem:[#allocation11 + $0x5b0] sm:$0xff]
    %v3771 = vld [vmem:[#allocation11 + $0x5b8] sm:$0xff]
    %v3772 = vld [vmem:[#allocation11 + $0x5c0] sm:$0xff]
    %v3773 = vld [vmem:[#allocation11 + $0x5c8] sm:$0xff]
    %v3774 = vld [vmem:[#allocation11 + $0x5d0] sm:$0xff]
    %v3775 = vld [vmem:[#allocation11 + $0x5d8] sm:$0xff]
    %v3776 = vld [vmem:[#allocation11 + $0x5e0] sm:$0xff]
    %v3777 = vld [vmem:[#allocation11 + $0x5e8] sm:$0xff]
    %v3778 = vld [vmem:[#allocation11 + $0x5f0] sm:$0xff]
    %v3779 = vld [vmem:[#allocation11 + $0x5f8] sm:$0xff]
    %v3780 = vld [vmem:[#allocation11 + $0x600] sm:$0xff]
    %v3781 = vld [vmem:[#allocation11 + $0x608] sm:$0xff]
    %v3782 = vld [vmem:[#allocation11 + $0x610] sm:$0xff]
    %v3783 = vld [vmem:[#allocation11 + $0x618] sm:$0xff]
    %v3784 = vld [vmem:[#allocation11 + $0x620] sm:$0xff]
    %v3785 = vld [vmem:[#allocation11 + $0x628] sm:$0xff]
    %v3786 = vld [vmem:[#allocation11 + $0x630] sm:$0xff]
    %v3787 = vld [vmem:[#allocation11 + $0x638] sm:$0xff]
    %v3788 = vld [vmem:[#allocation11 + $0x640] sm:$0xff]
    %v3789 = vld [vmem:[#allocation11 + $0x648] sm:$0xff]
    %v3790 = vld [vmem:[#allocation11 + $0x650] sm:$0xff]
    %v3791 = vld [vmem:[#allocation11 + $0x658] sm:$0xff]
    %v3792 = vld [vmem:[#allocation11 + $0x660] sm:$0xff]
    %v3793 = vld [vmem:[#allocation11 + $0x668] sm:$0xff]
    %v3794 = vld [vmem:[#allocation11 + $0x670] sm:$0xff]
    %v3795 = vld [vmem:[#allocation11 + $0x678] sm:$0xff]
    %v3796 = vld [vmem:[#allocation11 + $0x680] sm:$0xff]
    %v3797 = vld [vmem:[#allocation11 + $0x688] sm:$0xff]
    %v3798 = vld [vmem:[#allocation11 + $0x690] sm:$0xff]
    %v3799 = vld [vmem:[#allocation11 + $0x698] sm:$0xff]
    %v3800 = vld [vmem:[#allocation11 + $0x6a0] sm:$0xff]
    %v3801 = vld [vmem:[#allocation11 + $0x6a8] sm:$0xff]
    %v3802 = vld [vmem:[#allocation11 + $0x6b0] sm:$0xff]
    %v3803 = vld [vmem:[#allocation11 + $0x6b8] sm:$0xff]
    %v3804 = vld [vmem:[#allocation11 + $0x6c0] sm:$0xff]
    %v3805 = vld [vmem:[#allocation11 + $0x6c8] sm:$0xff]
    %v3806 = vld [vmem:[#allocation11 + $0x6d0] sm:$0xff]
    %v3807 = vld [vmem:[#allocation11 + $0x6d8] sm:$0xff]
    %v3808 = vld [vmem:[#allocation11 + $0x6e0] sm:$0xff]
    %v3809 = vld [vmem:[#allocation11 + $0x6e8] sm:$0xff]
    %v3810 = vld [vmem:[#allocation11 + $0x6f0] sm:$0xff]
    %v3811 = vld [vmem:[#allocation11 + $0x6f8] sm:$0xff]
    %v3812 = vld [vmem:[#allocation11 + $0x700] sm:$0xff]
    %v3813 = vld [vmem:[#allocation11 + $0x708] sm:$0xff]
    %v3814 = vld [vmem:[#allocation11 + $0x710] sm:$0xff]
    %v3815 = vld [vmem:[#allocation11 + $0x718] sm:$0xff]
    %v3816 = vld [vmem:[#allocation11 + $0x720] sm:$0xff]
    %v3817 = vld [vmem:[#allocation11 + $0x728] sm:$0xff]
    %v3818 = vld [vmem:[#allocation11 + $0x730] sm:$0xff]
    %v3819 = vld [vmem:[#allocation11 + $0x738] sm:$0xff]
    %v3820 = vld [vmem:[#allocation11 + $0x740] sm:$0xff]
    %v3821 = vld [vmem:[#allocation11 + $0x748] sm:$0xff]
    %v3822 = vld [vmem:[#allocation11 + $0x750] sm:$0xff]
    %v3823 = vld [vmem:[#allocation11 + $0x758] sm:$0xff]
    %v3824 = vld [vmem:[#allocation11 + $0x760] sm:$0xff]
    %v3825 = vld [vmem:[#allocation11 + $0x768] sm:$0xff]
    %v3826 = vld [vmem:[#allocation11 + $0x770] sm:$0xff]
    %v3827 = vld [vmem:[#allocation11 + $0x778] sm:$0xff]
    %v3828 = vld [vmem:[#allocation11 + $0x780] sm:$0xff]
    %v3829 = vld [vmem:[#allocation11 + $0x788] sm:$0xff]
    %v3830 = vld [vmem:[#allocation11 + $0x790] sm:$0xff]
    %v3831 = vld [vmem:[#allocation11 + $0x798] sm:$0xff]
    %v3832 = vld [vmem:[#allocation11 + $0x7a0] sm:$0xff]
    %v3833 = vld [vmem:[#allocation11 + $0x7a8] sm:$0xff]
    %v3834 = vld [vmem:[#allocation11 + $0x7b0] sm:$0xff]
    %v3835 = vld [vmem:[#allocation11 + $0x7b8] sm:$0xff]
    %v3836 = vld [vmem:[#allocation11 + $0x7c0] sm:$0xff]
    %v3837 = vld [vmem:[#allocation11 + $0x7c8] sm:$0xff]
    %v3838 = vld [vmem:[#allocation11 + $0x7d0] sm:$0xff]
    %v3839 = vld [vmem:[#allocation11 + $0x7d8] sm:$0xff]
    %v3840 = vld [vmem:[#allocation11 + $0x7e0] sm:$0xff]
    %v3841 = vld [vmem:[#allocation11 + $0x7e8] sm:$0xff]
    %v3842 = vld [vmem:[#allocation11 + $0x7f0] sm:$0xff]
    %v3843 = vld [vmem:[#allocation11 + $0x7f8] sm:$0xff]
    %v3844 = vld [vmem:[#allocation11 + $0x800] sm:$0xff]
    %v3845 = vld [vmem:[#allocation11 + $0x808] sm:$0xff]
    %v3846 = vld [vmem:[#allocation11 + $0x810] sm:$0xff]
    %v3847 = vld [vmem:[#allocation11 + $0x818] sm:$0xff]
    %v3848 = vld [vmem:[#allocation11 + $0x820] sm:$0xff]
    %v3849 = vld [vmem:[#allocation11 + $0x828] sm:$0xff]
    %v3850 = vld [vmem:[#allocation11 + $0x830] sm:$0xff]
    %v3851 = vld [vmem:[#allocation11 + $0x838] sm:$0xff]
    %v3852 = vld [vmem:[#allocation11 + $0x840] sm:$0xff]
    %v3853 = vld [vmem:[#allocation11 + $0x848] sm:$0xff]
    %v3854 = vld [vmem:[#allocation11 + $0x850] sm:$0xff]
    %v3855 = vld [vmem:[#allocation11 + $0x858] sm:$0xff]
    %v3856 = vld [vmem:[#allocation11 + $0x860] sm:$0xff]
    %v3857 = vld [vmem:[#allocation11 + $0x868] sm:$0xff]
    %v3858 = vld [vmem:[#allocation11 + $0x870] sm:$0xff]
    %v3859 = vld [vmem:[#allocation11 + $0x878] sm:$0xff]
    %v3860 = vld [vmem:[#allocation11 + $0x880] sm:$0xff]
    %v3861 = vld [vmem:[#allocation11 + $0x888] sm:$0xff]
    %v3862 = vld [vmem:[#allocation11 + $0x890] sm:$0xff]
    %v3863 = vld [vmem:[#allocation11 + $0x898] sm:$0xff]
    %v3864 = vld [vmem:[#allocation11 + $0x8a0] sm:$0xff]
    %v3865 = vld [vmem:[#allocation11 + $0x8a8] sm:$0xff]
    %v3866 = vld [vmem:[#allocation11 + $0x8b0] sm:$0xff]
    %v3867 = vld [vmem:[#allocation11 + $0x8b8] sm:$0xff]
    %v3868 = vld [vmem:[#allocation11 + $0x8c0] sm:$0xff]
    %v3869 = vld [vmem:[#allocation11 + $0x8c8] sm:$0xff]
    %v3870 = vld [vmem:[#allocation11 + $0x8d0] sm:$0xff]
    %v3871 = vld [vmem:[#allocation11 + $0x8d8] sm:$0xff]
    %v3872 = vld [vmem:[#allocation11 + $0x8e0] sm:$0xff]
    %v3873 = vld [vmem:[#allocation11 + $0x8e8] sm:$0xff]
    %v3874 = vld [vmem:[#allocation11 + $0x8f0] sm:$0xff]
    %v3875 = vld [vmem:[#allocation11 + $0x8f8] sm:$0xff]
    %v3876 = vld [vmem:[#allocation11 + $0x900] sm:$0xff]
    %v3877 = vld [vmem:[#allocation11 + $0x908] sm:$0xff]
    %v3878 = vld [vmem:[#allocation11 + $0x910] sm:$0xff]
    %v3879 = vld [vmem:[#allocation11 + $0x918] sm:$0xff]
    %v3880 = vld [vmem:[#allocation11 + $0x920] sm:$0xff]
    %v3881 = vld [vmem:[#allocation11 + $0x928] sm:$0xff]
    %v3882 = vld [vmem:[#allocation11 + $0x930] sm:$0xff]
    %v3883 = vld [vmem:[#allocation11 + $0x938] sm:$0xff]
    %v3884 = vld [vmem:[#allocation11 + $0x940] sm:$0xff]
    %v3885 = vld [vmem:[#allocation11 + $0x948] sm:$0xff]
    %v3886 = vld [vmem:[#allocation11 + $0x950] sm:$0xff]
    %v3887 = vld [vmem:[#allocation11 + $0x958] sm:$0xff]
    %v3888 = vld [vmem:[#allocation11 + $0x960] sm:$0xff]
    %v3889 = vld [vmem:[#allocation11 + $0x968] sm:$0xff]
    %v3890 = vld [vmem:[#allocation11 + $0x970] sm:$0xff]
    %v3891 = vld [vmem:[#allocation11 + $0x978] sm:$0xff]
    %v3892 = vld [vmem:[#allocation11 + $0x980] sm:$0xff]
    %v3893 = vld [vmem:[#allocation11 + $0x988] sm:$0xff]
    %v3894 = vld [vmem:[#allocation11 + $0x990] sm:$0xff]
    %v3895 = vld [vmem:[#allocation11 + $0x998] sm:$0xff]
    %v3896 = vld [vmem:[#allocation11 + $0x9a0] sm:$0xff]
    %v3897 = vld [vmem:[#allocation11 + $0x9a8] sm:$0xff]
    %v3898 = vld [vmem:[#allocation11 + $0x9b0] sm:$0xff]
    %v3899 = vld [vmem:[#allocation11 + $0x9b8] sm:$0xff]
    %v3900 = vld [vmem:[#allocation11 + $0x9c0] sm:$0xff]
    %v3901 = vld [vmem:[#allocation11 + $0x9c8] sm:$0xff]
    %v3902 = vld [vmem:[#allocation11 + $0x9d0] sm:$0xff]
    %v3903 = vld [vmem:[#allocation11 + $0x9d8] sm:$0xff]
    %v3904 = vld [vmem:[#allocation11 + $0x9e0] sm:$0xff]
    %v3905 = vld [vmem:[#allocation11 + $0x9e8] sm:$0xff]
    %v3906 = vld [vmem:[#allocation11 + $0x9f0] sm:$0xff]
    %v3907 = vld [vmem:[#allocation11 + $0x9f8] sm:$0xff]
    %v3908 = vld [vmem:[#allocation11 + $0xa00] sm:$0xff]
    %v3909 = vld [vmem:[#allocation11 + $0xa08] sm:$0xff]
    %v3910 = vld [vmem:[#allocation11 + $0xa10] sm:$0xff]
    %v3911 = vld [vmem:[#allocation11 + $0xa18] sm:$0xff]
    %v3912 = vld [vmem:[#allocation11 + $0xa20] sm:$0xff]
    %v3913 = vld [vmem:[#allocation11 + $0xa28] sm:$0xff]
    %v3914 = vld [vmem:[#allocation11 + $0xa30] sm:$0xff]
    %v3915 = vld [vmem:[#allocation11 + $0xa38] sm:$0xff]
    %v3916 = vld [vmem:[#allocation11 + $0xa40] sm:$0xff]
    %v3917 = vld [vmem:[#allocation11 + $0xa48] sm:$0xff]
    %v3918 = vld [vmem:[#allocation11 + $0xa50] sm:$0xff]
    %v3919 = vld [vmem:[#allocation11 + $0xa58] sm:$0xff]
    %v3920 = vld [vmem:[#allocation11 + $0xa60] sm:$0xff]
    %v3921 = vld [vmem:[#allocation11 + $0xa68] sm:$0xff]
    %v3922 = vld [vmem:[#allocation11 + $0xa70] sm:$0xff]
    %v3923 = vld [vmem:[#allocation11 + $0xa78] sm:$0xff]
    %v3924 = vld [vmem:[#allocation11 + $0xa80] sm:$0xff]
    %v3925 = vld [vmem:[#allocation11 + $0xa88] sm:$0xff]
    %v3926 = vld [vmem:[#allocation11 + $0xa90] sm:$0xff]
    %v3927 = vld [vmem:[#allocation11 + $0xa98] sm:$0xff]
    %v3928 = vld [vmem:[#allocation11 + $0xaa0] sm:$0xff]
    %v3929 = vld [vmem:[#allocation11 + $0xaa8] sm:$0xff]
    %v3930 = vld [vmem:[#allocation11 + $0xab0] sm:$0xff]
    %v3931 = vld [vmem:[#allocation11 + $0xab8] sm:$0xff]
    %v3932 = vld [vmem:[#allocation11 + $0xac0] sm:$0xff]
    %v3933 = vld [vmem:[#allocation11 + $0xac8] sm:$0xff]
    %v3934 = vld [vmem:[#allocation11 + $0xad0] sm:$0xff]
    %v3935 = vld [vmem:[#allocation11 + $0xad8] sm:$0xff]
    %v3936 = vld [vmem:[#allocation11 + $0xae0] sm:$0xff]
    %v3937 = vld [vmem:[#allocation11 + $0xae8] sm:$0xff]
    %v3938 = vld [vmem:[#allocation11 + $0xaf0] sm:$0xff]
    %v3939 = vld [vmem:[#allocation11 + $0xaf8] sm:$0xff]
    %v3940 = vld [vmem:[#allocation11 + $0xb00] sm:$0xff]
    %v3941 = vld [vmem:[#allocation11 + $0xb08] sm:$0xff]
    %v3942 = vld [vmem:[#allocation11 + $0xb10] sm:$0xff]
    %v3943 = vld [vmem:[#allocation11 + $0xb18] sm:$0xff]
    %v3944 = vld [vmem:[#allocation11 + $0xb20] sm:$0xff]
    %v3945 = vld [vmem:[#allocation11 + $0xb28] sm:$0xff]
    %v3946 = vld [vmem:[#allocation11 + $0xb30] sm:$0xff]
    %v3947 = vld [vmem:[#allocation11 + $0xb38] sm:$0xff]
    %v3948 = vld [vmem:[#allocation11 + $0xb40] sm:$0xff]
    %v3949 = vld [vmem:[#allocation11 + $0xb48] sm:$0xff]
    %v3950 = vld [vmem:[#allocation11 + $0xb50] sm:$0xff]
    %v3951 = vld [vmem:[#allocation11 + $0xb58] sm:$0xff]
    %v3952 = vld [vmem:[#allocation11 + $0xb60] sm:$0xff]
    %v3953 = vld [vmem:[#allocation11 + $0xb68] sm:$0xff]
    %v3954 = vld [vmem:[#allocation11 + $0xb70] sm:$0xff]
    %v3955 = vld [vmem:[#allocation11 + $0xb78] sm:$0xff]
    %v3956 = vld [vmem:[#allocation11 + $0xb80] sm:$0xff]
    %v3957 = vld [vmem:[#allocation11 + $0xb88] sm:$0xff]
    %v3958 = vld [vmem:[#allocation11 + $0xb90] sm:$0xff]
    %v3959 = vld [vmem:[#allocation11 + $0xb98] sm:$0xff]
    %v3960 = vld [vmem:[#allocation11 + $0xba0] sm:$0xff]
    %v3961 = vld [vmem:[#allocation11 + $0xba8] sm:$0xff]
    %v3962 = vld [vmem:[#allocation11 + $0xbb0] sm:$0xff]
    %v3963 = vld [vmem:[#allocation11 + $0xbb8] sm:$0xff]
    %v3964 = vld [vmem:[#allocation11 + $0xbc0] sm:$0xff]
    %v3965 = vld [vmem:[#allocation11 + $0xbc8] sm:$0xff]
    %v3966 = vld [vmem:[#allocation11 + $0xbd0] sm:$0xff]
    %v3967 = vld [vmem:[#allocation11 + $0xbd8] sm:$0xff]
    %v3968 = vld [vmem:[#allocation11 + $0xbe0] sm:$0xff]
    %v3969 = vld [vmem:[#allocation11 + $0xbe8] sm:$0xff]
    %v3970 = vld [vmem:[#allocation11 + $0xbf0] sm:$0xff]
    %v3971 = vld [vmem:[#allocation11 + $0xbf8] sm:$0xff]
    %v3972 = vld [vmem:[#allocation11 + $0xc00] sm:$0xff]
    %v3973 = vld [vmem:[#allocation11 + $0xc08] sm:$0xff]
    %v3974 = vld [vmem:[#allocation11 + $0xc10] sm:$0xff]
    %v3975 = vld [vmem:[#allocation11 + $0xc18] sm:$0xff]
    %v3976 = vld [vmem:[#allocation11 + $0xc20] sm:$0xff]
    %v3977 = vld [vmem:[#allocation11 + $0xc28] sm:$0xff]
    %v3978 = vld [vmem:[#allocation11 + $0xc30] sm:$0xff]
    %v3979 = vld [vmem:[#allocation11 + $0xc38] sm:$0xff]
    %v3980 = vld [vmem:[#allocation11 + $0xc40] sm:$0xff]
    %v3981 = vld [vmem:[#allocation11 + $0xc48] sm:$0xff]
    %v3982 = vld [vmem:[#allocation11 + $0xc50] sm:$0xff]
    %v3983 = vld [vmem:[#allocation11 + $0xc58] sm:$0xff]
    %v3984 = vld [vmem:[#allocation11 + $0xc60] sm:$0xff]
    %v3985 = vld [vmem:[#allocation11 + $0xc68] sm:$0xff]
    %v3986 = vld [vmem:[#allocation11 + $0xc70] sm:$0xff]
    %v3987 = vld [vmem:[#allocation11 + $0xc78] sm:$0xff]
    %v3988 = vld [vmem:[#allocation11 + $0xc80] sm:$0xff]
    %v3989 = vld [vmem:[#allocation11 + $0xc88] sm:$0xff]
    %v3990 = vld [vmem:[#allocation11 + $0xc90] sm:$0xff]
    %v3991 = vld [vmem:[#allocation11 + $0xc98] sm:$0xff]
    %v3992 = vld [vmem:[#allocation11 + $0xca0] sm:$0xff]
    %v3993 = vld [vmem:[#allocation11 + $0xca8] sm:$0xff]
    %v3994 = vld [vmem:[#allocation11 + $0xcb0] sm:$0xff]
    %v3995 = vld [vmem:[#allocation11 + $0xcb8] sm:$0xff]
    %v3996 = vld [vmem:[#allocation11 + $0xcc0] sm:$0xff]
    %v3997 = vld [vmem:[#allocation11 + $0xcc8] sm:$0xff]
    %v3998 = vld [vmem:[#allocation11 + $0xcd0] sm:$0xff]
    %v3999 = vld [vmem:[#allocation11 + $0xcd8] sm:$0xff]
    %v4000 = vld [vmem:[#allocation11 + $0xce0] sm:$0xff]
    %v4001 = vld [vmem:[#allocation11 + $0xce8] sm:$0xff]
    %v4002 = vld [vmem:[#allocation11 + $0xcf0] sm:$0xff]
    %v4003 = vld [vmem:[#allocation11 + $0xcf8] sm:$0xff]
    %v4004 = vld [vmem:[#allocation11 + $0xd00] sm:$0xff]
    %v4005 = vld [vmem:[#allocation11 + $0xd08] sm:$0xff]
    %v4006 = vld [vmem:[#allocation11 + $0xd10] sm:$0xff]
    %v4007 = vld [vmem:[#allocation11 + $0xd18] sm:$0xff]
    %v4008 = vld [vmem:[#allocation11 + $0xd20] sm:$0xff]
    %v4009 = vld [vmem:[#allocation11 + $0xd28] sm:$0xff]
    %v4010 = vld [vmem:[#allocation11 + $0xd30] sm:$0xff]
    %v4011 = vld [vmem:[#allocation11 + $0xd38] sm:$0xff]
    %v4012 = vld [vmem:[#allocation11 + $0xd40] sm:$0xff]
    %v4013 = vld [vmem:[#allocation11 + $0xd48] sm:$0xff]
    %v4014 = vld [vmem:[#allocation11 + $0xd50] sm:$0xff]
    %v4015 = vld [vmem:[#allocation11 + $0xd58] sm:$0xff]
    %v4016 = vld [vmem:[#allocation11 + $0xd60] sm:$0xff]
    %v4017 = vld [vmem:[#allocation11 + $0xd68] sm:$0xff]
    %v4018 = vld [vmem:[#allocation11 + $0xd70] sm:$0xff]
    %v4019 = vld [vmem:[#allocation11 + $0xd78] sm:$0xff]
    %v4020 = vld [vmem:[#allocation11 + $0xd80] sm:$0xff]
    %v4021 = vld [vmem:[#allocation11 + $0xd88] sm:$0xff]
    %v4022 = vld [vmem:[#allocation11 + $0xd90] sm:$0xff]
    %v4023 = vld [vmem:[#allocation11 + $0xd98] sm:$0xff]
    %v4024 = vld [vmem:[#allocation11 + $0xda0] sm:$0xff]
    %v4025 = vld [vmem:[#allocation11 + $0xda8] sm:$0xff]
    %v4026 = vld [vmem:[#allocation11 + $0xdb0] sm:$0xff]
    %v4027 = vld [vmem:[#allocation11 + $0xdb8] sm:$0xff]
    %v4028 = vld [vmem:[#allocation11 + $0xdc0] sm:$0xff]
    %v4029 = vld [vmem:[#allocation11 + $0xdc8] sm:$0xff]
    %v4030 = vld [vmem:[#allocation11 + $0xdd0] sm:$0xff]
    %v4031 = vld [vmem:[#allocation11 + $0xdd8] sm:$0xff]
    %v4032 = vld [vmem:[#allocation11 + $0xde0] sm:$0xff]
    %v4033 = vld [vmem:[#allocation11 + $0xde8] sm:$0xff]
    %v4034 = vld [vmem:[#allocation11 + $0xdf0] sm:$0xff]
    %v4035 = vld [vmem:[#allocation11 + $0xdf8] sm:$0xff]
    %v4036 = vld [vmem:[#allocation11 + $0xe00] sm:$0xff]
    %v4037 = vld [vmem:[#allocation11 + $0xe08] sm:$0xff]
    %v4038 = vld [vmem:[#allocation11 + $0xe10] sm:$0xff]
    %v4039 = vld [vmem:[#allocation11 + $0xe18] sm:$0xff]
    %v4040 = vld [vmem:[#allocation11 + $0xe20] sm:$0xff]
    %v4041 = vld [vmem:[#allocation11 + $0xe28] sm:$0xff]
    %v4042 = vld [vmem:[#allocation11 + $0xe30] sm:$0xff]
    %v4043 = vld [vmem:[#allocation11 + $0xe38] sm:$0xff]
    %v4044 = vld [vmem:[#allocation11 + $0xe40] sm:$0xff]
    %v4045 = vld [vmem:[#allocation11 + $0xe48] sm:$0xff]
    %v4046 = vld [vmem:[#allocation11 + $0xe50] sm:$0xff]
    %v4047 = vld [vmem:[#allocation11 + $0xe58] sm:$0xff]
    %v4048 = vld [vmem:[#allocation11 + $0xe60] sm:$0xff]
    %v4049 = vld [vmem:[#allocation11 + $0xe68] sm:$0xff]
    %v4050 = vld [vmem:[#allocation11 + $0xe70] sm:$0xff]
    %v4051 = vld [vmem:[#allocation11 + $0xe78] sm:$0xff]
    %v4052 = vld [vmem:[#allocation11 + $0xe80] sm:$0xff]
    %v4053 = vld [vmem:[#allocation11 + $0xe88] sm:$0xff]
    %v4054 = vld [vmem:[#allocation11 + $0xe90] sm:$0xff]
    %v4055 = vld [vmem:[#allocation11 + $0xe98] sm:$0xff]
    %v4056 = vld [vmem:[#allocation11 + $0xea0] sm:$0xff]
    %v4057 = vld [vmem:[#allocation11 + $0xea8] sm:$0xff]
    %v4058 = vld [vmem:[#allocation11 + $0xeb0] sm:$0xff]
    %v4059 = vld [vmem:[#allocation11 + $0xeb8] sm:$0xff]
    %v4060 = vld [vmem:[#allocation11 + $0xec0] sm:$0xff]
    %v4061 = vld [vmem:[#allocation11 + $0xec8] sm:$0xff]
    %v4062 = vld [vmem:[#allocation11 + $0xed0] sm:$0xff]
    %v4063 = vld [vmem:[#allocation11 + $0xed8] sm:$0xff]
    %v4064 = vld [vmem:[#allocation11 + $0xee0] sm:$0xff]
    %v4065 = vld [vmem:[#allocation11 + $0xee8] sm:$0xff]
    %v4066 = vld [vmem:[#allocation11 + $0xef0] sm:$0xff]
    %v4067 = vld [vmem:[#allocation11 + $0xef8] sm:$0xff]
    %v4068 = vld [vmem:[#allocation13] sm:$0x3]
    %v4070 = vlaneseq
    %v4071 = vshrl.u32 %v4070, 7
    %v4072 = vsub.s32 0, %v4071
    %v4073 = vrot.slane %v4068, %v4072
    %v4074 = vlaneseq
    %v4075 = vshrl.u32 %v4074, 7
    %v4076 = vsub.s32 1, %v4075
    %v4077 = vrot.slane %v4068, %v4076
    %4080 = vmatprep.subr.mxu0 %v3589
    %4081 = vmatpush1.msra.mxu0 %v3588
    %4082 = vmatprep.subr.mxu0 %v3591
    %4083 = vmatpush1.msra.mxu0 %v3590
    %4084 = vmatprep.subr.mxu0 %v3593
    %4085 = vmatpush1.msra.mxu0 %v3592
    %4086 = vmatprep.subr.mxu0 %v3595
    %4087 = vmatpush1.msra.mxu0 %v3594
    %4088 = vmatprep.subr.mxu0 %v3597
    %4089 = vmatpush1.msra.mxu0 %v3596
    %4090 = vmatprep.subr.mxu0 %v3599
    %4091 = vmatpush1.msra.mxu0 %v3598
    %4092 = vmatprep.subr.mxu0 %v3601
    %4093 = vmatpush1.msra.mxu0 %v3600
    %4094 = vmatprep.subr.mxu0 %v3603
    %4095 = vmatpush1.msra.mxu0 %v3602
    %4096 = vmatprep.subr.mxu0 %v3605
    %4097 = vmatpush1.msra.mxu0 %v3604
    %4098 = vmatprep.subr.mxu0 %v3607
    %4099 = vmatpush1.msra.mxu0 %v3606
    %4100 = vmatprep.subr.mxu0 %v3609
    %4101 = vmatpush1.msra.mxu0 %v3608
    %4102 = vmatprep.subr.mxu0 %v3611
    %4103 = vmatpush1.msra.mxu0 %v3610
    %4104 = vmatprep.subr.mxu0 %v3613
    %4105 = vmatpush1.msra.mxu0 %v3612
    %4106 = vmatprep.subr.mxu0 %v3615
    %4107 = vmatpush1.msra.mxu0 %v3614
    %4108 = vmatprep.subr.mxu0 %v3617
    %4109 = vmatpush1.msra.mxu0 %v3616
    %4110 = vmatprep.subr.mxu0 %v3619
    %4111 = vmatpush1.msra.mxu0 %v3618
    %4112 = vmatprep.subr.mxu0 %v3621
    %4113 = vmatpush1.msra.mxu0 %v3620
    %4114 = vmatprep.subr.mxu0 %v3623
    %4115 = vmatpush1.msra.mxu0 %v3622
    %4116 = vmatprep.subr.mxu0 %v3625
    %4117 = vmatpush1.msra.mxu0 %v3624
    %4118 = vmatprep.subr.mxu0 %v3627
    %4119 = vmatpush1.msra.mxu0 %v3626
    %4120 = vmatprep.subr.mxu0 %v3629
    %4121 = vmatpush1.msra.mxu0 %v3628
    %4122 = vmatprep.subr.mxu0 %v3631
    %4123 = vmatpush1.msra.mxu0 %v3630
    %4124 = vmatprep.subr.mxu0 %v3633
    %4125 = vmatpush1.msra.mxu0 %v3632
    %4126 = vmatprep.subr.mxu0 %v3635
    %4127 = vmatpush1.msra.mxu0 %v3634
    %4128 = vmatprep.subr.mxu0 %v3637
    %4129 = vmatpush1.msra.mxu0 %v3636
    %4130 = vmatprep.subr.mxu0 %v3639
    %4131 = vmatpush1.msra.mxu0 %v3638
    %4132 = vmatprep.subr.mxu0 %v3641
    %4133 = vmatpush1.msra.mxu0 %v3640
    %4134 = vmatprep.subr.mxu0 %v3643
    %4135 = vmatpush1.msra.mxu0 %v3642
    %4136 = vmatprep.subr.mxu0 %v3645
    %4137 = vmatpush1.msra.mxu0 %v3644
    %4138 = vmatprep.subr.mxu0 %v3647
    %4139 = vmatpush1.msra.mxu0 %v3646
    %4140 = vmatprep.subr.mxu0 %v3649
    %4141 = vmatpush1.msra.mxu0 %v3648
    %4142 = vmatprep.subr.mxu0 %v3651
    %4143 = vmatpush1.msra.mxu0 %v3650
    %4144 = vmatprep.mubr.f32.mxu0 %v3337
    %4145 = vmatmul.mubr.f32.gmra.mrb[0].mxu0 %v3330
    %v4146 = vpop.f32.mrb[0].mxu0
    %v4147 = vadd.f32 %v4073, %v4146
    %v4148 = vpop.f32.mrb[0].mxu0
    %v4149 = vadd.f32 %v4077, %v4148
    %4150 = vmatprep.mubr.f32.mxu0 %v3358
    %4151 = vmatmul.mubr.f32.gmra.mrb[0].mxu0 %v3351
    %v4152 = vpop.f32.mrb[0].mxu0
    %v4153 = vadd.f32 %v4073, %v4152
    %v4154 = vpop.f32.mrb[0].mxu0
    %v4155 = vadd.f32 %v4077, %v4154
    %4156 = vdwg.mxu0
    %4157 = vmatprep.subr.mxu0 %v3653
    %4158 = vmatpush1.msra.mxu0 %v3652
    %4159 = vmatprep.subr.mxu0 %v3655
    %4160 = vmatpush1.msra.mxu0 %v3654
    %4161 = vmatprep.subr.mxu0 %v3657
    %4162 = vmatpush1.msra.mxu0 %v3656
    %4163 = vmatprep.subr.mxu0 %v3659
    %4164 = vmatpush1.msra.mxu0 %v3658
    %4165 = vmatprep.subr.mxu0 %v3661
    %4166 = vmatpush1.msra.mxu0 %v3660
    %4167 = vmatprep.subr.mxu0 %v3663
    %4168 = vmatpush1.msra.mxu0 %v3662
    %4169 = vmatprep.subr.mxu0 %v3665
    %4170 = vmatpush1.msra.mxu0 %v3664
    %4171 = vmatprep.subr.mxu0 %v3667
    %4172 = vmatpush1.msra.mxu0 %v3666
    %4173 = vmatprep.subr.mxu0 %v3669
    %4174 = vmatpush1.msra.mxu0 %v3668
    %4175 = vmatprep.subr.mxu0 %v3671
    %4176 = vmatpush1.msra.mxu0 %v3670
    %4177 = vmatprep.subr.mxu0 %v3673
    %4178 = vmatpush1.msra.mxu0 %v3672
    %4179 = vmatprep.subr.mxu0 %v3675
    %4180 = vmatpush1.msra.mxu0 %v3674
    %4181 = vmatprep.subr.mxu0 %v3677
    %4182 = vmatpush1.msra.mxu0 %v3676
    %4183 = vmatprep.subr.mxu0 %v3679
    %4184 = vmatpush1.msra.mxu0 %v3678
    %4185 = vmatprep.subr.mxu0 %v3681
    %4186 = vmatpush1.msra.mxu0 %v3680
    %4187 = vmatprep.subr.mxu0 %v3683
    %4188 = vmatpush1.msra.mxu0 %v3682
    %4189 = vmatprep.subr.mxu0 %v3685
    %4190 = vmatpush1.msra.mxu0 %v3684
    %4191 = vmatprep.subr.mxu0 %v3687
    %4192 = vmatpush1.msra.mxu0 %v3686
    %4193 = vmatprep.subr.mxu0 %v3689
    %4194 = vmatpush1.msra.mxu0 %v3688
    %4195 = vmatprep.subr.mxu0 %v3691
    %4196 = vmatpush1.msra.mxu0 %v3690
    %4197 = vmatprep.subr.mxu0 %v3693
    %4198 = vmatpush1.msra.mxu0 %v3692
    %4199 = vmatprep.subr.mxu0 %v3695
    %4200 = vmatpush1.msra.mxu0 %v3694
    %4201 = vmatprep.subr.mxu0 %v3697
    %4202 = vmatpush1.msra.mxu0 %v3696
    %4203 = vmatprep.subr.mxu0 %v3699
    %4204 = vmatpush1.msra.mxu0 %v3698
    %4205 = vmatprep.subr.mxu0 %v3701
    %4206 = vmatpush1.msra.mxu0 %v3700
    %4207 = vmatprep.subr.mxu0 %v3703
    %4208 = vmatpush1.msra.mxu0 %v3702
    %4209 = vmatprep.subr.mxu0 %v3705
    %4210 = vmatpush1.msra.mxu0 %v3704
    %4211 = vmatprep.subr.mxu0 %v3707
    %4212 = vmatpush1.msra.mxu0 %v3706
    %4213 = vmatprep.subr.mxu0 %v3709
    %4214 = vmatpush1.msra.mxu0 %v3708
    %4215 = vmatprep.subr.mxu0 %v3711
    %4216 = vmatpush1.msra.mxu0 %v3710
    %4217 = vmatprep.subr.mxu0 %v3713
    %4218 = vmatpush1.msra.mxu0 %v3712
    %4219 = vmatprep.subr.mxu0 %v3715
    %4220 = vmatpush1.msra.mxu0 %v3714
    %4221 = vmatprep.mubr.f32.mxu0 %v3384
    %4222 = vmatmul.mubr.f32.gmra.mrb[0].mxu0 %v3344
    %v4223 = vpop.f32.mrb[0].mxu0
    %v4224 = vadd.f32 %v4147, %v4223
    %v4225 = vpop.f32.mrb[0].mxu0
    %v4226 = vadd.f32 %v4149, %v4225
    %4227 = vmatprep.mubr.f32.mxu0 %v3405
    %4228 = vmatmul.mubr.f32.gmra.mrb[0].mxu0 %v3365
    %v4229 = vpop.f32.mrb[0].mxu0
    %v4230 = vadd.f32 %v4153, %v4229
    %v4231 = vpop.f32.mrb[0].mxu0
    %v4232 = vadd.f32 %v4155, %v4231
    %4233 = vdwg.mxu0
    %4234 = vmatprep.subr.mxu0 %v3717
    %4235 = vmatpush1.msra.mxu0 %v3716
    %4236 = vmatprep.subr.mxu0 %v3719
    %4237 = vmatpush1.msra.mxu0 %v3718
    %4238 = vmatprep.subr.mxu0 %v3721
    %4239 = vmatpush1.msra.mxu0 %v3720
    %4240 = vmatprep.subr.mxu0 %v3723
    %4241 = vmatpush1.msra.mxu0 %v3722
    %4242 = vmatprep.subr.mxu0 %v3725
    %4243 = vmatpush1.msra.mxu0 %v3724
    %4244 = vmatprep.subr.mxu0 %v3727
    %4245 = vmatpush1.msra.mxu0 %v3726
    %4246 = vmatprep.subr.mxu0 %v3729
    %4247 = vmatpush1.msra.mxu0 %v3728
    %4248 = vmatprep.subr.mxu0 %v3731
    %4249 = vmatpush1.msra.mxu0 %v3730
    %4250 = vmatprep.subr.mxu0 %v3733
    %4251 = vmatpush1.msra.mxu0 %v3732
    %4252 = vmatprep.subr.mxu0 %v3735
    %4253 = vmatpush1.msra.mxu0 %v3734
    %4254 = vmatprep.subr.mxu0 %v3737
    %4255 = vmatpush1.msra.mxu0 %v3736
    %4256 = vmatprep.subr.mxu0 %v3739
    %4257 = vmatpush1.msra.mxu0 %v3738
    %4258 = vmatprep.subr.mxu0 %v3741
    %4259 = vmatpush1.msra.mxu0 %v3740
    %4260 = vmatprep.subr.mxu0 %v3743
    %4261 = vmatpush1.msra.mxu0 %v3742
    %4262 = vmatprep.subr.mxu0 %v3745
    %4263 = vmatpush1.msra.mxu0 %v3744
    %4264 = vmatprep.subr.mxu0 %v3747
    %4265 = vmatpush1.msra.mxu0 %v3746
    %4266 = vmatprep.subr.mxu0 %v3749
    %4267 = vmatpush1.msra.mxu0 %v3748
    %4268 = vmatprep.subr.mxu0 %v3751
    %4269 = vmatpush1.msra.mxu0 %v3750
    %4270 = vmatprep.subr.mxu0 %v3753
    %4271 = vmatpush1.msra.mxu0 %v3752
    %4272 = vmatprep.subr.mxu0 %v3755
    %4273 = vmatpush1.msra.mxu0 %v3754
    %4274 = vmatprep.subr.mxu0 %v3757
    %4275 = vmatpush1.msra.mxu0 %v3756
    %4276 = vmatprep.subr.mxu0 %v3759
    %4277 = vmatpush1.msra.mxu0 %v3758
    %4278 = vmatprep.subr.mxu0 %v3761
    %4279 = vmatpush1.msra.mxu0 %v3760
    %4280 = vmatprep.subr.mxu0 %v3763
    %4281 = vmatpush1.msra.mxu0 %v3762
    %4282 = vmatprep.subr.mxu0 %v3765
    %4283 = vmatpush1.msra.mxu0 %v3764
    %4284 = vmatprep.subr.mxu0 %v3767
    %4285 = vmatpush1.msra.mxu0 %v3766
    %4286 = vmatprep.subr.mxu0 %v3769
    %4287 = vmatpush1.msra.mxu0 %v3768
    %4288 = vmatprep.subr.mxu0 %v3771
    %4289 = vmatpush1.msra.mxu0 %v3770
    %4290 = vmatprep.subr.mxu0 %v3773
    %4291 = vmatpush1.msra.mxu0 %v3772
    %4292 = vmatprep.subr.mxu0 %v3775
    %4293 = vmatpush1.msra.mxu0 %v3774
    %4294 = vmatprep.subr.mxu0 %v3777
    %4295 = vmatpush1.msra.mxu0 %v3776
    %4296 = vmatprep.subr.mxu0 %v3779
    %4297 = vmatpush1.msra.mxu0 %v3778
    %4298 = vmatprep.mubr.f32.mxu0 %v3398
    %4299 = vmatmul.mubr.f32.gmra.mrb[0].mxu0 %v3391
    %v4300 = vpop.f32.mrb[0].mxu0
    %v4301 = vadd.f32 %v4224, %v4300
    %v4302 = vpop.f32.mrb[0].mxu0
    %v4303 = vadd.f32 %v4226, %v4302
    %4304 = vmatprep.mubr.f32.mxu0 %v3419
    %4305 = vmatmul.mubr.f32.gmra.mrb[0].mxu0 %v3412
    %v4306 = vpop.f32.mrb[0].mxu0
    %v4307 = vadd.f32 %v4230, %v4306
    %v4308 = vpop.f32.mrb[0].mxu0
    %v4309 = vadd.f32 %v4232, %v4308
    %4310 = vdwg.mxu0
    %4311 = vmatprep.subr.mxu0 %v3781
    %4312 = vmatpush1.msra.mxu0 %v3780
    %4313 = vmatprep.subr.mxu0 %v3783
    %4314 = vmatpush1.msra.mxu0 %v3782
    %4315 = vmatprep.subr.mxu0 %v3785
    %4316 = vmatpush1.msra.mxu0 %v3784
    %4317 = vmatprep.subr.mxu0 %v3787
    %4318 = vmatpush1.msra.mxu0 %v3786
    %4319 = vmatprep.subr.mxu0 %v3789
    %4320 = vmatpush1.msra.mxu0 %v3788
    %4321 = vmatprep.subr.mxu0 %v3791
    %4322 = vmatpush1.msra.mxu0 %v3790
    %4323 = vmatprep.subr.mxu0 %v3793
    %4324 = vmatpush1.msra.mxu0 %v3792
    %4325 = vmatprep.subr.mxu0 %v3795
    %4326 = vmatpush1.msra.mxu0 %v3794
    %4327 = vmatprep.subr.mxu0 %v3797
    %4328 = vmatpush1.msra.mxu0 %v3796
    %4329 = vmatprep.subr.mxu0 %v3799
    %4330 = vmatpush1.msra.mxu0 %v3798
    %4331 = vmatprep.subr.mxu0 %v3801
    %4332 = vmatpush1.msra.mxu0 %v3800
    %4333 = vmatprep.subr.mxu0 %v3803
    %4334 = vmatpush1.msra.mxu0 %v3802
    %4335 = vmatprep.subr.mxu0 %v3805
    %4336 = vmatpush1.msra.mxu0 %v3804
    %4337 = vmatprep.subr.mxu0 %v3807
    %4338 = vmatpush1.msra.mxu0 %v3806
    %4339 = vmatprep.subr.mxu0 %v3809
    %4340 = vmatpush1.msra.mxu0 %v3808
    %4341 = vmatprep.subr.mxu0 %v3811
    %4342 = vmatpush1.msra.mxu0 %v3810
    %4343 = vmatprep.subr.mxu0 %v3813
    %4344 = vmatpush1.msra.mxu0 %v3812
    %4345 = vmatprep.subr.mxu0 %v3815
    %4346 = vmatpush1.msra.mxu0 %v3814
    %4347 = vmatprep.subr.mxu0 %v3817
    %4348 = vmatpush1.msra.mxu0 %v3816
    %4349 = vmatprep.subr.mxu0 %v3819
    %4350 = vmatpush1.msra.mxu0 %v3818
    %4351 = vmatprep.subr.mxu0 %v3821
    %4352 = vmatpush1.msra.mxu0 %v3820
    %4353 = vmatprep.subr.mxu0 %v3823
    %4354 = vmatpush1.msra.mxu0 %v3822
    %4355 = vmatprep.subr.mxu0 %v3825
    %4356 = vmatpush1.msra.mxu0 %v3824
    %4357 = vmatprep.subr.mxu0 %v3827
    %4358 = vmatpush1.msra.mxu0 %v3826
    %4359 = vmatprep.subr.mxu0 %v3829
    %4360 = vmatpush1.msra.mxu0 %v3828
    %4361 = vmatprep.subr.mxu0 %v3831
    %4362 = vmatpush1.msra.mxu0 %v3830
    %4363 = vmatprep.subr.mxu0 %v3833
    %4364 = vmatpush1.msra.mxu0 %v3832
    %4365 = vmatprep.subr.mxu0 %v3835
    %4366 = vmatpush1.msra.mxu0 %v3834
    %4367 = vmatprep.subr.mxu0 %v3837
    %4368 = vmatpush1.msra.mxu0 %v3836
    %4369 = vmatprep.subr.mxu0 %v3839
    %4370 = vmatpush1.msra.mxu0 %v3838
    %4371 = vmatprep.subr.mxu0 %v3841
    %4372 = vmatpush1.msra.mxu0 %v3840
    %4373 = vmatprep.subr.mxu0 %v3843
    %4374 = vmatpush1.msra.mxu0 %v3842
    %4375 = vmatprep.mubr.f32.mxu0 %v3445
    %4376 = vmatmul.mubr.f32.gmra.mrb[0].mxu0 %v3438
    %v4377 = vpop.f32.mrb[0].mxu0
    %v4378 = vadd.f32 %v4301, %v4377
    %v4379 = vpop.f32.mrb[0].mxu0
    %v4380 = vadd.f32 %v4303, %v4379
    %4381 = vmatprep.mubr.f32.mxu0 %v3466
    %4382 = vmatmul.mubr.f32.gmra.mrb[0].mxu0 %v3459
    %v4383 = vpop.f32.mrb[0].mxu0
    %v4384 = vadd.f32 %v4307, %v4383
    %v4385 = vpop.f32.mrb[0].mxu0
    %v4386 = vadd.f32 %v4309, %v4385
    %4387 = vdwg.mxu0
    %4388 = vmatprep.subr.mxu0 %v3845
    %4389 = vmatpush1.msra.mxu0 %v3844
    %4390 = vmatprep.subr.mxu0 %v3847
    %4391 = vmatpush1.msra.mxu0 %v3846
    %4392 = vmatprep.subr.mxu0 %v3849
    %4393 = vmatpush1.msra.mxu0 %v3848
    %4394 = vmatprep.subr.mxu0 %v3851
    %4395 = vmatpush1.msra.mxu0 %v3850
    %4396 = vmatprep.subr.mxu0 %v3853
    %4397 = vmatpush1.msra.mxu0 %v3852
    %4398 = vmatprep.subr.mxu0 %v3855
    %4399 = vmatpush1.msra.mxu0 %v3854
    %4400 = vmatprep.subr.mxu0 %v3857
    %4401 = vmatpush1.msra.mxu0 %v3856
    %4402 = vmatprep.subr.mxu0 %v3859
    %4403 = vmatpush1.msra.mxu0 %v3858
    %4404 = vmatprep.subr.mxu0 %v3861
    %4405 = vmatpush1.msra.mxu0 %v3860
    %4406 = vmatprep.subr.mxu0 %v3863
    %4407 = vmatpush1.msra.mxu0 %v3862
    %4408 = vmatprep.subr.mxu0 %v3865
    %4409 = vmatpush1.msra.mxu0 %v3864
    %4410 = vmatprep.subr.mxu0 %v3867
    %4411 = vmatpush1.msra.mxu0 %v3866
    %4412 = vmatprep.subr.mxu0 %v3869
    %4413 = vmatpush1.msra.mxu0 %v3868
    %4414 = vmatprep.subr.mxu0 %v3871
    %4415 = vmatpush1.msra.mxu0 %v3870
    %4416 = vmatprep.subr.mxu0 %v3873
    %4417 = vmatpush1.msra.mxu0 %v3872
    %4418 = vmatprep.subr.mxu0 %v3875
    %4419 = vmatpush1.msra.mxu0 %v3874
    %4420 = vmatprep.subr.mxu0 %v3877
    %4421 = vmatpush1.msra.mxu0 %v3876
    %4422 = vmatprep.subr.mxu0 %v3879
    %4423 = vmatpush1.msra.mxu0 %v3878
    %4424 = vmatprep.subr.mxu0 %v3881
    %4425 = vmatpush1.msra.mxu0 %v3880
    %4426 = vmatprep.subr.mxu0 %v3883
    %4427 = vmatpush1.msra.mxu0 %v3882
    %4428 = vmatprep.subr.mxu0 %v3885
    %4429 = vmatpush1.msra.mxu0 %v3884
    %4430 = vmatprep.subr.mxu0 %v3887
    %4431 = vmatpush1.msra.mxu0 %v3886
    %4432 = vmatprep.subr.mxu0 %v3889
    %4433 = vmatpush1.msra.mxu0 %v3888
    %4434 = vmatprep.subr.mxu0 %v3891
    %4435 = vmatpush1.msra.mxu0 %v3890
    %4436 = vmatprep.subr.mxu0 %v3893
    %4437 = vmatpush1.msra.mxu0 %v3892
    %4438 = vmatprep.subr.mxu0 %v3895
    %4439 = vmatpush1.msra.mxu0 %v3894
    %4440 = vmatprep.subr.mxu0 %v3897
    %4441 = vmatpush1.msra.mxu0 %v3896
    %4442 = vmatprep.subr.mxu0 %v3899
    %4443 = vmatpush1.msra.mxu0 %v3898
    %4444 = vmatprep.subr.mxu0 %v3901
    %4445 = vmatpush1.msra.mxu0 %v3900
    %4446 = vmatprep.subr.mxu0 %v3903
    %4447 = vmatpush1.msra.mxu0 %v3902
    %4448 = vmatprep.subr.mxu0 %v3905
    %4449 = vmatpush1.msra.mxu0 %v3904
    %4450 = vmatprep.subr.mxu0 %v3907
    %4451 = vmatpush1.msra.mxu0 %v3906
    %4452 = vmatprep.mubr.f32.mxu0 %v3492
    %4453 = vmatmul.mubr.f32.gmra.mrb[0].mxu0 %v3452
    %v4454 = vpop.f32.mrb[0].mxu0
    %v4455 = vadd.f32 %v4378, %v4454
    %v4456 = vpop.f32.mrb[0].mxu0
    %v4457 = vadd.f32 %v4380, %v4456
    %4458 = vmatprep.mubr.f32.mxu0 %v3513
    %4459 = vmatmul.mubr.f32.gmra.mrb[0].mxu0 %v3473
    %v4460 = vpop.f32.mrb[0].mxu0
    %v4461 = vadd.f32 %v4384, %v4460
    %v4462 = vpop.f32.mrb[0].mxu0
    %v4463 = vadd.f32 %v4386, %v4462
    %4464 = vdwg.mxu0
    %4465 = vmatprep.subr.mxu0 %v3909
    %4466 = vmatpush1.msra.mxu0 %v3908
    %4467 = vmatprep.subr.mxu0 %v3911
    %4468 = vmatpush1.msra.mxu0 %v3910
    %4469 = vmatprep.subr.mxu0 %v3913
    %4470 = vmatpush1.msra.mxu0 %v3912
    %4471 = vmatprep.subr.mxu0 %v3915
    %4472 = vmatpush1.msra.mxu0 %v3914
    %4473 = vmatprep.subr.mxu0 %v3917
    %4474 = vmatpush1.msra.mxu0 %v3916
    %4475 = vmatprep.subr.mxu0 %v3919
    %4476 = vmatpush1.msra.mxu0 %v3918
    %4477 = vmatprep.subr.mxu0 %v3921
    %4478 = vmatpush1.msra.mxu0 %v3920
    %4479 = vmatprep.subr.mxu0 %v3923
    %4480 = vmatpush1.msra.mxu0 %v3922
    %4481 = vmatprep.subr.mxu0 %v3925
    %4482 = vmatpush1.msra.mxu0 %v3924
    %4483 = vmatprep.subr.mxu0 %v3927
    %4484 = vmatpush1.msra.mxu0 %v3926
    %4485 = vmatprep.subr.mxu0 %v3929
    %4486 = vmatpush1.msra.mxu0 %v3928
    %4487 = vmatprep.subr.mxu0 %v3931
    %4488 = vmatpush1.msra.mxu0 %v3930
    %4489 = vmatprep.subr.mxu0 %v3933
    %4490 = vmatpush1.msra.mxu0 %v3932
    %4491 = vmatprep.subr.mxu0 %v3935
    %4492 = vmatpush1.msra.mxu0 %v3934
    %4493 = vmatprep.subr.mxu0 %v3937
    %4494 = vmatpush1.msra.mxu0 %v3936
    %4495 = vmatprep.subr.mxu0 %v3939
    %4496 = vmatpush1.msra.mxu0 %v3938
    %4497 = vmatprep.subr.mxu0 %v3941
    %4498 = vmatpush1.msra.mxu0 %v3940
    %4499 = vmatprep.subr.mxu0 %v3943
    %4500 = vmatpush1.msra.mxu0 %v3942
    %4501 = vmatprep.subr.mxu0 %v3945
    %4502 = vmatpush1.msra.mxu0 %v3944
    %4503 = vmatprep.subr.mxu0 %v3947
    %4504 = vmatpush1.msra.mxu0 %v3946
    %4505 = vmatprep.subr.mxu0 %v3949
    %4506 = vmatpush1.msra.mxu0 %v3948
    %4507 = vmatprep.subr.mxu0 %v3951
    %4508 = vmatpush1.msra.mxu0 %v3950
    %4509 = vmatprep.subr.mxu0 %v3953
    %4510 = vmatpush1.msra.mxu0 %v3952
    %4511 = vmatprep.subr.mxu0 %v3955
    %4512 = vmatpush1.msra.mxu0 %v3954
    %4513 = vmatprep.subr.mxu0 %v3957
    %4514 = vmatpush1.msra.mxu0 %v3956
    %4515 = vmatprep.subr.mxu0 %v3959
    %4516 = vmatpush1.msra.mxu0 %v3958
    %4517 = vmatprep.subr.mxu0 %v3961
    %4518 = vmatpush1.msra.mxu0 %v3960
    %4519 = vmatprep.subr.mxu0 %v3963
    %4520 = vmatpush1.msra.mxu0 %v3962
    %4521 = vmatprep.subr.mxu0 %v3965
    %4522 = vmatpush1.msra.mxu0 %v3964
    %4523 = vmatprep.subr.mxu0 %v3967
    %4524 = vmatpush1.msra.mxu0 %v3966
    %4525 = vmatprep.subr.mxu0 %v3969
    %4526 = vmatpush1.msra.mxu0 %v3968
    %4527 = vmatprep.subr.mxu0 %v3971
    %4528 = vmatpush1.msra.mxu0 %v3970
    %4529 = vmatprep.mubr.f32.mxu0 %v3506
    %4530 = vmatmul.mubr.f32.gmra.mrb[0].mxu0 %v3499
    %v4531 = vpop.f32.mrb[0].mxu0
    %v4532 = vadd.f32 %v4455, %v4531
    %v4533 = vpop.f32.mrb[0].mxu0
    %v4534 = vadd.f32 %v4457, %v4533
    %4535 = vmatprep.mubr.f32.mxu0 %v3527
    %4536 = vmatmul.mubr.f32.gmra.mrb[0].mxu0 %v3520
    %v4537 = vpop.f32.mrb[0].mxu0
    %v4538 = vadd.f32 %v4461, %v4537
    %v4539 = vpop.f32.mrb[0].mxu0
    %v4540 = vadd.f32 %v4463, %v4539
    %4541 = vdwg.mxu0
    %4542 = vmatprep.subr.mxu0 %v3973
    %4543 = vmatpush1.msra.mxu0 %v3972
    %4544 = vmatprep.subr.mxu0 %v3975
    %4545 = vmatpush1.msra.mxu0 %v3974
    %4546 = vmatprep.subr.mxu0 %v3977
    %4547 = vmatpush1.msra.mxu0 %v3976
    %4548 = vmatprep.subr.mxu0 %v3979
    %4549 = vmatpush1.msra.mxu0 %v3978
    %4550 = vmatprep.subr.mxu0 %v3981
    %4551 = vmatpush1.msra.mxu0 %v3980
    %4552 = vmatprep.subr.mxu0 %v3983
    %4553 = vmatpush1.msra.mxu0 %v3982
    %4554 = vmatprep.subr.mxu0 %v3985
    %4555 = vmatpush1.msra.mxu0 %v3984
    %4556 = vmatprep.subr.mxu0 %v3987
    %4557 = vmatpush1.msra.mxu0 %v3986
    %4558 = vmatprep.subr.mxu0 %v3989
    %4559 = vmatpush1.msra.mxu0 %v3988
    %4560 = vmatprep.subr.mxu0 %v3991
    %4561 = vmatpush1.msra.mxu0 %v3990
    %4562 = vmatprep.subr.mxu0 %v3993
    %4563 = vmatpush1.msra.mxu0 %v3992
    %4564 = vmatprep.subr.mxu0 %v3995
    %4565 = vmatpush1.msra.mxu0 %v3994
    %4566 = vmatprep.subr.mxu0 %v3997
    %4567 = vmatpush1.msra.mxu0 %v3996
    %4568 = vmatprep.subr.mxu0 %v3999
    %4569 = vmatpush1.msra.mxu0 %v3998
    %4570 = vmatprep.subr.mxu0 %v4001
    %4571 = vmatpush1.msra.mxu0 %v4000
    %4572 = vmatprep.subr.mxu0 %v4003
    %4573 = vmatpush1.msra.mxu0 %v4002
    %4574 = vmatprep.subr.mxu0 %v4005
    %4575 = vmatpush1.msra.mxu0 %v4004
    %4576 = vmatprep.subr.mxu0 %v4007
    %4577 = vmatpush1.msra.mxu0 %v4006
    %4578 = vmatprep.subr.mxu0 %v4009
    %4579 = vmatpush1.msra.mxu0 %v4008
    %4580 = vmatprep.subr.mxu0 %v4011
    %4581 = vmatpush1.msra.mxu0 %v4010
    %4582 = vmatprep.subr.mxu0 %v4013
    %4583 = vmatpush1.msra.mxu0 %v4012
    %4584 = vmatprep.subr.mxu0 %v4015
    %4585 = vmatpush1.msra.mxu0 %v4014
    %4586 = vmatprep.subr.mxu0 %v4017
    %4587 = vmatpush1.msra.mxu0 %v4016
    %4588 = vmatprep.subr.mxu0 %v4019
    %4589 = vmatpush1.msra.mxu0 %v4018
    %4590 = vmatprep.subr.mxu0 %v4021
    %4591 = vmatpush1.msra.mxu0 %v4020
    %4592 = vmatprep.subr.mxu0 %v4023
    %4593 = vmatpush1.msra.mxu0 %v4022
    %4594 = vmatprep.subr.mxu0 %v4025
    %4595 = vmatpush1.msra.mxu0 %v4024
    %4596 = vmatprep.subr.mxu0 %v4027
    %4597 = vmatpush1.msra.mxu0 %v4026
    %4598 = vmatprep.subr.mxu0 %v4029
    %4599 = vmatpush1.msra.mxu0 %v4028
    %4600 = vmatprep.subr.mxu0 %v4031
    %4601 = vmatpush1.msra.mxu0 %v4030
    %4602 = vmatprep.subr.mxu0 %v4033
    %4603 = vmatpush1.msra.mxu0 %v4032
    %4604 = vmatprep.subr.mxu0 %v4035
    %4605 = vmatpush1.msra.mxu0 %v4034
    %4606 = vmatprep.mubr.f32.mxu0 %v3553
    %4607 = vmatmul.mubr.f32.gmra.mrb[0].mxu0 %v3546
    %v4608 = vpop.f32.mrb[0].mxu0
    %v4609 = vadd.f32 %v4532, %v4608
    %v4610 = vpop.f32.mrb[0].mxu0
    %v4611 = vadd.f32 %v4534, %v4610
    %4612 = vmatprep.mubr.f32.mxu0 %v3574
    %4613 = vmatmul.mubr.f32.gmra.mrb[0].mxu0 %v3567
    %v4614 = vpop.f32.mrb[0].mxu0
    %v4615 = vadd.f32 %v4538, %v4614
    %v4616 = vpop.f32.mrb[0].mxu0
    %v4617 = vadd.f32 %v4540, %v4616
    %4618 = vdwg.mxu0
    %4619 = vmatprep.subr.mxu0 %v4037
    %4620 = vmatpush1.msra.mxu0 %v4036
    %4621 = vmatprep.subr.mxu0 %v4039
    %4622 = vmatpush1.msra.mxu0 %v4038
    %4623 = vmatprep.subr.mxu0 %v4041
    %4624 = vmatpush1.msra.mxu0 %v4040
    %4625 = vmatprep.subr.mxu0 %v4043
    %4626 = vmatpush1.msra.mxu0 %v4042
    %4627 = vmatprep.subr.mxu0 %v4045
    %4628 = vmatpush1.msra.mxu0 %v4044
    %4629 = vmatprep.subr.mxu0 %v4047
    %4630 = vmatpush1.msra.mxu0 %v4046
    %4631 = vmatprep.subr.mxu0 %v4049
    %4632 = vmatpush1.msra.mxu0 %v4048
    %4633 = vmatprep.subr.mxu0 %v4051
    %4634 = vmatpush1.msra.mxu0 %v4050
    %4635 = vmatprep.subr.mxu0 %v4053
    %4636 = vmatpush1.msra.mxu0 %v4052
    %4637 = vmatprep.subr.mxu0 %v4055
    %4638 = vmatpush1.msra.mxu0 %v4054
    %4639 = vmatprep.subr.mxu0 %v4057
    %4640 = vmatpush1.msra.mxu0 %v4056
    %4641 = vmatprep.subr.mxu0 %v4059
    %4642 = vmatpush1.msra.mxu0 %v4058
    %4643 = vmatprep.subr.mxu0 %v4061
    %4644 = vmatpush1.msra.mxu0 %v4060
    %4645 = vmatprep.subr.mxu0 %v4063
    %4646 = vmatpush1.msra.mxu0 %v4062
    %4647 = vmatprep.subr.mxu0 %v4065
    %4648 = vmatpush1.msra.mxu0 %v4064
    %4649 = vmatprep.subr.mxu0 %v4067
    %4650 = vmatpush1.msra.mxu0 %v4066
    %4651 = vmatprep.subr.mxu0 0.0
    %4652 = vmatpush1.msra.mxu0 0.0
    %4653 = vmatprep.subr.mxu0 0.0
    %4654 = vmatpush1.msra.mxu0 0.0
    %4655 = vmatprep.subr.mxu0 0.0
    %4656 = vmatpush1.msra.mxu0 0.0
    %4657 = vmatprep.subr.mxu0 0.0
    %4658 = vmatpush1.msra.mxu0 0.0
    %4659 = vmatprep.subr.mxu0 0.0
    %4660 = vmatpush1.msra.mxu0 0.0
    %4661 = vmatprep.subr.mxu0 0.0
    %4662 = vmatpush1.msra.mxu0 0.0
    %4663 = vmatprep.subr.mxu0 0.0
    %4664 = vmatpush1.msra.mxu0 0.0
    %4665 = vmatprep.subr.mxu0 0.0
    %4666 = vmatpush1.msra.mxu0 0.0
    %4667 = vmatprep.subr.mxu0 0.0
    %4668 = vmatpush1.msra.mxu0 0.0
    %4669 = vmatprep.subr.mxu0 0.0
    %4670 = vmatpush1.msra.mxu0 0.0
    %4671 = vmatprep.subr.mxu0 0.0
    %4672 = vmatpush1.msra.mxu0 0.0
    %4673 = vmatprep.subr.mxu0 0.0
    %4674 = vmatpush1.msra.mxu0 0.0
    %4675 = vmatprep.subr.mxu0 0.0
    %4676 = vmatpush1.msra.mxu0 0.0
    %4677 = vmatprep.subr.mxu0 0.0
    %4678 = vmatpush1.msra.mxu0 0.0
    %4679 = vmatprep.subr.mxu0 0.0
    %4680 = vmatpush1.msra.mxu0 0.0
    %4681 = vmatprep.subr.mxu0 0.0
    %4682 = vmatpush1.msra.mxu0 0.0
    %4683 = vmatprep.mubr.f32.mxu0 0.0
    %4684 = vmatmul.mubr.f32.gmra.mrb[0].mxu0 %v3560
    %v4685 = vpop.f32.mrb[0].mxu0
    %v4686 = vadd.f32 %v4609, %v4685
    %v4687 = vpop.f32.mrb[0].mxu0
    %v4688 = vadd.f32 %v4611, %v4687
    %4689 = vmatprep.mubr.f32.mxu0 0.0
    %4690 = vmatmul.mubr.f32.gmra.mrb[0].mxu0 %v3581
    %v4691 = vpop.f32.mrb[0].mxu0
    %v4692 = vadd.f32 %v4615, %v4691
    %v4693 = vpop.f32.mrb[0].mxu0
    %v4694 = vadd.f32 %v4617, %v4693
    %4695 = vdwg.mxu0
    %vm4696 = vcmp.ge.f32.partialorder %v4686, 0.0
    %vm4697 = vcmp.ge.f32.partialorder %v4688, 0.0
    %vm4698 = vcmp.ge.f32.partialorder %v4692, 0.0
    %vm4699 = vcmp.ge.f32.partialorder %v4694, 0.0
    %v4700 = vld [vmem:[#allocation14] sm:$0x3]
    %v4702 = vlaneseq
    %v4703 = vshrl.u32 %v4702, 7
    %v4704 = vsub.s32 0, %v4703
    %v4705 = vrot.slane %v4700, %v4704
    %v4706 = vlaneseq
    %v4707 = vshrl.u32 %v4706, 7
    %v4708 = vsub.s32 1, %v4707
    %v4709 = vrot.slane %v4700, %v4708
    %v4712 = vmul.f32 %v4705, %v4686
    %v4713 = vmul.f32 %v4709, %v4688
    %v4714 = vmul.f32 %v4705, %v4692
    %v4715 = vmul.f32 %v4709, %v4694
    %v4716 = vld [vmem:[#allocation16] sm:$0x3]
    %v4718 = vlaneseq
    %v4719 = vshrl.u32 %v4718, 7
    %v4720 = vsub.s32 0, %v4719
    %v4721 = vrot.slane %v4716, %v4720
    %v4722 = vlaneseq
    %v4723 = vshrl.u32 %v4722, 7
    %v4724 = vsub.s32 1, %v4723
    %v4725 = vrot.slane %v4716, %v4724
    %v4728 = vmul.f32 %v4721, %v4686
    %v4729 = vmul.f32 %v4725, %v4688
    %v4730 = vmul.f32 %v4721, %v4692
    %v4731 = vmul.f32 %v4725, %v4694
    %v4732 = vsel %vm4696, %v4712, %v4728
    %v4733 = vsel %vm4697, %v4713, %v4729
    %v4734 = vsel %vm4698, %v4714, %v4730
    %v4735 = vsel %vm4699, %v4715, %v4731
    %v4736 = vld [vmem:[#allocation17] sm:$0x3]
    %v4738 = vlaneseq
    %v4739 = vshrl.u32 %v4738, 7
    %v4740 = vsub.s32 0, %v4739
    %v4741 = vrot.slane %v4736, %v4740
    %v4742 = vlaneseq
    %v4743 = vshrl.u32 %v4742, 7
    %v4744 = vsub.s32 1, %v4743
    %v4745 = vrot.slane %v4736, %v4744
    %v4748 = vadd.f32 %v4732, %v4741
    %v4749 = vadd.f32 %v4733, %v4745
    %v4750 = vadd.f32 %v4734, %v4741
    %v4751 = vadd.f32 %v4735, %v4745
    %v4756 = vcombine.low %v4748, %v4749
    %v4757 = vcombine.high %v4748, %v4749
    %v4759 = vunpack.c.l.s4 1983009808
    %v4760 = vunpack.c.0.s8 %v4759
    %v4761 = vlaneseq
    %v4762 = vshrl.u32 %v4761, 7
    %v4763 = vsub.s32 %v4760, %v4762
    %v4764 = vrot.slane %v4756, %v4763
    %v4766 = vunpack.c.l.s4 1983009808
    %v4767 = vunpack.c.0.s8 %v4766
    %v4768 = vlaneseq
    %v4769 = vshrl.u32 %v4768, 7
    %v4770 = vsub.s32 %v4767, %v4769
    %v4771 = vrot.slane %v4757, %v4770
    %v4772 = vcombine.high %v4764, %v4764
    %v4773 = vcombine.high %v4771, %v4771
    %v4774 = vcombine.low %v4750, %v4751
    %v4775 = vcombine.high %v4750, %v4751
    %v4777 = vunpack.c.l.s4 1983009808
    %v4778 = vunpack.c.0.s8 %v4777
    %v4779 = vlaneseq
    %v4780 = vshrl.u32 %v4779, 7
    %v4781 = vsub.s32 %v4778, %v4780
    %v4782 = vrot.slane %v4774, %v4781
    %v4784 = vunpack.c.l.s4 1983009808
    %v4785 = vunpack.c.0.s8 %v4784
    %v4786 = vlaneseq
    %v4787 = vshrl.u32 %v4786, 7
    %v4788 = vsub.s32 %v4785, %v4787
    %v4789 = vrot.slane %v4775, %v4788
    %v4790 = vcombine.high %v4782, %v4782
    %v4791 = vcombine.high %v4789, %v4789
    %v4793 = vunpack.c.l.s4 1983009808
    %v4794 = vunpack.c.0.s8 %v4793
    %v4795 = vlaneseq
    %v4796 = vshrl.u32 %v4795, 7
    %v4797 = vsub.s32 %v4794, %v4796
    %v4798 = vrot.slane %v4764, %v4797
    %v4799 = vcombine.high %v4798, %v4798
    %v4801 = vunpack.c.l.s4 1983009808
    %v4802 = vunpack.c.0.s8 %v4801
    %v4803 = vlaneseq
    %v4804 = vshrl.u32 %v4803, 7
    %v4805 = vsub.s32 %v4802, %v4804
    %v4806 = vrot.slane %v4772, %v4805
    %v4807 = vcombine.high %v4806, %v4806
    %v4809 = vunpack.c.l.s4 1983009808
    %v4810 = vunpack.c.0.s8 %v4809
    %v4811 = vlaneseq
    %v4812 = vshrl.u32 %v4811, 7
    %v4813 = vsub.s32 %v4810, %v4812
    %v4814 = vrot.slane %v4771, %v4813
    %v4815 = vcombine.high %v4814, %v4814
    %v4817 = vunpack.c.l.s4 1983009808
    %v4818 = vunpack.c.0.s8 %v4817
    %v4819 = vlaneseq
    %v4820 = vshrl.u32 %v4819, 7
    %v4821 = vsub.s32 %v4818, %v4820
    %v4822 = vrot.slane %v4773, %v4821
    %v4823 = vcombine.high %v4822, %v4822
    %v4825 = vunpack.c.l.s4 1983009808
    %v4826 = vunpack.c.0.s8 %v4825
    %v4827 = vlaneseq
    %v4828 = vshrl.u32 %v4827, 7
    %v4829 = vsub.s32 %v4826, %v4828
    %v4830 = vrot.slane %v4782, %v4829
    %v4831 = vcombine.high %v4830, %v4830
    %v4833 = vunpack.c.l.s4 1983009808
    %v4834 = vunpack.c.0.s8 %v4833
    %v4835 = vlaneseq
    %v4836 = vshrl.u32 %v4835, 7
    %v4837 = vsub.s32 %v4834, %v4836
    %v4838 = vrot.slane %v4790, %v4837
    %v4839 = vcombine.high %v4838, %v4838
    %v4841 = vunpack.c.l.s4 1983009808
    %v4842 = vunpack.c.0.s8 %v4841
    %v4843 = vlaneseq
    %v4844 = vshrl.u32 %v4843, 7
    %v4845 = vsub.s32 %v4842, %v4844
    %v4846 = vrot.slane %v4789, %v4845
    %v4847 = vcombine.high %v4846, %v4846
    %v4849 = vunpack.c.l.s4 1983009808
    %v4850 = vunpack.c.0.s8 %v4849
    %v4851 = vlaneseq
    %v4852 = vshrl.u32 %v4851, 7
    %v4853 = vsub.s32 %v4850, %v4852
    %v4854 = vrot.slane %v4791, %v4853
    %v4855 = vcombine.high %v4854, %v4854
    %v4872 = vsel %vm2188, %v4798, -inf
    %v4873 = vrot.slane %v4872, 4
    %v4874 = vmax.f32 %v4872, %v4873
    %v4875 = vrot.slane %v4874, 2
    %v4876 = vmax.f32 %v4874, %v4875
    %v4877 = vrot.slane %v4876, 1
    %v4878 = vmax.f32 %v4876, %v4877
    %v4879 = vsel %vm2188, %v4799, -inf
    %v4880 = vrot.slane %v4879, 4
    %v4881 = vmax.f32 %v4879, %v4880
    %v4882 = vrot.slane %v4881, 2
    %v4883 = vmax.f32 %v4881, %v4882
    %v4884 = vrot.slane %v4883, 1
    %v4885 = vmax.f32 %v4883, %v4884
    %v4886 = vsel %vm2188, %v4806, -inf
    %v4887 = vrot.slane %v4886, 4
    %v4888 = vmax.f32 %v4886, %v4887
    %v4889 = vrot.slane %v4888, 2
    %v4890 = vmax.f32 %v4888, %v4889
    %v4891 = vrot.slane %v4890, 1
    %v4892 = vmax.f32 %v4890, %v4891
    %v4893 = vsel %vm2188, %v4807, -inf
    %v4894 = vrot.slane %v4893, 4
    %v4895 = vmax.f32 %v4893, %v4894
    %v4896 = vrot.slane %v4895, 2
    %v4897 = vmax.f32 %v4895, %v4896
    %v4898 = vrot.slane %v4897, 1
    %v4899 = vmax.f32 %v4897, %v4898
    %v4900 = vsel %vm2188, %v4814, -inf
    %v4901 = vrot.slane %v4900, 4
    %v4902 = vmax.f32 %v4900, %v4901
    %v4903 = vrot.slane %v4902, 2
    %v4904 = vmax.f32 %v4902, %v4903
    %v4905 = vrot.slane %v4904, 1
    %v4906 = vmax.f32 %v4904, %v4905
    %v4907 = vsel %vm2188, %v4815, -inf
    %v4908 = vrot.slane %v4907, 4
    %v4909 = vmax.f32 %v4907, %v4908
    %v4910 = vrot.slane %v4909, 2
    %v4911 = vmax.f32 %v4909, %v4910
    %v4912 = vrot.slane %v4911, 1
    %v4913 = vmax.f32 %v4911, %v4912
    %v4914 = vsel %vm2188, %v4822, -inf
    %v4915 = vrot.slane %v4914, 4
    %v4916 = vmax.f32 %v4914, %v4915
    %v4917 = vrot.slane %v4916, 2
    %v4918 = vmax.f32 %v4916, %v4917
    %v4919 = vrot.slane %v4918, 1
    %v4920 = vmax.f32 %v4918, %v4919
    %v4921 = vsel %vm2188, %v4823, -inf
    %v4922 = vrot.slane %v4921, 4
    %v4923 = vmax.f32 %v4921, %v4922
    %v4924 = vrot.slane %v4923, 2
    %v4925 = vmax.f32 %v4923, %v4924
    %v4926 = vrot.slane %v4925, 1
    %v4927 = vmax.f32 %v4925, %v4926
    %v4928 = vsel %vm2188, %v4830, -inf
    %v4929 = vrot.slane %v4928, 4
    %v4930 = vmax.f32 %v4928, %v4929
    %v4931 = vrot.slane %v4930, 2
    %v4932 = vmax.f32 %v4930, %v4931
    %v4933 = vrot.slane %v4932, 1
    %v4934 = vmax.f32 %v4932, %v4933
    %v4935 = vsel %vm2188, %v4831, -inf
    %v4936 = vrot.slane %v4935, 4
    %v4937 = vmax.f32 %v4935, %v4936
    %v4938 = vrot.slane %v4937, 2
    %v4939 = vmax.f32 %v4937, %v4938
    %v4940 = vrot.slane %v4939, 1
    %v4941 = vmax.f32 %v4939, %v4940
    %v4942 = vsel %vm2188, %v4838, -inf
    %v4943 = vrot.slane %v4942, 4
    %v4944 = vmax.f32 %v4942, %v4943
    %v4945 = vrot.slane %v4944, 2
    %v4946 = vmax.f32 %v4944, %v4945
    %v4947 = vrot.slane %v4946, 1
    %v4948 = vmax.f32 %v4946, %v4947
    %v4949 = vsel %vm2188, %v4839, -inf
    %v4950 = vrot.slane %v4949, 4
    %v4951 = vmax.f32 %v4949, %v4950
    %v4952 = vrot.slane %v4951, 2
    %v4953 = vmax.f32 %v4951, %v4952
    %v4954 = vrot.slane %v4953, 1
    %v4955 = vmax.f32 %v4953, %v4954
    %v4956 = vsel %vm2188, %v4846, -inf
    %v4957 = vrot.slane %v4956, 4
    %v4958 = vmax.f32 %v4956, %v4957
    %v4959 = vrot.slane %v4958, 2
    %v4960 = vmax.f32 %v4958, %v4959
    %v4961 = vrot.slane %v4960, 1
    %v4962 = vmax.f32 %v4960, %v4961
    %v4963 = vsel %vm2188, %v4847, -inf
    %v4964 = vrot.slane %v4963, 4
    %v4965 = vmax.f32 %v4963, %v4964
    %v4966 = vrot.slane %v4965, 2
    %v4967 = vmax.f32 %v4965, %v4966
    %v4968 = vrot.slane %v4967, 1
    %v4969 = vmax.f32 %v4967, %v4968
    %v4970 = vsel %vm2188, %v4854, -inf
    %v4971 = vrot.slane %v4970, 4
    %v4972 = vmax.f32 %v4970, %v4971
    %v4973 = vrot.slane %v4972, 2
    %v4974 = vmax.f32 %v4972, %v4973
    %v4975 = vrot.slane %v4974, 1
    %v4976 = vmax.f32 %v4974, %v4975
    %v4977 = vsel %vm2188, %v4855, -inf
    %v4978 = vrot.slane %v4977, 4
    %v4979 = vmax.f32 %v4977, %v4978
    %v4980 = vrot.slane %v4979, 2
    %v4981 = vmax.f32 %v4979, %v4980
    %v4982 = vrot.slane %v4981, 1
    %v4983 = vmax.f32 %v4981, %v4982
    %v4984 = vmax.f32 %v4878, %v4885
    %v4985 = vmax.f32 %v4892, %v4899
    %v4986 = vmax.f32 %v4906, %v4913
    %v4987 = vmax.f32 %v4920, %v4927
    %v4988 = vmax.f32 %v4934, %v4941
    %v4989 = vmax.f32 %v4948, %v4955
    %v4990 = vmax.f32 %v4962, %v4969
    %v4991 = vmax.f32 %v4976, %v4983
    %v4994 = vsel %vm3317, %v4988, %v4984
    %v4998 = vsel %vm3317, %v4989, %v4985
    %v5002 = vsel %vm3317, %v4990, %v4986
    %v5006 = vsel %vm3317, %v4991, %v4987
    %v5008 = vld [vmem:[#allocation19] sm:$0xff]
    %v5009 = vld [vmem:[#allocation19 + $0x8] sm:$0xff]
    %v5010 = vld [vmem:[#allocation19 + $0x10] sm:$0xff]
    %v5011 = vld [vmem:[#allocation19 + $0x18] sm:$0xff]
    %v5012 = vld [vmem:[#allocation19 + $0x20] sm:$0xff]
    %v5013 = vld [vmem:[#allocation19 + $0x28] sm:$0xff]
    %v5014 = vld [vmem:[#allocation19 + $0x30] sm:$0xff]
    %v5015 = vld [vmem:[#allocation19 + $0x38] sm:$0xff]
    %v5016 = vld [vmem:[#allocation19 + $0x40] sm:$0xff]
    %v5017 = vld [vmem:[#allocation19 + $0x48] sm:$0xff]
    %v5018 = vld [vmem:[#allocation19 + $0x50] sm:$0xff]
    %v5019 = vld [vmem:[#allocation19 + $0x58] sm:$0xff]
    %v5020 = vld [vmem:[#allocation19 + $0x60] sm:$0xff]
    %v5021 = vld [vmem:[#allocation19 + $0x68] sm:$0xff]
    %v5022 = vld [vmem:[#allocation19 + $0x70] sm:$0xff]
    %v5023 = vld [vmem:[#allocation19 + $0x78] sm:$0xff]
    %v5024 = vld [vmem:[#allocation19 + $0x80] sm:$0xff]
    %v5025 = vld [vmem:[#allocation19 + $0x88] sm:$0xff]
    %v5026 = vld [vmem:[#allocation19 + $0x90] sm:$0xff]
    %v5027 = vld [vmem:[#allocation19 + $0x98] sm:$0xff]
    %v5028 = vld [vmem:[#allocation19 + $0xa0] sm:$0xff]
    %v5029 = vld [vmem:[#allocation19 + $0xa8] sm:$0xff]
    %v5030 = vld [vmem:[#allocation19 + $0xb0] sm:$0xff]
    %v5031 = vld [vmem:[#allocation19 + $0xb8] sm:$0xff]
    %v5032 = vld [vmem:[#allocation19 + $0xc0] sm:$0xff]
    %v5033 = vld [vmem:[#allocation19 + $0xc8] sm:$0xff]
    %v5034 = vld [vmem:[#allocation19 + $0xd0] sm:$0xff]
    %v5035 = vld [vmem:[#allocation19 + $0xd8] sm:$0xff]
    %v5036 = vld [vmem:[#allocation19 + $0xe0] sm:$0xff]
    %v5037 = vld [vmem:[#allocation19 + $0xe8] sm:$0xff]
    %v5038 = vld [vmem:[#allocation19 + $0xf0] sm:$0xff]
    %v5039 = vld [vmem:[#allocation19 + $0xf8] sm:$0xff]
    %v5040 = vld [vmem:[#allocation19 + $0x100] sm:$0xff]
    %v5041 = vld [vmem:[#allocation19 + $0x108] sm:$0xff]
    %v5042 = vld [vmem:[#allocation19 + $0x110] sm:$0xff]
    %v5043 = vld [vmem:[#allocation19 + $0x118] sm:$0xff]
    %v5044 = vld [vmem:[#allocation19 + $0x120] sm:$0xff]
    %v5045 = vld [vmem:[#allocation19 + $0x128] sm:$0xff]
    %v5046 = vld [vmem:[#allocation19 + $0x130] sm:$0xff]
    %v5047 = vld [vmem:[#allocation19 + $0x138] sm:$0xff]
    %v5048 = vld [vmem:[#allocation19 + $0x140] sm:$0xff]
    %v5049 = vld [vmem:[#allocation19 + $0x148] sm:$0xff]
    %v5050 = vld [vmem:[#allocation19 + $0x150] sm:$0xff]
    %v5051 = vld [vmem:[#allocation19 + $0x158] sm:$0xff]
    %v5052 = vld [vmem:[#allocation19 + $0x160] sm:$0xff]
    %v5053 = vld [vmem:[#allocation19 + $0x168] sm:$0xff]
    %v5054 = vld [vmem:[#allocation19 + $0x170] sm:$0xff]
    %v5055 = vld [vmem:[#allocation19 + $0x178] sm:$0xff]
    %v5056 = vld [vmem:[#allocation19 + $0x180] sm:$0xff]
    %v5057 = vld [vmem:[#allocation19 + $0x188] sm:$0xff]
    %v5058 = vld [vmem:[#allocation19 + $0x190] sm:$0xff]
    %v5059 = vld [vmem:[#allocation19 + $0x198] sm:$0xff]
    %v5060 = vld [vmem:[#allocation19 + $0x1a0] sm:$0xff]
    %v5061 = vld [vmem:[#allocation19 + $0x1a8] sm:$0xff]
    %v5062 = vld [vmem:[#allocation19 + $0x1b0] sm:$0xff]
    %v5063 = vld [vmem:[#allocation19 + $0x1b8] sm:$0xff]
    %v5064 = vld [vmem:[#allocation19 + $0x1c0] sm:$0xff]
    %v5065 = vld [vmem:[#allocation19 + $0x1c8] sm:$0xff]
    %v5066 = vld [vmem:[#allocation19 + $0x1d0] sm:$0xff]
    %v5067 = vld [vmem:[#allocation19 + $0x1d8] sm:$0xff]
    %v5068 = vld [vmem:[#allocation19 + $0x1e0] sm:$0xff]
    %v5069 = vld [vmem:[#allocation19 + $0x1e8] sm:$0xff]
    %v5070 = vld [vmem:[#allocation19 + $0x1f0] sm:$0xff]
    %v5071 = vld [vmem:[#allocation19 + $0x1f8] sm:$0xff]
    %v5072 = vld [vmem:[#allocation20] sm:$0x1]
    %v5074 = vlaneseq
    %v5075 = vshrl.u32 %v5074, 7
    %v5076 = vsub.s32 0, %v5075
    %v5077 = vrot.slane %v5072, %v5076
    %5079 = vmatprep.subr.mxu0 0.0
    %5080 = vmatpush1.msra.mxu0 %v5008
    %5081 = vmatprep.subr.mxu0 0.0
    %5082 = vmatpush1.msra.mxu0 %v5009
    %5083 = vmatprep.subr.mxu0 0.0
    %5084 = vmatpush1.msra.mxu0 %v5010
    %5085 = vmatprep.subr.mxu0 0.0
    %5086 = vmatpush1.msra.mxu0 %v5011
    %5087 = vmatprep.subr.mxu0 0.0
    %5088 = vmatpush1.msra.mxu0 %v5012
    %5089 = vmatprep.subr.mxu0 0.0
    %5090 = vmatpush1.msra.mxu0 %v5013
    %5091 = vmatprep.subr.mxu0 0.0
    %5092 = vmatpush1.msra.mxu0 %v5014
    %5093 = vmatprep.subr.mxu0 0.0
    %5094 = vmatpush1.msra.mxu0 %v5015
    %5095 = vmatprep.subr.mxu0 0.0
    %5096 = vmatpush1.msra.mxu0 %v5016
    %5097 = vmatprep.subr.mxu0 0.0
    %5098 = vmatpush1.msra.mxu0 %v5017
    %5099 = vmatprep.subr.mxu0 0.0
    %5100 = vmatpush1.msra.mxu0 %v5018
    %5101 = vmatprep.subr.mxu0 0.0
    %5102 = vmatpush1.msra.mxu0 %v5019
    %5103 = vmatprep.subr.mxu0 0.0
    %5104 = vmatpush1.msra.mxu0 %v5020
    %5105 = vmatprep.subr.mxu0 0.0
    %5106 = vmatpush1.msra.mxu0 %v5021
    %5107 = vmatprep.subr.mxu0 0.0
    %5108 = vmatpush1.msra.mxu0 %v5022
    %5109 = vmatprep.subr.mxu0 0.0
    %5110 = vmatpush1.msra.mxu0 %v5023
    %5111 = vmatprep.subr.mxu0 0.0
    %5112 = vmatpush1.msra.mxu0 %v5024
    %5113 = vmatprep.subr.mxu0 0.0
    %5114 = vmatpush1.msra.mxu0 %v5025
    %5115 = vmatprep.subr.mxu0 0.0
    %5116 = vmatpush1.msra.mxu0 %v5026
    %5117 = vmatprep.subr.mxu0 0.0
    %5118 = vmatpush1.msra.mxu0 %v5027
    %5119 = vmatprep.subr.mxu0 0.0
    %5120 = vmatpush1.msra.mxu0 %v5028
    %5121 = vmatprep.subr.mxu0 0.0
    %5122 = vmatpush1.msra.mxu0 %v5029
    %5123 = vmatprep.subr.mxu0 0.0
    %5124 = vmatpush1.msra.mxu0 %v5030
    %5125 = vmatprep.subr.mxu0 0.0
    %5126 = vmatpush1.msra.mxu0 %v5031
    %5127 = vmatprep.subr.mxu0 0.0
    %5128 = vmatpush1.msra.mxu0 %v5032
    %5129 = vmatprep.subr.mxu0 0.0
    %5130 = vmatpush1.msra.mxu0 %v5033
    %5131 = vmatprep.subr.mxu0 0.0
    %5132 = vmatpush1.msra.mxu0 %v5034
    %5133 = vmatprep.subr.mxu0 0.0
    %5134 = vmatpush1.msra.mxu0 %v5035
    %5135 = vmatprep.subr.mxu0 0.0
    %5136 = vmatpush1.msra.mxu0 %v5036
    %5137 = vmatprep.subr.mxu0 0.0
    %5138 = vmatpush1.msra.mxu0 %v5037
    %5139 = vmatprep.subr.mxu0 0.0
    %5140 = vmatpush1.msra.mxu0 %v5038
    %5141 = vmatprep.subr.mxu0 0.0
    %5142 = vmatpush1.msra.mxu0 %v5039
    %5143 = vmatprep.mubr.f32.mxu0 %v4998
    %5144 = vmatmul.mubr.f32.gmra.mrb[0].mxu0 %v4994
    %v5145 = vpop.f32.mrb[0].mxu0
    %v5146 = vadd.f32 %v5077, %v5145
    %v5147 = vpop.f32.mrb[0].mxu0
    %5148 = vdwg.mxu0
    %5149 = vmatprep.subr.mxu0 0.0
    %5150 = vmatpush1.msra.mxu0 %v5040
    %5151 = vmatprep.subr.mxu0 0.0
    %5152 = vmatpush1.msra.mxu0 %v5041
    %5153 = vmatprep.subr.mxu0 0.0
    %5154 = vmatpush1.msra.mxu0 %v5042
    %5155 = vmatprep.subr.mxu0 0.0
    %5156 = vmatpush1.msra.mxu0 %v5043
    %5157 = vmatprep.subr.mxu0 0.0
    %5158 = vmatpush1.msra.mxu0 %v5044
    %5159 = vmatprep.subr.mxu0 0.0
    %5160 = vmatpush1.msra.mxu0 %v5045
    %5161 = vmatprep.subr.mxu0 0.0
    %5162 = vmatpush1.msra.mxu0 %v5046
    %5163 = vmatprep.subr.mxu0 0.0
    %5164 = vmatpush1.msra.mxu0 %v5047
    %5165 = vmatprep.subr.mxu0 0.0
    %5166 = vmatpush1.msra.mxu0 %v5048
    %5167 = vmatprep.subr.mxu0 0.0
    %5168 = vmatpush1.msra.mxu0 %v5049
    %5169 = vmatprep.subr.mxu0 0.0
    %5170 = vmatpush1.msra.mxu0 %v5050
    %5171 = vmatprep.subr.mxu0 0.0
    %5172 = vmatpush1.msra.mxu0 %v5051
    %5173 = vmatprep.subr.mxu0 0.0
    %5174 = vmatpush1.msra.mxu0 %v5052
    %5175 = vmatprep.subr.mxu0 0.0
    %5176 = vmatpush1.msra.mxu0 %v5053
    %5177 = vmatprep.subr.mxu0 0.0
    %5178 = vmatpush1.msra.mxu0 %v5054
    %5179 = vmatprep.subr.mxu0 0.0
    %5180 = vmatpush1.msra.mxu0 %v5055
    %5181 = vmatprep.subr.mxu0 0.0
    %5182 = vmatpush1.msra.mxu0 %v5056
    %5183 = vmatprep.subr.mxu0 0.0
    %5184 = vmatpush1.msra.mxu0 %v5057
    %5185 = vmatprep.subr.mxu0 0.0
    %5186 = vmatpush1.msra.mxu0 %v5058
    %5187 = vmatprep.subr.mxu0 0.0
    %5188 = vmatpush1.msra.mxu0 %v5059
    %5189 = vmatprep.subr.mxu0 0.0
    %5190 = vmatpush1.msra.mxu0 %v5060
    %5191 = vmatprep.subr.mxu0 0.0
    %5192 = vmatpush1.msra.mxu0 %v5061
    %5193 = vmatprep.subr.mxu0 0.0
    %5194 = vmatpush1.msra.mxu0 %v5062
    %5195 = vmatprep.subr.mxu0 0.0
    %5196 = vmatpush1.msra.mxu0 %v5063
    %5197 = vmatprep.subr.mxu0 0.0
    %5198 = vmatpush1.msra.mxu0 %v5064
    %5199 = vmatprep.subr.mxu0 0.0
    %5200 = vmatpush1.msra.mxu0 %v5065
    %5201 = vmatprep.subr.mxu0 0.0
    %5202 = vmatpush1.msra.mxu0 %v5066
    %5203 = vmatprep.subr.mxu0 0.0
    %5204 = vmatpush1.msra.mxu0 %v5067
    %5205 = vmatprep.subr.mxu0 0.0
    %5206 = vmatpush1.msra.mxu0 %v5068
    %5207 = vmatprep.subr.mxu0 0.0
    %5208 = vmatpush1.msra.mxu0 %v5069
    %5209 = vmatprep.subr.mxu0 0.0
    %5210 = vmatpush1.msra.mxu0 %v5070
    %5211 = vmatprep.subr.mxu0 0.0
    %5212 = vmatpush1.msra.mxu0 %v5071
    %5213 = vmatprep.mubr.f32.mxu0 %v5006
    %5214 = vmatmul.mubr.f32.gmra.mrb[0].mxu0 %v5002
    %v5215 = vpop.f32.mrb[0].mxu0
    %v5216 = vadd.f32 %v5146, %v5215
    %v5217 = vpop.f32.mrb[0].mxu0
    %5218 = vdwg.mxu0
    %5219 = vst [vmem:[#allocation22] sm:$0x3] %v5216
    // Predicated region
    $region102: #{fmnist_cnn_forward.1} parent=1 // pred_check
      _
    $region103: #{fmnist_cnn_forward.1} parent=1 // pred_check_branch
      %5221 = sbr.rel (0) target = $region105
    $region104: #{fmnist_cnn_forward.1} parent=1 // pred_region
      %s5223 = ssub.s32 32, 32
      %5224 = vsyncadd [#allocation4], %s5223
      %s5226 = sshll.u32 [#allocation22], 4
      %s5227 = int_to_ptr.vmem [resolvable:$true] %s5226
      %5229 = dma.vmem_to_hbm [thread:$0]  %s5227, 32, %s13, [#allocation4]
    $region105: #{fmnist_cnn_forward.1} parent=1 // pred_fallthru
      _
    // Predicated region
    $region106: #{fmnist_cnn_forward.1} parent=1 // pred_check
      _
    $region107: #{fmnist_cnn_forward.1} parent=1 // pred_check_branch
      %5231 = sbr.rel (0) target = $region109
    $region108: #{fmnist_cnn_forward.1} parent=1 // pred_region
      %5232 = dma.done [#allocation4], 32
    $region109: #{fmnist_cnn_forward.1} parent=1 // pred_fallthru
      _
    %5233 = vsyncpa [#allocation3], 1
    %5234 = vsyncpa [#allocation6], 1
    %5235 = vsyncpa [#allocation9], 1
    %5236 = vsyncpa [#allocation12], 1
    %5237 = vsyncpa [#allocation15], 1
    %5238 = vsyncpa [#allocation18], 1
    %5239 = vsyncpa [#allocation21], 1
    %5240 = vsyncpa [#allocation4], 1

</llo_original>
